<compile_context>
chip_gen: v7x
topology: tpu7x:2x2x1
jax: 0.10.0
libtpu: 0.0.40
codegen_flags: <defaults>
</compile_context>

<pallas_src>
import functools
import math

import jax
import jax.numpy as jnp
from jax import lax
from jax.experimental import pallas as pl
from jax.experimental.pallas import tpu as pltpu

_GELU_C = math.sqrt(2.0 / math.pi)


def _vmem_limit_bytes() -> int:
    """Generation-aware scoped-VMEM limit (v5e/v6e: 96 MiB, v7x: 48 MiB, fallback 32 MiB)."""
    try:
        cap = pltpu.get_tpu_info().vmem_capacity_bytes
        return int(min(cap * 3 // 4, 96 * 1024 * 1024))
    except Exception:
        return 32 * 1024 * 1024


_VMEM_LIMIT = _vmem_limit_bytes()


# ----------------------------------------------------------------------------- helpers
def _round_up(n: int, m: int) -> int:
    return ((n + m - 1) // m) * m


def _gelu(x):
    # tanh-approximate GELU (see TODO above)
    return 0.5 * x * (1.0 + jnp.tanh(_GELU_C * (x + 0.044715 * x * x * x)))


def _layernorm(x, gamma, beta, eps=1e-5):
    mean = jnp.mean(x, axis=-1, keepdims=True)
    var = jnp.mean((x - mean) ** 2, axis=-1, keepdims=True)
    return (x - mean) * lax.rsqrt(var + eps) * gamma + beta


def _make_pe(d_model: int, max_len: int) -> jnp.ndarray:
    """(max_len, d_model) sinusoidal table, same math as the PyTorch __init__."""
    position = jnp.arange(max_len, dtype=jnp.float32)[:, None]
    div_term = jnp.exp(
        jnp.arange(0, d_model, 2, dtype=jnp.float32) * (-math.log(10000.0) / d_model)
    )
    pe = jnp.zeros((max_len, d_model), dtype=jnp.float32)
    pe = pe.at[:, 0::2].set(jnp.sin(position * div_term))
    pe = pe.at[:, 1::2].set(jnp.cos(position * div_term))
    return pe


# ------------------------------------------------------------- single fused forward kernel
def _fused_forward_kernel(
    x_ref, pe_ref, pw_ref, pb_ref, ing_ref, inb_ref,          # input block
    wqkv_ref, bqkv_ref, wo_ref, bo_ref, ln1g_ref, ln1b_ref,   # encoder layer (current li)
    w1_ref, b1_ref, w2_ref, b2_ref, ln2g_ref, ln2b_ref,
    hw1_ref, hb1_ref, hw2_ref, hb2_ref,                        # output head (padded)
    o_ref,                                                     # (S, O_pad) output block
    act_ref,                                                   # (S, D) VMEM scratch
    *, n_head: int,
):
    li = pl.program_id(1)
    n_layers = pl.num_programs(1)

    # ---- layer-0 prologue: embedding projection + positional encoding + input LayerNorm
    @pl.when(li == 0)
    def _():
        h = jnp.dot(x_ref[...], pw_ref[...], preferred_element_type=jnp.float32)
        h = h + pb_ref[...] + pe_ref[...]
        act_ref[...] = _layernorm(h, ing_ref[...], inb_ref[...])

    # ---- one post-norm transformer encoder layer (weights already sliced to layer li)
    x = act_ref[...]                                   # (S, D)
    S, D = x.shape
    dh = D // n_head

    qkv = jnp.dot(x, wqkv_ref[...], preferred_element_type=jnp.float32) + bqkv_ref[...]
    q = qkv[:, 0:D] * (1.0 / math.sqrt(dh))            # scale folded into q (pre-QK^T)
    k = qkv[:, D:2 * D]
    v = qkv[:, 2 * D:3 * D]

    heads = []
    for hi in range(n_head):
        sl = slice(hi * dh, (hi + 1) * dh)
        s = lax.dot_general(q[:, sl], k[:, sl], (((1,), (1,)), ((), ())),
                            preferred_element_type=jnp.float32)          # (S, S)
        s = s - jnp.max(s, axis=-1, keepdims=True)
        p = jnp.exp(s)
        p = p * pl.reciprocal(jnp.sum(p, axis=-1, keepdims=True), approx=True)
        heads.append(jnp.dot(p, v[:, sl], preferred_element_type=jnp.float32))
    attn = jnp.concatenate(heads, axis=-1)                                # (S, D)
    # single full-depth (K = D) out-projection matmul
    attn = jnp.dot(attn, wo_ref[...], preferred_element_type=jnp.float32) + bo_ref[...]

    h1 = _layernorm(x + attn, ln1g_ref[...], ln1b_ref[...])

    ff = jnp.dot(h1, w1_ref[...], preferred_element_type=jnp.float32) + b1_ref[...]
    ff = _gelu(ff)
    ff = jnp.dot(ff, w2_ref[...], preferred_element_type=jnp.float32) + b2_ref[...]

    act_ref[...] = _layernorm(h1 + ff, ln2g_ref[...], ln2b_ref[...])

    # ---- last-layer epilogue: output head (Linear -> GELU -> Linear, lane-dense padded)
    @pl.when(li == n_layers - 1)
    def _():
        h = act_ref[...]
        z = jnp.dot(h, hw1_ref[...], preferred_element_type=jnp.float32) + hb1_ref[...]
        z = _gelu(z)
        z = jnp.dot(z, hw2_ref[...], preferred_element_type=jnp.float32) + hb2_ref[...]
        o_ref[...] = z.astype(o_ref.dtype)


# ------------------------------------------------------------------- full forward pass
def disprot_forward(params, esm_embeddings, pe_table, cfg):
    B, S, E = esm_embeddings.shape
    D, H, L, O = cfg.d_model, cfg.n_head, cfg.n_layer, cfg.o_dim

    # lane-dense padding of the ESM contraction dim and the output-head columns
    E_pad = _round_up(E, 128)
    O_pad = _round_up(O, 128)

    x = esm_embeddings
    proj_w = params["proj_w"]
    if E_pad != E:
        x = jnp.pad(x, ((0, 0), (0, 0), (0, E_pad - E)))
        proj_w = jnp.pad(proj_w, ((0, E_pad - E), (0, 0)))
    head_w2, head_b2 = params["head_w2"], params["head_b2"]
    if O_pad != O:
        head_w2 = jnp.pad(head_w2, ((0, 0), (0, O_pad - O)))
        head_b2 = jnp.pad(head_b2, ((0, 0), (0, O_pad - O)))

    pe_s = pe_table[:S].astype(x.dtype)                 # pe[:, :x.size(1)]

    # stack per-layer weights on a leading axis (streamed one layer per grid step)
    def stk(name):
        return jnp.stack([lp[name] for lp in params["layers"]], axis=0)

    wqkv, bqkv = stk("wqkv"), stk("bqkv")
    wo, bo = stk("wo"), stk("bo")
    ln1_g, ln1_b = stk("ln1_g"), stk("ln1_b")
    w1, b1 = stk("w1"), stk("b1")
    w2, b2 = stk("w2"), stk("b2")
    ln2_g, ln2_b = stk("ln2_g"), stk("ln2_b")

    def const2(a):   # full-array block, VMEM-resident across the whole grid
        return pl.BlockSpec(a.shape, lambda bi, li: (0, 0))

    def per_layer(a):  # (None, ...) block indexed by the layer grid axis
        return pl.BlockSpec((None,) + a.shape[1:], lambda bi, li: (li, 0, 0))

    kernel = functools.partial(_fused_forward_kernel, n_head=H)

    out_pad = pl.pallas_call(
        kernel,
        out_shape=jax.ShapeDtypeStruct((B, S, O_pad), x.dtype),
        grid=(B, L),
        in_specs=[
            pl.BlockSpec((None, S, E_pad), lambda bi, li: (bi, 0, 0)),   # x
            const2(pe_s),
            const2(proj_w), const2(params["proj_b"]),
            const2(params["in_ln_g"]), const2(params["in_ln_b"]),
            per_layer(wqkv), per_layer(bqkv),
            per_layer(wo), per_layer(bo),
            per_layer(ln1_g), per_layer(ln1_b),
            per_layer(w1), per_layer(b1),
            per_layer(w2), per_layer(b2),
            per_layer(ln2_g), per_layer(ln2_b),
            const2(params["head_w1"]), const2(params["head_b1"]),
            const2(head_w2), const2(head_b2),
        ],
        out_specs=pl.BlockSpec((None, S, O_pad), lambda bi, li: (bi, 0, 0)),
        scratch_shapes=[pltpu.VMEM((S, D), jnp.float32)],
        compiler_params=pltpu.CompilerParams(
            dimension_semantics=("parallel", "arbitrary"),
            vmem_limit_bytes=_VMEM_LIMIT,
        ),
    )(x, pe_s, proj_w, params["proj_b"], params["in_ln_g"], params["in_ln_b"],
      wqkv, bqkv, wo, bo, ln1_g, ln1_b, w1, b1, w2, b2, ln2_g, ln2_b,
      params["head_w1"], params["head_b1"], head_w2, head_b2)

    return out_pad[:, :, :O]


# --------------------------------------------------------------------- pure-JAX reference
def disprot_reference(params, x, pe_table, cfg):
    B, S, _ = x.shape
    D, H = cfg.d_model, cfg.n_head
    dh = D // H
    h = x @ params["proj_w"] + params["proj_b"]
    h = h + pe_table[:S][None, :, :]
    h = _layernorm(h, params["in_ln_g"], params["in_ln_b"])
    for lp in params["layers"]:
        qkv = h @ lp["wqkv"] + lp["bqkv"]
        q, k, v = jnp.split(qkv, 3, axis=-1)
        q = q.reshape(B, S, H, dh).transpose(0, 2, 1, 3)
        k = k.reshape(B, S, H, dh).transpose(0, 2, 1, 3)
        v = v.reshape(B, S, H, dh).transpose(0, 2, 1, 3)
        s = jnp.einsum("bhqd,bhkd->bhqk", q, k) / math.sqrt(dh)
        p = jax.nn.softmax(s, axis=-1)
        attn = jnp.einsum("bhqk,bhkd->bhqd", p, v).transpose(0, 2, 1, 3).reshape(B, S, D)
        attn = attn @ lp["wo"] + lp["bo"]
        h = _layernorm(h + attn, lp["ln1_g"], lp["ln1_b"])
        ff = _gelu(h @ lp["w1"] + lp["b1"]) @ lp["w2"] + lp["b2"]
        h = _layernorm(h + ff, lp["ln2_g"], lp["ln2_b"])
    return _gelu(h @ params["head_w1"] + params["head_b1"]) @ params["head_w2"] + params["head_b2"]


# ------------------------------------------------------------------------- parameter init
def _init_params(key, cfg):
    D, E, F, O = cfg.d_model, cfg.esm_embedding_dim, 4 * cfg.d_model, cfg.o_dim

    def lin(k, fi, fo):
        kw, kb = jax.random.split(k)
        w = jax.random.normal(kw, (fi, fo), jnp.float32) / math.sqrt(fi)
        b = 0.02 * jax.random.normal(kb, (1, fo), jnp.float32)
        return w, b

    def ln(k, d):
        kg, kb = jax.random.split(k)
        g = 1.0 + 0.1 * jax.random.normal(kg, (1, d), jnp.float32)
        b = 0.1 * jax.random.normal(kb, (1, d), jnp.float32)
        return g, b

    keys = jax.random.split(key, cfg.n_layer + 3)
    params = {}
    params["proj_w"], params["proj_b"] = lin(keys[0], E, D)
    params["in_ln_g"], params["in_ln_b"] = ln(keys[1], D)
    layers = []
    for i in range(cfg.n_layer):
        k1, k2, k3, k4, k5, k6 = jax.random.split(keys[2 + i], 6)
        wqkv, bqkv = lin(k1, D, 3 * D)
        wo, bo = lin(k2, D, D)
        w1, b1 = lin(k3, D, F)
        w2, b2 = lin(k4, F, D)
        ln1_g, ln1_b = ln(k5, D)
        ln2_g, ln2_b = ln(k6, D)
        layers.append(dict(wqkv=wqkv, bqkv=bqkv, wo=wo, bo=bo,
                           ln1_g=ln1_g, ln1_b=ln1_b,
                           w1=w1, b1=b1, w2=w2, b2=b2,
                           ln2_g=ln2_g, ln2_b=ln2_b))
    params["layers"] = layers
    kh1, kh2 = jax.random.split(keys[2 + cfg.n_layer])
    params["head_w1"], params["head_b1"] = lin(kh1, D, D)
    params["head_w2"], params["head_b2"] = lin(kh2, D, O)
    return params


class ModelConfig:
    d_model = 128            # lane-dense (multiple of 128)
    n_head = 4
    n_layer = 2
    esm_embedding_dim = 64
    max_len = 64
    o_dim = 2


if __name__ == "__main__":
    cfg = ModelConfig()
    B, S = 2, 8

    key = jax.random.PRNGKey(0)
    kx, kp = jax.random.split(key)
    esm_embeddings = jax.random.normal(kx, (B, S, cfg.esm_embedding_dim), jnp.float32)
    params = _init_params(kp, cfg)
    pe_table = _make_pe(cfg.d_model, cfg.max_len + 2)   # max_len + 2, as in DisProtModel

    out = disprot_forward(params, esm_embeddings, pe_table, cfg)
    out = jax.block_until_ready(out)

    ref = disprot_reference(params, esm_embeddings, pe_table, cfg)
    assert out.shape == (B, S, cfg.o_dim)
    assert jnp.allclose(out, ref, atol=3e-2, rtol=3e-2), "mismatch vs reference"

    print("KERNEL_OK")
</pallas_src>

<mosaic_0001>
module attributes {stable_mosaic.version = 11 : i64} {
  func.func @_fused_forward_kernel(%arg0: i32, %arg1: i32, %arg2: memref<1x8x128xf32, #tpu.memory_space<vmem>>, %arg3: memref<8x128xf32, #tpu.memory_space<vmem>>, %arg4: memref<128x128xf32, #tpu.memory_space<vmem>>, %arg5: memref<1x128xf32, #tpu.memory_space<vmem>>, %arg6: memref<1x128xf32, #tpu.memory_space<vmem>>, %arg7: memref<1x128xf32, #tpu.memory_space<vmem>>, %arg8: memref<1x128x384xf32, #tpu.memory_space<vmem>>, %arg9: memref<1x1x384xf32, #tpu.memory_space<vmem>>, %arg10: memref<1x128x128xf32, #tpu.memory_space<vmem>>, %arg11: memref<1x1x128xf32, #tpu.memory_space<vmem>>, %arg12: memref<1x1x128xf32, #tpu.memory_space<vmem>>, %arg13: memref<1x1x128xf32, #tpu.memory_space<vmem>>, %arg14: memref<1x128x512xf32, #tpu.memory_space<vmem>>, %arg15: memref<1x1x512xf32, #tpu.memory_space<vmem>>, %arg16: memref<1x512x128xf32, #tpu.memory_space<vmem>>, %arg17: memref<1x1x128xf32, #tpu.memory_space<vmem>>, %arg18: memref<1x1x128xf32, #tpu.memory_space<vmem>>, %arg19: memref<1x1x128xf32, #tpu.memory_space<vmem>>, %arg20: memref<128x128xf32, #tpu.memory_space<vmem>>, %arg21: memref<1x128xf32, #tpu.memory_space<vmem>>, %arg22: memref<128x128xf32, #tpu.memory_space<vmem>>, %arg23: memref<1x128xf32, #tpu.memory_space<vmem>>, %arg24: memref<1x8x128xf32, #tpu.memory_space<vmem>>, %arg25: memref<8x128xf32, #tpu.memory_space<vmem>>) attributes {dimension_semantics = [#tpu.dimension_semantics<parallel>, #tpu.dimension_semantics<arbitrary>], iteration_bounds = array<i64: 2, 2>, scalar_prefetch = 0 : i64, scratch_operands = 1 : i64, tpu.core_type = #tpu.core_type<tc>, window_params = [{transform_indices = @transform_0, window_bounds = array<i64: 1, 8, 128>}, {pipeline_mode = #tpu.pipeline_mode<synchronous>, transform_indices = @transform_1, window_bounds = array<i64: 8, 128>}, {pipeline_mode = #tpu.pipeline_mode<synchronous>, transform_indices = @transform_2, window_bounds = array<i64: 128, 128>}, {pipeline_mode = #tpu.pipeline_mode<synchronous>, transform_indices = @transform_3, window_bounds = array<i64: 1, 128>}, {pipeline_mode = #tpu.pipeline_mode<synchronous>, transform_indices = @transform_4, window_bounds = array<i64: 1, 128>}, {pipeline_mode = #tpu.pipeline_mode<synchronous>, transform_indices = @transform_5, window_bounds = array<i64: 1, 128>}, {transform_indices = @transform_6, window_bounds = array<i64: 1, 128, 384>}, {transform_indices = @transform_7, window_bounds = array<i64: 1, 1, 384>}, {transform_indices = @transform_8, window_bounds = array<i64: 1, 128, 128>}, {transform_indices = @transform_9, window_bounds = array<i64: 1, 1, 128>}, {transform_indices = @transform_10, window_bounds = array<i64: 1, 1, 128>}, {transform_indices = @transform_11, window_bounds = array<i64: 1, 1, 128>}, {transform_indices = @transform_12, window_bounds = array<i64: 1, 128, 512>}, {transform_indices = @transform_13, window_bounds = array<i64: 1, 1, 512>}, {transform_indices = @transform_14, window_bounds = array<i64: 1, 512, 128>}, {transform_indices = @transform_15, window_bounds = array<i64: 1, 1, 128>}, {transform_indices = @transform_16, window_bounds = array<i64: 1, 1, 128>}, {transform_indices = @transform_17, window_bounds = array<i64: 1, 1, 128>}, {pipeline_mode = #tpu.pipeline_mode<synchronous>, transform_indices = @transform_18, window_bounds = array<i64: 128, 128>}, {pipeline_mode = #tpu.pipeline_mode<synchronous>, transform_indices = @transform_19, window_bounds = array<i64: 1, 128>}, {pipeline_mode = #tpu.pipeline_mode<synchronous>, transform_indices = @transform_20, window_bounds = array<i64: 128, 128>}, {pipeline_mode = #tpu.pipeline_mode<synchronous>, transform_indices = @transform_21, window_bounds = array<i64: 1, 128>}, {transform_indices = @transform_22, window_bounds = array<i64: 1, 8, 128>}]} {
    %c0_i32 = arith.constant 0 : i32
    %0 = arith.cmpi eq, %arg1, %c0_i32 : i32
    %1 = arith.extui %0 : i1 to i32
    %c0_i32_0 = arith.constant 0 : i32
    %2 = arith.cmpi ne, %1, %c0_i32_0 : i32
    scf.if %2 {
      %c0_75 = arith.constant 0 : index
      %c0_76 = arith.constant 0 : index
      %c0_77 = arith.constant 0 : index
      %169 = vector.load %arg2[%c0_75, %c0_76, %c0_77] : memref<1x8x128xf32, #tpu.memory_space<vmem>>, vector<1x8x128xf32>
      %170 = vector.shape_cast %169 : vector<1x8x128xf32> to vector<8x128xf32>
      %c0_78 = arith.constant 0 : index
      %c0_79 = arith.constant 0 : index
      %171 = vector.load %arg4[%c0_78, %c0_79] : memref<128x128xf32, #tpu.memory_space<vmem>>, vector<128x128xf32>
      %cst_80 = arith.constant dense<0.000000e+00> : vector<8x128xf32>
      %172 = tpu.matmul %170, %171, %cst_80 {dimension_numbers = #tpu.dot_dimension_numbers<[1], [0], [0], [1], [0, 0, 1, 1], [], []>} : vector<8x128xf32>, vector<128x128xf32>, vector<8x128xf32> -> vector<8x128xf32>
      %c0_81 = arith.constant 0 : index
      %c0_82 = arith.constant 0 : index
      %173 = vector.load %arg5[%c0_81, %c0_82] : memref<1x128xf32, #tpu.memory_space<vmem>>, vector<1x128xf32>
      %174 = vector.broadcast %173 : vector<1x128xf32> to vector<8x128xf32>
      %175 = arith.addf %172, %174 : vector<8x128xf32>
      %c0_83 = arith.constant 0 : index
      %c0_84 = arith.constant 0 : index
      %176 = vector.load %arg3[%c0_83, %c0_84] : memref<8x128xf32, #tpu.memory_space<vmem>>, vector<8x128xf32>
      %177 = arith.addf %175, %176 : vector<8x128xf32>
      %c0_85 = arith.constant 0 : index
      %c0_86 = arith.constant 0 : index
      %178 = vector.load %arg6[%c0_85, %c0_86] : memref<1x128xf32, #tpu.memory_space<vmem>>, vector<1x128xf32>
      %c0_87 = arith.constant 0 : index
      %c0_88 = arith.constant 0 : index
      %179 = vector.load %arg7[%c0_87, %c0_88] : memref<1x128xf32, #tpu.memory_space<vmem>>, vector<1x128xf32>
      %cst_89 = arith.constant dense<0.000000e+00> : vector<8xf32>
      %180 = vector.multi_reduction <add>, %177, %cst_89 [1] : vector<8x128xf32> to vector<8xf32>
      %181 = vector.shape_cast %180 : vector<8xf32> to vector<8x1xf32>
      %cst_90 = arith.constant 1.280000e+02 : f32
      %182 = vector.broadcast %cst_90 : f32 to vector<8x1xf32>
      %183 = arith.divf %181, %182 : vector<8x1xf32>
      %184 = vector.broadcast %183 : vector<8x1xf32> to vector<8x128xf32>
      %185 = arith.subf %177, %184 : vector<8x128xf32>
      %186 = arith.mulf %185, %185 : vector<8x128xf32>
      %cst_91 = arith.constant dense<0.000000e+00> : vector<8xf32>
      %187 = vector.multi_reduction <add>, %186, %cst_91 [1] : vector<8x128xf32> to vector<8xf32>
      %188 = vector.shape_cast %187 : vector<8xf32> to vector<8x1xf32>
      %cst_92 = arith.constant 1.280000e+02 : f32
      %189 = vector.broadcast %cst_92 : f32 to vector<8x1xf32>
      %190 = arith.divf %188, %189 : vector<8x1xf32>
      %191 = vector.broadcast %183 : vector<8x1xf32> to vector<8x128xf32>
      %192 = arith.subf %177, %191 : vector<8x128xf32>
      %cst_93 = arith.constant 9.99999974E-6 : f32
      %193 = vector.broadcast %cst_93 : f32 to vector<8x1xf32>
      %194 = arith.addf %190, %193 : vector<8x1xf32>
      %195 = math.rsqrt %194 : vector<8x1xf32>
      %196 = vector.broadcast %195 : vector<8x1xf32> to vector<8x128xf32>
      %197 = arith.mulf %192, %196 : vector<8x128xf32>
      %198 = vector.broadcast %178 : vector<1x128xf32> to vector<8x128xf32>
      %199 = arith.mulf %197, %198 : vector<8x128xf32>
      %200 = vector.broadcast %179 : vector<1x128xf32> to vector<8x128xf32>
      %201 = arith.addf %199, %200 : vector<8x128xf32>
      %c0_94 = arith.constant 0 : index
      %c0_95 = arith.constant 0 : index
      %202 = vector.load %arg25[%c0_94, %c0_95] : memref<8x128xf32, #tpu.memory_space<vmem>>, vector<8x128xf32>
      tpu.vector_store %arg25[%c0_94, %c0_95], %201 {strides = array<i32>} : memref<8x128xf32, #tpu.memory_space<vmem>>, vector<8x128xf32>,
    } else {
    }
    %c0 = arith.constant 0 : index
    %c0_1 = arith.constant 0 : index
    %3 = vector.load %arg25[%c0, %c0_1] : memref<8x128xf32, #tpu.memory_space<vmem>>, vector<8x128xf32>
    %c0_2 = arith.constant 0 : index
    %c0_3 = arith.constant 0 : index
    %c0_4 = arith.constant 0 : index
    %4 = vector.load %arg8[%c0_2, %c0_3, %c0_4] : memref<1x128x384xf32, #tpu.memory_space<vmem>>, vector<1x128x384xf32>
    %5 = vector.shape_cast %4 : vector<1x128x384xf32> to vector<128x384xf32>
    %cst = arith.constant dense<0.000000e+00> : vector<8x384xf32>
    %6 = tpu.matmul %3, %5, %cst {dimension_numbers = #tpu.dot_dimension_numbers<[1], [0], [0], [1], [0, 0, 1, 1], [], []>} : vector<8x128xf32>, vector<128x384xf32>, vector<8x384xf32> -> vector<8x384xf32>
    %c0_5 = arith.constant 0 : index
    %c0_6 = arith.constant 0 : index
    %c0_7 = arith.constant 0 : index
    %7 = vector.load %arg9[%c0_5, %c0_6, %c0_7] : memref<1x1x384xf32, #tpu.memory_space<vmem>>, vector<1x1x384xf32>
    %8 = vector.shape_cast %7 : vector<1x1x384xf32> to vector<1x384xf32>
    %9 = vector.broadcast %8 : vector<1x384xf32> to vector<8x384xf32>
    %10 = arith.addf %6, %9 : vector<8x384xf32>
    %11 = vector.extract_strided_slice %10 {offsets = [0, 0], sizes = [8, 128], strides = [1, 1]} : vector<8x384xf32> to vector<8x128xf32>
    %cst_8 = arith.constant 0.176776692 : f32
    %12 = vector.broadcast %cst_8 : f32 to vector<8x128xf32>
    %13 = arith.mulf %11, %12 : vector<8x128xf32>
    %14 = vector.extract_strided_slice %10 {offsets = [0, 128], sizes = [8, 128], strides = [1, 1]} : vector<8x384xf32> to vector<8x128xf32>
    %15 = vector.extract_strided_slice %10 {offsets = [0, 256], sizes = [8, 128], strides = [1, 1]} : vector<8x384xf32> to vector<8x128xf32>
    %16 = vector.extract_strided_slice %13 {offsets = [0, 0], sizes = [8, 32], strides = [1, 1]} : vector<8x128xf32> to vector<8x32xf32>
    %17 = vector.extract_strided_slice %14 {offsets = [0, 0], sizes = [8, 32], strides = [1, 1]} : vector<8x128xf32> to vector<8x32xf32>
    %cst_9 = arith.constant dense<0.000000e+00> : vector<8x8xf32>
    %18 = tpu.matmul %16, %17, %cst_9 {dimension_numbers = #tpu.dot_dimension_numbers<[1], [1], [0], [0], [0, 0, 1, 0], [], []>} : vector<8x32xf32>, vector<8x32xf32>, vector<8x8xf32> -> vector<8x8xf32>
    %cst_10 = arith.constant dense<0xFF800000> : vector<8xf32>
    %19 = vector.multi_reduction <maximumf>, %18, %cst_10 [1] : vector<8x8xf32> to vector<8xf32>
    %20 = vector.shape_cast %19 : vector<8xf32> to vector<8x1xf32>
    %21 = vector.broadcast %20 : vector<8x1xf32> to vector<8x8xf32>
    %22 = arith.subf %18, %21 : vector<8x8xf32>
    %23 = math.exp %22 : vector<8x8xf32>
    %cst_11 = arith.constant dense<0.000000e+00> : vector<8xf32>
    %24 = vector.multi_reduction <add>, %23, %cst_11 [1] : vector<8x8xf32> to vector<8xf32>
    %25 = vector.shape_cast %24 : vector<8xf32> to vector<8x1xf32>
    %26 = tpu.reciprocal %25 {approx = true} : vector<8x1xf32> -> vector<8x1xf32>
    %27 = vector.broadcast %26 : vector<8x1xf32> to vector<8x8xf32>
    %28 = arith.mulf %23, %27 : vector<8x8xf32>
    %29 = vector.extract_strided_slice %15 {offsets = [0, 0], sizes = [8, 32], strides = [1, 1]} : vector<8x128xf32> to vector<8x32xf32>
    %cst_12 = arith.constant dense<0.000000e+00> : vector<8x32xf32>
    %30 = tpu.matmul %28, %29, %cst_12 {dimension_numbers = #tpu.dot_dimension_numbers<[1], [0], [0], [1], [0, 0, 1, 1], [], []>} : vector<8x8xf32>, vector<8x32xf32>, vector<8x32xf32> -> vector<8x32xf32>
    %31 = vector.extract_strided_slice %13 {offsets = [0, 32], sizes = [8, 32], strides = [1, 1]} : vector<8x128xf32> to vector<8x32xf32>
    %32 = vector.extract_strided_slice %14 {offsets = [0, 32], sizes = [8, 32], strides = [1, 1]} : vector<8x128xf32> to vector<8x32xf32>
    %cst_13 = arith.constant dense<0.000000e+00> : vector<8x8xf32>
    %33 = tpu.matmul %31, %32, %cst_13 {dimension_numbers = #tpu.dot_dimension_numbers<[1], [1], [0], [0], [0, 0, 1, 0], [], []>} : vector<8x32xf32>, vector<8x32xf32>, vector<8x8xf32> -> vector<8x8xf32>
    %cst_14 = arith.constant dense<0xFF800000> : vector<8xf32>
    %34 = vector.multi_reduction <maximumf>, %33, %cst_14 [1] : vector<8x8xf32> to vector<8xf32>
    %35 = vector.shape_cast %34 : vector<8xf32> to vector<8x1xf32>
    %36 = vector.broadcast %35 : vector<8x1xf32> to vector<8x8xf32>
    %37 = arith.subf %33, %36 : vector<8x8xf32>
    %38 = math.exp %37 : vector<8x8xf32>
    %cst_15 = arith.constant dense<0.000000e+00> : vector<8xf32>
    %39 = vector.multi_reduction <add>, %38, %cst_15 [1] : vector<8x8xf32> to vector<8xf32>
    %40 = vector.shape_cast %39 : vector<8xf32> to vector<8x1xf32>
    %41 = tpu.reciprocal %40 {approx = true} : vector<8x1xf32> -> vector<8x1xf32>
    %42 = vector.broadcast %41 : vector<8x1xf32> to vector<8x8xf32>
    %43 = arith.mulf %38, %42 : vector<8x8xf32>
    %44 = vector.extract_strided_slice %15 {offsets = [0, 32], sizes = [8, 32], strides = [1, 1]} : vector<8x128xf32> to vector<8x32xf32>
    %cst_16 = arith.constant dense<0.000000e+00> : vector<8x32xf32>
    %45 = tpu.matmul %43, %44, %cst_16 {dimension_numbers = #tpu.dot_dimension_numbers<[1], [0], [0], [1], [0, 0, 1, 1], [], []>} : vector<8x8xf32>, vector<8x32xf32>, vector<8x32xf32> -> vector<8x32xf32>
    %46 = vector.extract_strided_slice %13 {offsets = [0, 64], sizes = [8, 32], strides = [1, 1]} : vector<8x128xf32> to vector<8x32xf32>
    %47 = vector.extract_strided_slice %14 {offsets = [0, 64], sizes = [8, 32], strides = [1, 1]} : vector<8x128xf32> to vector<8x32xf32>
    %cst_17 = arith.constant dense<0.000000e+00> : vector<8x8xf32>
    %48 = tpu.matmul %46, %47, %cst_17 {dimension_numbers = #tpu.dot_dimension_numbers<[1], [1], [0], [0], [0, 0, 1, 0], [], []>} : vector<8x32xf32>, vector<8x32xf32>, vector<8x8xf32> -> vector<8x8xf32>
    %cst_18 = arith.constant dense<0xFF800000> : vector<8xf32>
    %49 = vector.multi_reduction <maximumf>, %48, %cst_18 [1] : vector<8x8xf32> to vector<8xf32>
    %50 = vector.shape_cast %49 : vector<8xf32> to vector<8x1xf32>
    %51 = vector.broadcast %50 : vector<8x1xf32> to vector<8x8xf32>
    %52 = arith.subf %48, %51 : vector<8x8xf32>
    %53 = math.exp %52 : vector<8x8xf32>
    %cst_19 = arith.constant dense<0.000000e+00> : vector<8xf32>
    %54 = vector.multi_reduction <add>, %53, %cst_19 [1] : vector<8x8xf32> to vector<8xf32>
    %55 = vector.shape_cast %54 : vector<8xf32> to vector<8x1xf32>
    %56 = tpu.reciprocal %55 {approx = true} : vector<8x1xf32> -> vector<8x1xf32>
    %57 = vector.broadcast %56 : vector<8x1xf32> to vector<8x8xf32>
    %58 = arith.mulf %53, %57 : vector<8x8xf32>
    %59 = vector.extract_strided_slice %15 {offsets = [0, 64], sizes = [8, 32], strides = [1, 1]} : vector<8x128xf32> to vector<8x32xf32>
    %cst_20 = arith.constant dense<0.000000e+00> : vector<8x32xf32>
    %60 = tpu.matmul %58, %59, %cst_20 {dimension_numbers = #tpu.dot_dimension_numbers<[1], [0], [0], [1], [0, 0, 1, 1], [], []>} : vector<8x8xf32>, vector<8x32xf32>, vector<8x32xf32> -> vector<8x32xf32>
    %61 = vector.extract_strided_slice %13 {offsets = [0, 96], sizes = [8, 32], strides = [1, 1]} : vector<8x128xf32> to vector<8x32xf32>
    %62 = vector.extract_strided_slice %14 {offsets = [0, 96], sizes = [8, 32], strides = [1, 1]} : vector<8x128xf32> to vector<8x32xf32>
    %cst_21 = arith.constant dense<0.000000e+00> : vector<8x8xf32>
    %63 = tpu.matmul %61, %62, %cst_21 {dimension_numbers = #tpu.dot_dimension_numbers<[1], [1], [0], [0], [0, 0, 1, 0], [], []>} : vector<8x32xf32>, vector<8x32xf32>, vector<8x8xf32> -> vector<8x8xf32>
    %cst_22 = arith.constant dense<0xFF800000> : vector<8xf32>
    %64 = vector.multi_reduction <maximumf>, %63, %cst_22 [1] : vector<8x8xf32> to vector<8xf32>
    %65 = vector.shape_cast %64 : vector<8xf32> to vector<8x1xf32>
    %66 = vector.broadcast %65 : vector<8x1xf32> to vector<8x8xf32>
    %67 = arith.subf %63, %66 : vector<8x8xf32>
    %68 = math.exp %67 : vector<8x8xf32>
    %cst_23 = arith.constant dense<0.000000e+00> : vector<8xf32>
    %69 = vector.multi_reduction <add>, %68, %cst_23 [1] : vector<8x8xf32> to vector<8xf32>
    %70 = vector.shape_cast %69 : vector<8xf32> to vector<8x1xf32>
    %71 = tpu.reciprocal %70 {approx = true} : vector<8x1xf32> -> vector<8x1xf32>
    %72 = vector.broadcast %71 : vector<8x1xf32> to vector<8x8xf32>
    %73 = arith.mulf %68, %72 : vector<8x8xf32>
    %74 = vector.extract_strided_slice %15 {offsets = [0, 96], sizes = [8, 32], strides = [1, 1]} : vector<8x128xf32> to vector<8x32xf32>
    %cst_24 = arith.constant dense<0.000000e+00> : vector<8x32xf32>
    %75 = tpu.matmul %73, %74, %cst_24 {dimension_numbers = #tpu.dot_dimension_numbers<[1], [0], [0], [1], [0, 0, 1, 1], [], []>} : vector<8x8xf32>, vector<8x32xf32>, vector<8x32xf32> -> vector<8x32xf32>
    %76 = tpu.concatenate %30, %45, %60, %75 in 1 : vector<8x32xf32>, vector<8x32xf32>, vector<8x32xf32>, vector<8x32xf32> -> vector<8x128xf32>
    %c0_25 = arith.constant 0 : index
    %c0_26 = arith.constant 0 : index
    %c0_27 = arith.constant 0 : index
    %77 = vector.load %arg10[%c0_25, %c0_26, %c0_27] : memref<1x128x128xf32, #tpu.memory_space<vmem>>, vector<1x128x128xf32>
    %78 = vector.shape_cast %77 : vector<1x128x128xf32> to vector<128x128xf32>
    %cst_28 = arith.constant dense<0.000000e+00> : vector<8x128xf32>
    %79 = tpu.matmul %76, %78, %cst_28 {dimension_numbers = #tpu.dot_dimension_numbers<[1], [0], [0], [1], [0, 0, 1, 1], [], []>} : vector<8x128xf32>, vector<128x128xf32>, vector<8x128xf32> -> vector<8x128xf32>
    %c0_29 = arith.constant 0 : index
    %c0_30 = arith.constant 0 : index
    %c0_31 = arith.constant 0 : index
    %80 = vector.load %arg11[%c0_29, %c0_30, %c0_31] : memref<1x1x128xf32, #tpu.memory_space<vmem>>, vector<1x1x128xf32>
    %81 = vector.shape_cast %80 : vector<1x1x128xf32> to vector<1x128xf32>
    %82 = vector.broadcast %81 : vector<1x128xf32> to vector<8x128xf32>
    %83 = arith.addf %79, %82 : vector<8x128xf32>
    %84 = arith.addf %3, %83 : vector<8x128xf32>
    %c0_32 = arith.constant 0 : index
    %c0_33 = arith.constant 0 : index
    %c0_34 = arith.constant 0 : index
    %85 = vector.load %arg12[%c0_32, %c0_33, %c0_34] : memref<1x1x128xf32, #tpu.memory_space<vmem>>, vector<1x1x128xf32>
    %86 = vector.shape_cast %85 : vector<1x1x128xf32> to vector<1x128xf32>
    %c0_35 = arith.constant 0 : index
    %c0_36 = arith.constant 0 : index
    %c0_37 = arith.constant 0 : index
    %87 = vector.load %arg13[%c0_35, %c0_36, %c0_37] : memref<1x1x128xf32, #tpu.memory_space<vmem>>, vector<1x1x128xf32>
    %88 = vector.shape_cast %87 : vector<1x1x128xf32> to vector<1x128xf32>
    %cst_38 = arith.constant dense<0.000000e+00> : vector<8xf32>
    %89 = vector.multi_reduction <add>, %84, %cst_38 [1] : vector<8x128xf32> to vector<8xf32>
    %90 = vector.shape_cast %89 : vector<8xf32> to vector<8x1xf32>
    %cst_39 = arith.constant 1.280000e+02 : f32
    %91 = vector.broadcast %cst_39 : f32 to vector<8x1xf32>
    %92 = arith.divf %90, %91 : vector<8x1xf32>
    %93 = vector.broadcast %92 : vector<8x1xf32> to vector<8x128xf32>
    %94 = arith.subf %84, %93 : vector<8x128xf32>
    %95 = arith.mulf %94, %94 : vector<8x128xf32>
    %cst_40 = arith.constant dense<0.000000e+00> : vector<8xf32>
    %96 = vector.multi_reduction <add>, %95, %cst_40 [1] : vector<8x128xf32> to vector<8xf32>
    %97 = vector.shape_cast %96 : vector<8xf32> to vector<8x1xf32>
    %cst_41 = arith.constant 1.280000e+02 : f32
    %98 = vector.broadcast %cst_41 : f32 to vector<8x1xf32>
    %99 = arith.divf %97, %98 : vector<8x1xf32>
    %100 = vector.broadcast %92 : vector<8x1xf32> to vector<8x128xf32>
    %101 = arith.subf %84, %100 : vector<8x128xf32>
    %cst_42 = arith.constant 9.99999974E-6 : f32
    %102 = vector.broadcast %cst_42 : f32 to vector<8x1xf32>
    %103 = arith.addf %99, %102 : vector<8x1xf32>
    %104 = math.rsqrt %103 : vector<8x1xf32>
    %105 = vector.broadcast %104 : vector<8x1xf32> to vector<8x128xf32>
    %106 = arith.mulf %101, %105 : vector<8x128xf32>
    %107 = vector.broadcast %86 : vector<1x128xf32> to vector<8x128xf32>
    %108 = arith.mulf %106, %107 : vector<8x128xf32>
    %109 = vector.broadcast %88 : vector<1x128xf32> to vector<8x128xf32>
    %110 = arith.addf %108, %109 : vector<8x128xf32>
    %c0_43 = arith.constant 0 : index
    %c0_44 = arith.constant 0 : index
    %c0_45 = arith.constant 0 : index
    %111 = vector.load %arg14[%c0_43, %c0_44, %c0_45] : memref<1x128x512xf32, #tpu.memory_space<vmem>>, vector<1x128x512xf32>
    %112 = vector.shape_cast %111 : vector<1x128x512xf32> to vector<128x512xf32>
    %cst_46 = arith.constant dense<0.000000e+00> : vector<8x512xf32>
    %113 = tpu.matmul %110, %112, %cst_46 {dimension_numbers = #tpu.dot_dimension_numbers<[1], [0], [0], [1], [0, 0, 1, 1], [], []>} : vector<8x128xf32>, vector<128x512xf32>, vector<8x512xf32> -> vector<8x512xf32>
    %c0_47 = arith.constant 0 : index
    %c0_48 = arith.constant 0 : index
    %c0_49 = arith.constant 0 : index
    %114 = vector.load %arg15[%c0_47, %c0_48, %c0_49] : memref<1x1x512xf32, #tpu.memory_space<vmem>>, vector<1x1x512xf32>
    %115 = vector.shape_cast %114 : vector<1x1x512xf32> to vector<1x512xf32>
    %116 = vector.broadcast %115 : vector<1x512xf32> to vector<8x512xf32>
    %117 = arith.addf %113, %116 : vector<8x512xf32>
    %cst_50 = arith.constant 5.000000e-01 : f32
    %118 = vector.broadcast %cst_50 : f32 to vector<8x512xf32>
    %119 = arith.mulf %118, %117 : vector<8x512xf32>
    %cst_51 = arith.constant 4.471500e-02 : f32
    %120 = vector.broadcast %cst_51 : f32 to vector<8x512xf32>
    %121 = arith.mulf %120, %117 : vector<8x512xf32>
    %122 = arith.mulf %121, %117 : vector<8x512xf32>
    %123 = arith.mulf %122, %117 : vector<8x512xf32>
    %124 = arith.addf %117, %123 : vector<8x512xf32>
    %cst_52 = arith.constant 0.797884583 : f32
    %125 = vector.broadcast %cst_52 : f32 to vector<8x512xf32>
    %126 = arith.mulf %125, %124 : vector<8x512xf32>
    %127 = math.tanh %126 : vector<8x512xf32>
    %cst_53 = arith.constant 1.000000e+00 : f32
    %128 = vector.broadcast %cst_53 : f32 to vector<8x512xf32>
    %129 = arith.addf %128, %127 : vector<8x512xf32>
    %130 = arith.mulf %119, %129 : vector<8x512xf32>
    %c0_54 = arith.constant 0 : index
    %c0_55 = arith.constant 0 : index
    %c0_56 = arith.constant 0 : index
    %131 = vector.load %arg16[%c0_54, %c0_55, %c0_56] : memref<1x512x128xf32, #tpu.memory_space<vmem>>, vector<1x512x128xf32>
    %132 = vector.shape_cast %131 : vector<1x512x128xf32> to vector<512x128xf32>
    %cst_57 = arith.constant dense<0.000000e+00> : vector<8x128xf32>
    %133 = tpu.matmul %130, %132, %cst_57 {dimension_numbers = #tpu.dot_dimension_numbers<[1], [0], [0], [1], [0, 0, 1, 1], [], []>} : vector<8x512xf32>, vector<512x128xf32>, vector<8x128xf32> -> vector<8x128xf32>
    %c0_58 = arith.constant 0 : index
    %c0_59 = arith.constant 0 : index
    %c0_60 = arith.constant 0 : index
    %134 = vector.load %arg17[%c0_58, %c0_59, %c0_60] : memref<1x1x128xf32, #tpu.memory_space<vmem>>, vector<1x1x128xf32>
    %135 = vector.shape_cast %134 : vector<1x1x128xf32> to vector<1x128xf32>
    %136 = vector.broadcast %135 : vector<1x128xf32> to vector<8x128xf32>
    %137 = arith.addf %133, %136 : vector<8x128xf32>
    %138 = arith.addf %110, %137 : vector<8x128xf32>
    %c0_61 = arith.constant 0 : index
    %c0_62 = arith.constant 0 : index
    %c0_63 = arith.constant 0 : index
    %139 = vector.load %arg18[%c0_61, %c0_62, %c0_63] : memref<1x1x128xf32, #tpu.memory_space<vmem>>, vector<1x1x128xf32>
    %140 = vector.shape_cast %139 : vector<1x1x128xf32> to vector<1x128xf32>
    %c0_64 = arith.constant 0 : index
    %c0_65 = arith.constant 0 : index
    %c0_66 = arith.constant 0 : index
    %141 = vector.load %arg19[%c0_64, %c0_65, %c0_66] : memref<1x1x128xf32, #tpu.memory_space<vmem>>, vector<1x1x128xf32>
    %142 = vector.shape_cast %141 : vector<1x1x128xf32> to vector<1x128xf32>
    %cst_67 = arith.constant dense<0.000000e+00> : vector<8xf32>
    %143 = vector.multi_reduction <add>, %138, %cst_67 [1] : vector<8x128xf32> to vector<8xf32>
    %144 = vector.shape_cast %143 : vector<8xf32> to vector<8x1xf32>
    %cst_68 = arith.constant 1.280000e+02 : f32
    %145 = vector.broadcast %cst_68 : f32 to vector<8x1xf32>
    %146 = arith.divf %144, %145 : vector<8x1xf32>
    %147 = vector.broadcast %146 : vector<8x1xf32> to vector<8x128xf32>
    %148 = arith.subf %138, %147 : vector<8x128xf32>
    %149 = arith.mulf %148, %148 : vector<8x128xf32>
    %cst_69 = arith.constant dense<0.000000e+00> : vector<8xf32>
    %150 = vector.multi_reduction <add>, %149, %cst_69 [1] : vector<8x128xf32> to vector<8xf32>
    %151 = vector.shape_cast %150 : vector<8xf32> to vector<8x1xf32>
    %cst_70 = arith.constant 1.280000e+02 : f32
    %152 = vector.broadcast %cst_70 : f32 to vector<8x1xf32>
    %153 = arith.divf %151, %152 : vector<8x1xf32>
    %154 = vector.broadcast %146 : vector<8x1xf32> to vector<8x128xf32>
    %155 = arith.subf %138, %154 : vector<8x128xf32>
    %cst_71 = arith.constant 9.99999974E-6 : f32
    %156 = vector.broadcast %cst_71 : f32 to vector<8x1xf32>
    %157 = arith.addf %153, %156 : vector<8x1xf32>
    %158 = math.rsqrt %157 : vector<8x1xf32>
    %159 = vector.broadcast %158 : vector<8x1xf32> to vector<8x128xf32>
    %160 = arith.mulf %155, %159 : vector<8x128xf32>
    %161 = vector.broadcast %140 : vector<1x128xf32> to vector<8x128xf32>
    %162 = arith.mulf %160, %161 : vector<8x128xf32>
    %163 = vector.broadcast %142 : vector<1x128xf32> to vector<8x128xf32>
    %164 = arith.addf %162, %163 : vector<8x128xf32>
    %c0_72 = arith.constant 0 : index
    %c0_73 = arith.constant 0 : index
    %165 = vector.load %arg25[%c0_72, %c0_73] : memref<8x128xf32, #tpu.memory_space<vmem>>, vector<8x128xf32>
    tpu.vector_store %arg25[%c0_72, %c0_73], %164 {strides = array<i32>} : memref<8x128xf32, #tpu.memory_space<vmem>>, vector<8x128xf32>,
    %c1_i32 = arith.constant 1 : i32
    %166 = arith.cmpi eq, %arg1, %c1_i32 : i32
    %167 = arith.extui %166 : i1 to i32
    %c0_i32_74 = arith.constant 0 : i32
    %168 = arith.cmpi ne, %167, %c0_i32_74 : i32
    scf.if %168 {
      %c0_75 = arith.constant 0 : index
      %c0_76 = arith.constant 0 : index
      %169 = vector.load %arg25[%c0_75, %c0_76] : memref<8x128xf32, #tpu.memory_space<vmem>>, vector<8x128xf32>
      %c0_77 = arith.constant 0 : index
      %c0_78 = arith.constant 0 : index
      %170 = vector.load %arg20[%c0_77, %c0_78] : memref<128x128xf32, #tpu.memory_space<vmem>>, vector<128x128xf32>
      %cst_79 = arith.constant dense<0.000000e+00> : vector<8x128xf32>
      %171 = tpu.matmul %169, %170, %cst_79 {dimension_numbers = #tpu.dot_dimension_numbers<[1], [0], [0], [1], [0, 0, 1, 1], [], []>} : vector<8x128xf32>, vector<128x128xf32>, vector<8x128xf32> -> vector<8x128xf32>
      %c0_80 = arith.constant 0 : index
      %c0_81 = arith.constant 0 : index
      %172 = vector.load %arg21[%c0_80, %c0_81] : memref<1x128xf32, #tpu.memory_space<vmem>>, vector<1x128xf32>
      %173 = vector.broadcast %172 : vector<1x128xf32> to vector<8x128xf32>
      %174 = arith.addf %171, %173 : vector<8x128xf32>
      %cst_82 = arith.constant 5.000000e-01 : f32
      %175 = vector.broadcast %cst_82 : f32 to vector<8x128xf32>
      %176 = arith.mulf %175, %174 : vector<8x128xf32>
      %cst_83 = arith.constant 4.471500e-02 : f32
      %177 = vector.broadcast %cst_83 : f32 to vector<8x128xf32>
      %178 = arith.mulf %177, %174 : vector<8x128xf32>
      %179 = arith.mulf %178, %174 : vector<8x128xf32>
      %180 = arith.mulf %179, %174 : vector<8x128xf32>
      %181 = arith.addf %174, %180 : vector<8x128xf32>
      %cst_84 = arith.constant 0.797884583 : f32
      %182 = vector.broadcast %cst_84 : f32 to vector<8x128xf32>
      %183 = arith.mulf %182, %181 : vector<8x128xf32>
      %184 = math.tanh %183 : vector<8x128xf32>
      %cst_85 = arith.constant 1.000000e+00 : f32
      %185 = vector.broadcast %cst_85 : f32 to vector<8x128xf32>
      %186 = arith.addf %185, %184 : vector<8x128xf32>
      %187 = arith.mulf %176, %186 : vector<8x128xf32>
      %c0_86 = arith.constant 0 : index
      %c0_87 = arith.constant 0 : index
      %188 = vector.load %arg22[%c0_86, %c0_87] : memref<128x128xf32, #tpu.memory_space<vmem>>, vector<128x128xf32>
      %cst_88 = arith.constant dense<0.000000e+00> : vector<8x128xf32>
      %189 = tpu.matmul %187, %188, %cst_88 {dimension_numbers = #tpu.dot_dimension_numbers<[1], [0], [0], [1], [0, 0, 1, 1], [], []>} : vector<8x128xf32>, vector<128x128xf32>, vector<8x128xf32> -> vector<8x128xf32>
      %c0_89 = arith.constant 0 : index
      %c0_90 = arith.constant 0 : index
      %190 = vector.load %arg23[%c0_89, %c0_90] : memref<1x128xf32, #tpu.memory_space<vmem>>, vector<1x128xf32>
      %191 = vector.broadcast %190 : vector<1x128xf32> to vector<8x128xf32>
      %192 = arith.addf %189, %191 : vector<8x128xf32>
      %c0_91 = arith.constant 0 : index
      %c0_92 = arith.constant 0 : index
      %c0_93 = arith.constant 0 : index
      %193 = vector.load %arg24[%c0_91, %c0_92, %c0_93] : memref<1x8x128xf32, #tpu.memory_space<vmem>>, vector<1x8x128xf32>
      %194 = vector.shape_cast %193 : vector<1x8x128xf32> to vector<8x128xf32>
      %195 = vector.shape_cast %192 : vector<8x128xf32> to vector<1x8x128xf32>
      tpu.vector_store %arg24[%c0_91, %c0_92, %c0_93], %195 {strides = array<i32>} : memref<1x8x128xf32, #tpu.memory_space<vmem>>, vector<1x8x128xf32>,
    } else {
    }
    return
  }
  func.func @transform_0(%arg0: i32, %arg1: i32) -> (i32, i32, i32) {
    %c0_i32 = arith.constant 0 : i32
    %c0_i32_0 = arith.constant 0 : i32
    %c0_i32_1 = arith.constant 0 : i32
    return %arg0, %c0_i32, %c0_i32_0 : i32, i32, i32
  }
  func.func @transform_1(%arg0: i32, %arg1: i32) -> (i32, i32) {
    %c0_i32 = arith.constant 0 : i32
    %c0_i32_0 = arith.constant 0 : i32
    %c0_i32_1 = arith.constant 0 : i32
    return %c0_i32, %c0_i32_0 : i32, i32
  }
  func.func @transform_2(%arg0: i32, %arg1: i32) -> (i32, i32) {
    %c0_i32 = arith.constant 0 : i32
    %c0_i32_0 = arith.constant 0 : i32
    %c0_i32_1 = arith.constant 0 : i32
    return %c0_i32, %c0_i32_0 : i32, i32
  }
  func.func @transform_3(%arg0: i32, %arg1: i32) -> (i32, i32) {
    %c0_i32 = arith.constant 0 : i32
    %c0_i32_0 = arith.constant 0 : i32
    %c0_i32_1 = arith.constant 0 : i32
    return %c0_i32, %c0_i32_0 : i32, i32
  }
  func.func @transform_4(%arg0: i32, %arg1: i32) -> (i32, i32) {
    %c0_i32 = arith.constant 0 : i32
    %c0_i32_0 = arith.constant 0 : i32
    %c0_i32_1 = arith.constant 0 : i32
    return %c0_i32, %c0_i32_0 : i32, i32
  }
  func.func @transform_5(%arg0: i32, %arg1: i32) -> (i32, i32) {
    %c0_i32 = arith.constant 0 : i32
    %c0_i32_0 = arith.constant 0 : i32
    %c0_i32_1 = arith.constant 0 : i32
    return %c0_i32, %c0_i32_0 : i32, i32
  }
  func.func @transform_6(%arg0: i32, %arg1: i32) -> (i32, i32, i32) {
    %c0_i32 = arith.constant 0 : i32
    %c0_i32_0 = arith.constant 0 : i32
    %c0_i32_1 = arith.constant 0 : i32
    return %arg1, %c0_i32, %c0_i32_0 : i32, i32, i32
  }
  func.func @transform_7(%arg0: i32, %arg1: i32) -> (i32, i32, i32) {
    %c0_i32 = arith.constant 0 : i32
    %c0_i32_0 = arith.constant 0 : i32
    %c0_i32_1 = arith.constant 0 : i32
    return %arg1, %c0_i32, %c0_i32_0 : i32, i32, i32
  }
  func.func @transform_8(%arg0: i32, %arg1: i32) -> (i32, i32, i32) {
    %c0_i32 = arith.constant 0 : i32
    %c0_i32_0 = arith.constant 0 : i32
    %c0_i32_1 = arith.constant 0 : i32
    return %arg1, %c0_i32, %c0_i32_0 : i32, i32, i32
  }
  func.func @transform_9(%arg0: i32, %arg1: i32) -> (i32, i32, i32) {
    %c0_i32 = arith.constant 0 : i32
    %c0_i32_0 = arith.constant 0 : i32
    %c0_i32_1 = arith.constant 0 : i32
    return %arg1, %c0_i32, %c0_i32_0 : i32, i32, i32
  }
  func.func @transform_10(%arg0: i32, %arg1: i32) -> (i32, i32, i32) {
    %c0_i32 = arith.constant 0 : i32
    %c0_i32_0 = arith.constant 0 : i32
    %c0_i32_1 = arith.constant 0 : i32
    return %arg1, %c0_i32, %c0_i32_0 : i32, i32, i32
  }
  func.func @transform_11(%arg0: i32, %arg1: i32) -> (i32, i32, i32) {
    %c0_i32 = arith.constant 0 : i32
    %c0_i32_0 = arith.constant 0 : i32
    %c0_i32_1 = arith.constant 0 : i32
    return %arg1, %c0_i32, %c0_i32_0 : i32, i32, i32
  }
  func.func @transform_12(%arg0: i32, %arg1: i32) -> (i32, i32, i32) {
    %c0_i32 = arith.constant 0 : i32
    %c0_i32_0 = arith.constant 0 : i32
    %c0_i32_1 = arith.constant 0 : i32
    return %arg1, %c0_i32, %c0_i32_0 : i32, i32, i32
  }
  func.func @transform_13(%arg0: i32, %arg1: i32) -> (i32, i32, i32) {
    %c0_i32 = arith.constant 0 : i32
    %c0_i32_0 = arith.constant 0 : i32
    %c0_i32_1 = arith.constant 0 : i32
    return %arg1, %c0_i32, %c0_i32_0 : i32, i32, i32
  }
  func.func @transform_14(%arg0: i32, %arg1: i32) -> (i32, i32, i32) {
    %c0_i32 = arith.constant 0 : i32
    %c0_i32_0 = arith.constant 0 : i32
    %c0_i32_1 = arith.constant 0 : i32
    return %arg1, %c0_i32, %c0_i32_0 : i32, i32, i32
  }
  func.func @transform_15(%arg0: i32, %arg1: i32) -> (i32, i32, i32) {
    %c0_i32 = arith.constant 0 : i32
    %c0_i32_0 = arith.constant 0 : i32
    %c0_i32_1 = arith.constant 0 : i32
    return %arg1, %c0_i32, %c0_i32_0 : i32, i32, i32
  }
  func.func @transform_16(%arg0: i32, %arg1: i32) -> (i32, i32, i32) {
    %c0_i32 = arith.constant 0 : i32
    %c0_i32_0 = arith.constant 0 : i32
    %c0_i32_1 = arith.constant 0 : i32
    return %arg1, %c0_i32, %c0_i32_0 : i32, i32, i32
  }
  func.func @transform_17(%arg0: i32, %arg1: i32) -> (i32, i32, i32) {
    %c0_i32 = arith.constant 0 : i32
    %c0_i32_0 = arith.constant 0 : i32
    %c0_i32_1 = arith.constant 0 : i32
    return %arg1, %c0_i32, %c0_i32_0 : i32, i32, i32
  }
  func.func @transform_18(%arg0: i32, %arg1: i32) -> (i32, i32) {
    %c0_i32 = arith.constant 0 : i32
    %c0_i32_0 = arith.constant 0 : i32
    %c0_i32_1 = arith.constant 0 : i32
    return %c0_i32, %c0_i32_0 : i32, i32
  }
  func.func @transform_19(%arg0: i32, %arg1: i32) -> (i32, i32) {
    %c0_i32 = arith.constant 0 : i32
    %c0_i32_0 = arith.constant 0 : i32
    %c0_i32_1 = arith.constant 0 : i32
    return %c0_i32, %c0_i32_0 : i32, i32
  }
  func.func @transform_20(%arg0: i32, %arg1: i32) -> (i32, i32) {
    %c0_i32 = arith.constant 0 : i32
    %c0_i32_0 = arith.constant 0 : i32
    %c0_i32_1 = arith.constant 0 : i32
    return %c0_i32, %c0_i32_0 : i32, i32
  }
  func.func @transform_21(%arg0: i32, %arg1: i32) -> (i32, i32) {
    %c0_i32 = arith.constant 0 : i32
    %c0_i32_0 = arith.constant 0 : i32
    %c0_i32_1 = arith.constant 0 : i32
    return %c0_i32, %c0_i32_0 : i32, i32
  }
  func.func @transform_22(%arg0: i32, %arg1: i32) -> (i32, i32, i32) {
    %c0_i32 = arith.constant 0 : i32
    %c0_i32_0 = arith.constant 0 : i32
    %c0_i32_1 = arith.constant 0 : i32
    return %arg0, %c0_i32, %c0_i32_0 : i32, i32, i32
  }
}

</mosaic_0001>

<llo_original>
// kernel: tpu_custom_call.1
$region0: #{tpu_custom_call.1}
  #allocation0 [shape = 'u32[]', space=smem, size = 0x4, offset = 0x4, fixed_abs, tag = 'smem constant byte address 0x4 - core index']
  #allocation1 [shape = 'u32[144,128]{1,0:T(1,128)}', space=vmem, size = 0x12000, scoped, tag = 'internal scratch']
  #allocation2 [shape = 'f32[8,128]{1,0:T(8,128)}', space=vmem, size = 0x1000, scoped, tag = 'scratch operand']
  %s0 = inlined_call_operand.hbm [shape: f32[2,8,128], index: 0, kind: input, shape index: {}]
  %s1 = inlined_call_operand.hbm [shape: f32[8,128], index: 1, kind: input, shape index: {}]
  %s2 = inlined_call_operand.hbm [shape: f32[128,128], index: 2, kind: input, shape index: {}]
  %s3 = inlined_call_operand.hbm [shape: f32[1,128], index: 3, kind: input, shape index: {}]
  %s4 = inlined_call_operand.hbm [shape: f32[1,128], index: 4, kind: input, shape index: {}]
  %s5 = inlined_call_operand.hbm [shape: f32[1,128], index: 5, kind: input, shape index: {}]
  %s6 = inlined_call_operand.hbm [shape: f32[2,128,384], index: 6, kind: input, shape index: {}]
  %s7 = inlined_call_operand.vmem [shape: f32[2,1,384], index: 7, kind: input, shape index: {}]
  %s8 = inlined_call_operand.hbm [shape: f32[2,128,128], index: 8, kind: input, shape index: {}]
  %s9 = inlined_call_operand.vmem [shape: f32[2,1,128], index: 9, kind: input, shape index: {}]
  %s10 = inlined_call_operand.vmem [shape: f32[2,1,128], index: 10, kind: input, shape index: {}]
  %s11 = inlined_call_operand.vmem [shape: f32[2,1,128], index: 11, kind: input, shape index: {}]
  %s12 = inlined_call_operand.hbm [shape: f32[2,128,512], index: 12, kind: input, shape index: {}]
  %s13 = inlined_call_operand.vmem [shape: f32[2,1,512], index: 13, kind: input, shape index: {}]
  %s14 = inlined_call_operand.hbm [shape: f32[2,512,128], index: 14, kind: input, shape index: {}]
  %s15 = inlined_call_operand.vmem [shape: f32[2,1,128], index: 15, kind: input, shape index: {}]
  %s16 = inlined_call_operand.vmem [shape: f32[2,1,128], index: 16, kind: input, shape index: {}]
  %s17 = inlined_call_operand.vmem [shape: f32[2,1,128], index: 17, kind: input, shape index: {}]
  %s18 = inlined_call_operand.hbm [shape: f32[128,128], index: 18, kind: input, shape index: {}]
  %s19 = inlined_call_operand.vmem [shape: f32[1,128], index: 19, kind: input, shape index: {}]
  %s20 = inlined_call_operand.hbm [shape: f32[128,128], index: 20, kind: input, shape index: {}]
  %s21 = inlined_call_operand.vmem [shape: f32[1,128], index: 21, kind: input, shape index: {}]
  %s22 = inlined_call_operand.hbm [shape: f32[2,8,128], index: 22, kind: output, shape index: {}]
  %s23 = sld [smem:[#allocation0]]
  $region177: #{tpu_custom_call.1} parent=0
    _
  %s25 = ssub.s32 1, %s23
  %s26 = scalar_select 0, %s25, %s23
  $region1: #{tpu_custom_call.1} parent=0
    #allocation3 [shape = 'u8[8192]{0}', space=vmem, size = 0x2000, scoped, tag = 'input window, operand 0']
    #allocation4 [shape = 's32[2]{0}', space=sflag, size = 0x8, scoped, tag = 'scoped memory for tpu_custom_call.1']
    #allocation5 [shape = 's32[2]{0}', space=sflag, size = 0x8, scoped, tag = 'scoped memory for tpu_custom_call.1']
    #allocation6 [shape = 'u8[4096]{0}', space=vmem, size = 0x1000, scoped, tag = 'input window, operand 1, single buffered']
    #allocation7 [shape = 's32[1]{0}', space=sflag, size = 0x4, scoped, tag = 'scoped memory for tpu_custom_call.1']
    #allocation8 [shape = 'u8[65536]{0}', space=vmem, size = 0x10000, scoped, tag = 'input window, operand 2, single buffered']
    #allocation9 [shape = 'u8[512]{0}', space=vmem, size = 0x400, scoped, tag = 'input window, operand 3, single buffered']
    #allocation10 [shape = 's32[1]{0}', space=sflag, size = 0x4, scoped, tag = 'scoped memory for tpu_custom_call.1']
    #allocation11 [shape = 'u8[512]{0}', space=vmem, size = 0x400, scoped, tag = 'input window, operand 4, single buffered']
    #allocation12 [shape = 'u8[512]{0}', space=vmem, size = 0x400, scoped, tag = 'input window, operand 5, single buffered']
    #allocation13 [shape = 's32[1]{0}', space=sflag, size = 0x4, scoped, tag = 'scoped memory for tpu_custom_call.1']
    #allocation14 [shape = 'u8[393216]{0}', space=vmem, size = 0x60000, scoped, tag = 'input window, operand 6']
    #allocation15 [shape = 'u8[131072]{0}', space=vmem, size = 0x20000, scoped, tag = 'input window, operand 8']
    #allocation16 [shape = 'u8[524288]{0}', space=vmem, size = 0x80000, scoped, tag = 'input window, operand 12']
    #allocation17 [shape = 'u8[524288]{0}', space=vmem, size = 0x80000, scoped, tag = 'input window, operand 14']
    #allocation18 [shape = 'u8[65536]{0}', space=vmem, size = 0x10000, scoped, tag = 'input window, operand 18, single buffered']
    #allocation19 [shape = 'u8[65536]{0}', space=vmem, size = 0x10000, scoped, tag = 'input window, operand 20, single buffered']
    #allocation20 [shape = 'u8[8192]{0}', space=vmem, size = 0x2000, scoped, tag = 'output window, operand 0']
    %27 = vsyncpa [#allocation4], 0
    %s28 = scalar_lea.sflag [#allocation4], 1
    %29 = vsyncpa %s28, 0
    %30 = vsyncpa [#allocation7], 0
    %31 = vsyncpa [#allocation10], 0
    %32 = vsyncpa [#allocation13], 0
    %33 = vsyncpa [#allocation5], 0
    %s34 = scalar_lea.sflag [#allocation5], 1
    %35 = vsyncpa %s34, 0
    loop: start=0, step=1, limit=6
    $region2: #{tpu_custom_call.1} parent=1 // loop_pre_header
      _
    $region3: #{tpu_custom_call.1} parent=1 // loop_header
      %s37 = sphi 0, %s41
      %p38 = scmp.ge.s32.totalorder %s37, 6
      %s44 = sphi 0, %s56
      %s45 = sphi 0, %s52
      %s46 = sphi 0, %s44
      %s47 = sphi 0, %s45
      %s48 = sphi 0, %s46
      %s49 = sphi 0, %s47
      %s59 = sphi 0, %s61
      %s62 = sphi 0, %s59
      %s63 = sphi 0, %s62
      %s79 = sphi 0, %s63
      %s83 = sphi 0, %s83
      %s85 = sphi 0, %s83
      %s86 = sphi 0, %s85
      %s100 = sphi 0, %s86
      %s104 = sphi 0, %s104
      %s106 = sphi 0, %s104
      %s107 = sphi 0, %s106
      %s121 = sphi 0, %s107
      %s125 = sphi 0, %s125
      %s127 = sphi 0, %s125
      %s128 = sphi 0, %s127
      %s142 = sphi 0, %s128
      %s146 = sphi 0, %s146
      %s148 = sphi 0, %s146
      %s149 = sphi 0, %s148
      %s163 = sphi 0, %s149
      %s167 = sphi 0, %s167
      %s169 = sphi 0, %s167
      %s170 = sphi 0, %s169
      %s184 = sphi 0, %s170
      %s190 = sphi 0, %s192
      %s193 = sphi 0, %s190
      %s194 = sphi 0, %s193
      %s210 = sphi 0, %s194
      %s216 = sphi 0, %s218
      %s219 = sphi 0, %s216
      %s220 = sphi 0, %s219
      %s236 = sphi 0, %s220
      %s242 = sphi 0, %s244
      %s245 = sphi 0, %s242
      %s246 = sphi 0, %s245
      %s262 = sphi 0, %s246
      %s268 = sphi 0, %s270
      %s271 = sphi 0, %s268
      %s272 = sphi 0, %s271
      %s288 = sphi 0, %s272
      %s294 = sphi 0, %s296
      %s297 = sphi 0, %s294
      %s298 = sphi 0, %s297
      %s314 = sphi 0, %s298
      %s320 = sphi 0, %s322
      %s323 = sphi 0, %s320
      %s324 = sphi 0, %s323
      %s340 = sphi 0, %s324
      %s346 = sphi 0, %s348
      %s349 = sphi 0, %s346
      %s350 = sphi 0, %s349
      %s366 = sphi 0, %s350
      %s372 = sphi 0, %s374
      %s375 = sphi 0, %s372
      %s376 = sphi 0, %s375
      %s392 = sphi 0, %s376
      %s398 = sphi 0, %s400
      %s401 = sphi 0, %s398
      %s402 = sphi 0, %s401
      %s418 = sphi 0, %s402
      %s424 = sphi 0, %s426
      %s427 = sphi 0, %s424
      %s428 = sphi 0, %s427
      %s444 = sphi 0, %s428
      %s450 = sphi 0, %s452
      %s453 = sphi 0, %s450
      %s454 = sphi 0, %s453
      %s470 = sphi 0, %s454
      %s476 = sphi 0, %s478
      %s479 = sphi 0, %s476
      %s480 = sphi 0, %s479
      %s496 = sphi 0, %s480
      %s500 = sphi 0, %s500
      %s502 = sphi 0, %s500
      %s503 = sphi 0, %s502
      %s517 = sphi 0, %s503
      %s521 = sphi 0, %s521
      %s523 = sphi 0, %s521
      %s524 = sphi 0, %s523
      %s538 = sphi 0, %s524
      %s542 = sphi 0, %s542
      %s544 = sphi 0, %s542
      %s545 = sphi 0, %s544
      %s559 = sphi 0, %s545
      %s563 = sphi 0, %s563
      %s565 = sphi 0, %s563
      %s566 = sphi 0, %s565
      %s580 = sphi 0, %s566
      %s586 = sphi 0, %s588
      %s589 = sphi 0, %s586
      %s590 = sphi 0, %s589
      %s606 = sphi 0, %s590
    $region4: #{tpu_custom_call.1} parent=1 // loop_header_branch
      %40 = sbr.rel (%p38) target = $region8
    $region5: #{tpu_custom_call.1} parent=1 // loop_body
      %s42 = ssub.s32 %s37, 1
      %s43 = ssub.s32 %s37, 2
      %s50 = sadd.s32 1, %s45
      %p51 = scmp.ge.s32.totalorder %s50, 2
      %s52 = scalar_select %p51, 0, %s50
      %s53 = sadd.s32 1, %s44
      %s54 = scalar_select %p51, %s53, %s44
      %p55 = scmp.ge.s32.totalorder %s54, 2
      %s56 = scalar_select %p55, 0, %s54
      %s57 = ssub.s32 %s44, %s56
      %p58 = scmp.eq.s32.totalorder %s57, 0
      %s60 = sadd.s32 %s59, 1
      %s61 = scalar_select %p58, %s59, %s60
      %p64 = pneg %p58
      %p65 = scmp.eq.s32.totalorder %s37, 3
      %p66 = por %p64, %p65
      %p67 = scmp.ne.s32.totalorder %s59, %s62
      %p68 = scmp.eq.s32.totalorder %s37, 0
      %p69 = por %p67, %p68
      %p70 = scmp.ne.s32.totalorder %s59, %s62
      %p71 = scmp.eq.s32.totalorder %s42, 3
      %p72 = por %p70, %p71
      %p73 = scmp.ne.s32.totalorder %s62, %s63
      %p74 = scmp.eq.s32.totalorder %s42, 0
      %p75 = por %p73, %p74
      %p76 = scmp.ne.s32.totalorder %s62, %s63
      %p77 = scmp.eq.s32.totalorder %s43, 3
      %p78 = por %p76, %p77
      %p80 = scmp.ne.s32.totalorder %s63, %s79
      %p81 = scmp.eq.s32.totalorder %s43, 0
      %p82 = por %p80, %p81
      %s84 = sadd.s32 %s83, 1
      %p87 = scmp.eq.s32.totalorder %s37, 3
      %p88 = scmp.ne.s32.totalorder %s83, %s85
      %p89 = scmp.eq.s32.totalorder %s37, 0
      %p90 = por %p88, %p89
      %p91 = scmp.ne.s32.totalorder %s83, %s85
      %p92 = scmp.eq.s32.totalorder %s42, 3
      %p93 = por %p91, %p92
      %p94 = scmp.ne.s32.totalorder %s85, %s86
      %p95 = scmp.eq.s32.totalorder %s42, 0
      %p96 = por %p94, %p95
      %p97 = scmp.ne.s32.totalorder %s85, %s86
      %p98 = scmp.eq.s32.totalorder %s43, 3
      %p99 = por %p97, %p98
      %p101 = scmp.ne.s32.totalorder %s86, %s100
      %p102 = scmp.eq.s32.totalorder %s43, 0
      %p103 = por %p101, %p102
      %s105 = sadd.s32 %s104, 1
      %p108 = scmp.eq.s32.totalorder %s37, 3
      %p109 = scmp.ne.s32.totalorder %s104, %s106
      %p110 = scmp.eq.s32.totalorder %s37, 0
      %p111 = por %p109, %p110
      %p112 = scmp.ne.s32.totalorder %s104, %s106
      %p113 = scmp.eq.s32.totalorder %s42, 3
      %p114 = por %p112, %p113
      %p115 = scmp.ne.s32.totalorder %s106, %s107
      %p116 = scmp.eq.s32.totalorder %s42, 0
      %p117 = por %p115, %p116
      %p118 = scmp.ne.s32.totalorder %s106, %s107
      %p119 = scmp.eq.s32.totalorder %s43, 3
      %p120 = por %p118, %p119
      %p122 = scmp.ne.s32.totalorder %s107, %s121
      %p123 = scmp.eq.s32.totalorder %s43, 0
      %p124 = por %p122, %p123
      %s126 = sadd.s32 %s125, 1
      %p129 = scmp.eq.s32.totalorder %s37, 3
      %p130 = scmp.ne.s32.totalorder %s125, %s127
      %p131 = scmp.eq.s32.totalorder %s37, 0
      %p132 = por %p130, %p131
      %p133 = scmp.ne.s32.totalorder %s125, %s127
      %p134 = scmp.eq.s32.totalorder %s42, 3
      %p135 = por %p133, %p134
      %p136 = scmp.ne.s32.totalorder %s127, %s128
      %p137 = scmp.eq.s32.totalorder %s42, 0
      %p138 = por %p136, %p137
      %p139 = scmp.ne.s32.totalorder %s127, %s128
      %p140 = scmp.eq.s32.totalorder %s43, 3
      %p141 = por %p139, %p140
      %p143 = scmp.ne.s32.totalorder %s128, %s142
      %p144 = scmp.eq.s32.totalorder %s43, 0
      %p145 = por %p143, %p144
      %s147 = sadd.s32 %s146, 1
      %p150 = scmp.eq.s32.totalorder %s37, 3
      %p151 = scmp.ne.s32.totalorder %s146, %s148
      %p152 = scmp.eq.s32.totalorder %s37, 0
      %p153 = por %p151, %p152
      %p154 = scmp.ne.s32.totalorder %s146, %s148
      %p155 = scmp.eq.s32.totalorder %s42, 3
      %p156 = por %p154, %p155
      %p157 = scmp.ne.s32.totalorder %s148, %s149
      %p158 = scmp.eq.s32.totalorder %s42, 0
      %p159 = por %p157, %p158
      %p160 = scmp.ne.s32.totalorder %s148, %s149
      %p161 = scmp.eq.s32.totalorder %s43, 3
      %p162 = por %p160, %p161
      %p164 = scmp.ne.s32.totalorder %s149, %s163
      %p165 = scmp.eq.s32.totalorder %s43, 0
      %p166 = por %p164, %p165
      %s168 = sadd.s32 %s167, 1
      %p171 = scmp.eq.s32.totalorder %s37, 3
      %p172 = scmp.ne.s32.totalorder %s167, %s169
      %p173 = scmp.eq.s32.totalorder %s37, 0
      %p174 = por %p172, %p173
      %p175 = scmp.ne.s32.totalorder %s167, %s169
      %p176 = scmp.eq.s32.totalorder %s42, 3
      %p177 = por %p175, %p176
      %p178 = scmp.ne.s32.totalorder %s169, %s170
      %p179 = scmp.eq.s32.totalorder %s42, 0
      %p180 = por %p178, %p179
      %p181 = scmp.ne.s32.totalorder %s169, %s170
      %p182 = scmp.eq.s32.totalorder %s43, 3
      %p183 = por %p181, %p182
      %p185 = scmp.ne.s32.totalorder %s170, %s184
      %p186 = scmp.eq.s32.totalorder %s43, 0
      %p187 = por %p185, %p186
      %s188 = ssub.s32 %s45, %s52
      %p189 = scmp.eq.s32.totalorder %s188, 0
      %s191 = sadd.s32 %s190, 1
      %s192 = scalar_select %p189, %s190, %s191
      %p195 = pneg %p189
      %p196 = scmp.eq.s32.totalorder %s37, 3
      %p197 = por %p195, %p196
      %p198 = scmp.ne.s32.totalorder %s190, %s193
      %p199 = scmp.eq.s32.totalorder %s37, 0
      %p200 = por %p198, %p199
      %p201 = scmp.ne.s32.totalorder %s190, %s193
      %p202 = scmp.eq.s32.totalorder %s42, 3
      %p203 = por %p201, %p202
      %p204 = scmp.ne.s32.totalorder %s193, %s194
      %p205 = scmp.eq.s32.totalorder %s42, 0
      %p206 = por %p204, %p205
      %p207 = scmp.ne.s32.totalorder %s193, %s194
      %p208 = scmp.eq.s32.totalorder %s43, 3
      %p209 = por %p207, %p208
      %p211 = scmp.ne.s32.totalorder %s194, %s210
      %p212 = scmp.eq.s32.totalorder %s43, 0
      %p213 = por %p211, %p212
      %s214 = ssub.s32 %s45, %s52
      %p215 = scmp.eq.s32.totalorder %s214, 0
      %s217 = sadd.s32 %s216, 1
      %s218 = scalar_select %p215, %s216, %s217
      %p221 = pneg %p215
      %p222 = scmp.eq.s32.totalorder %s37, 3
      %p223 = por %p221, %p222
      %p224 = scmp.ne.s32.totalorder %s216, %s219
      %p225 = scmp.eq.s32.totalorder %s37, 0
      %p226 = por %p224, %p225
      %p227 = scmp.ne.s32.totalorder %s216, %s219
      %p228 = scmp.eq.s32.totalorder %s42, 3
      %p229 = por %p227, %p228
      %p230 = scmp.ne.s32.totalorder %s219, %s220
      %p231 = scmp.eq.s32.totalorder %s42, 0
      %p232 = por %p230, %p231
      %p233 = scmp.ne.s32.totalorder %s219, %s220
      %p234 = scmp.eq.s32.totalorder %s43, 3
      %p235 = por %p233, %p234
      %p237 = scmp.ne.s32.totalorder %s220, %s236
      %p238 = scmp.eq.s32.totalorder %s43, 0
      %p239 = por %p237, %p238
      %s240 = ssub.s32 %s45, %s52
      %p241 = scmp.eq.s32.totalorder %s240, 0
      %s243 = sadd.s32 %s242, 1
      %s244 = scalar_select %p241, %s242, %s243
      %p247 = pneg %p241
      %p248 = scmp.eq.s32.totalorder %s37, 3
      %p249 = por %p247, %p248
      %p250 = scmp.ne.s32.totalorder %s242, %s245
      %p251 = scmp.eq.s32.totalorder %s37, 0
      %p252 = por %p250, %p251
      %p253 = scmp.ne.s32.totalorder %s242, %s245
      %p254 = scmp.eq.s32.totalorder %s42, 3
      %p255 = por %p253, %p254
      %p256 = scmp.ne.s32.totalorder %s245, %s246
      %p257 = scmp.eq.s32.totalorder %s42, 0
      %p258 = por %p256, %p257
      %p259 = scmp.ne.s32.totalorder %s245, %s246
      %p260 = scmp.eq.s32.totalorder %s43, 3
      %p261 = por %p259, %p260
      %p263 = scmp.ne.s32.totalorder %s246, %s262
      %p264 = scmp.eq.s32.totalorder %s43, 0
      %p265 = por %p263, %p264
      %s266 = ssub.s32 %s45, %s52
      %p267 = scmp.eq.s32.totalorder %s266, 0
      %s269 = sadd.s32 %s268, 1
      %s270 = scalar_select %p267, %s268, %s269
      %p273 = pneg %p267
      %p274 = scmp.eq.s32.totalorder %s37, 3
      %p275 = por %p273, %p274
      %p276 = scmp.ne.s32.totalorder %s268, %s271
      %p277 = scmp.eq.s32.totalorder %s37, 0
      %p278 = por %p276, %p277
      %p279 = scmp.ne.s32.totalorder %s268, %s271
      %p280 = scmp.eq.s32.totalorder %s42, 3
      %p281 = por %p279, %p280
      %p282 = scmp.ne.s32.totalorder %s271, %s272
      %p283 = scmp.eq.s32.totalorder %s42, 0
      %p284 = por %p282, %p283
      %p285 = scmp.ne.s32.totalorder %s271, %s272
      %p286 = scmp.eq.s32.totalorder %s43, 3
      %p287 = por %p285, %p286
      %p289 = scmp.ne.s32.totalorder %s272, %s288
      %p290 = scmp.eq.s32.totalorder %s43, 0
      %p291 = por %p289, %p290
      %s292 = ssub.s32 %s45, %s52
      %p293 = scmp.eq.s32.totalorder %s292, 0
      %s295 = sadd.s32 %s294, 1
      %s296 = scalar_select %p293, %s294, %s295
      %p299 = pneg %p293
      %p300 = scmp.eq.s32.totalorder %s37, 3
      %p301 = por %p299, %p300
      %p302 = scmp.ne.s32.totalorder %s294, %s297
      %p303 = scmp.eq.s32.totalorder %s37, 0
      %p304 = por %p302, %p303
      %p305 = scmp.ne.s32.totalorder %s294, %s297
      %p306 = scmp.eq.s32.totalorder %s42, 3
      %p307 = por %p305, %p306
      %p308 = scmp.ne.s32.totalorder %s297, %s298
      %p309 = scmp.eq.s32.totalorder %s42, 0
      %p310 = por %p308, %p309
      %p311 = scmp.ne.s32.totalorder %s297, %s298
      %p312 = scmp.eq.s32.totalorder %s43, 3
      %p313 = por %p311, %p312
      %p315 = scmp.ne.s32.totalorder %s298, %s314
      %p316 = scmp.eq.s32.totalorder %s43, 0
      %p317 = por %p315, %p316
      %s318 = ssub.s32 %s45, %s52
      %p319 = scmp.eq.s32.totalorder %s318, 0
      %s321 = sadd.s32 %s320, 1
      %s322 = scalar_select %p319, %s320, %s321
      %p325 = pneg %p319
      %p326 = scmp.eq.s32.totalorder %s37, 3
      %p327 = por %p325, %p326
      %p328 = scmp.ne.s32.totalorder %s320, %s323
      %p329 = scmp.eq.s32.totalorder %s37, 0
      %p330 = por %p328, %p329
      %p331 = scmp.ne.s32.totalorder %s320, %s323
      %p332 = scmp.eq.s32.totalorder %s42, 3
      %p333 = por %p331, %p332
      %p334 = scmp.ne.s32.totalorder %s323, %s324
      %p335 = scmp.eq.s32.totalorder %s42, 0
      %p336 = por %p334, %p335
      %p337 = scmp.ne.s32.totalorder %s323, %s324
      %p338 = scmp.eq.s32.totalorder %s43, 3
      %p339 = por %p337, %p338
      %p341 = scmp.ne.s32.totalorder %s324, %s340
      %p342 = scmp.eq.s32.totalorder %s43, 0
      %p343 = por %p341, %p342
      %s344 = ssub.s32 %s45, %s52
      %p345 = scmp.eq.s32.totalorder %s344, 0
      %s347 = sadd.s32 %s346, 1
      %s348 = scalar_select %p345, %s346, %s347
      %p351 = pneg %p345
      %p352 = scmp.eq.s32.totalorder %s37, 3
      %p353 = por %p351, %p352
      %p354 = scmp.ne.s32.totalorder %s346, %s349
      %p355 = scmp.eq.s32.totalorder %s37, 0
      %p356 = por %p354, %p355
      %p357 = scmp.ne.s32.totalorder %s346, %s349
      %p358 = scmp.eq.s32.totalorder %s42, 3
      %p359 = por %p357, %p358
      %p360 = scmp.ne.s32.totalorder %s349, %s350
      %p361 = scmp.eq.s32.totalorder %s42, 0
      %p362 = por %p360, %p361
      %p363 = scmp.ne.s32.totalorder %s349, %s350
      %p364 = scmp.eq.s32.totalorder %s43, 3
      %p365 = por %p363, %p364
      %p367 = scmp.ne.s32.totalorder %s350, %s366
      %p368 = scmp.eq.s32.totalorder %s43, 0
      %p369 = por %p367, %p368
      %s370 = ssub.s32 %s45, %s52
      %p371 = scmp.eq.s32.totalorder %s370, 0
      %s373 = sadd.s32 %s372, 1
      %s374 = scalar_select %p371, %s372, %s373
      %p377 = pneg %p371
      %p378 = scmp.eq.s32.totalorder %s37, 3
      %p379 = por %p377, %p378
      %p380 = scmp.ne.s32.totalorder %s372, %s375
      %p381 = scmp.eq.s32.totalorder %s37, 0
      %p382 = por %p380, %p381
      %p383 = scmp.ne.s32.totalorder %s372, %s375
      %p384 = scmp.eq.s32.totalorder %s42, 3
      %p385 = por %p383, %p384
      %p386 = scmp.ne.s32.totalorder %s375, %s376
      %p387 = scmp.eq.s32.totalorder %s42, 0
      %p388 = por %p386, %p387
      %p389 = scmp.ne.s32.totalorder %s375, %s376
      %p390 = scmp.eq.s32.totalorder %s43, 3
      %p391 = por %p389, %p390
      %p393 = scmp.ne.s32.totalorder %s376, %s392
      %p394 = scmp.eq.s32.totalorder %s43, 0
      %p395 = por %p393, %p394
      %s396 = ssub.s32 %s45, %s52
      %p397 = scmp.eq.s32.totalorder %s396, 0
      %s399 = sadd.s32 %s398, 1
      %s400 = scalar_select %p397, %s398, %s399
      %p403 = pneg %p397
      %p404 = scmp.eq.s32.totalorder %s37, 3
      %p405 = por %p403, %p404
      %p406 = scmp.ne.s32.totalorder %s398, %s401
      %p407 = scmp.eq.s32.totalorder %s37, 0
      %p408 = por %p406, %p407
      %p409 = scmp.ne.s32.totalorder %s398, %s401
      %p410 = scmp.eq.s32.totalorder %s42, 3
      %p411 = por %p409, %p410
      %p412 = scmp.ne.s32.totalorder %s401, %s402
      %p413 = scmp.eq.s32.totalorder %s42, 0
      %p414 = por %p412, %p413
      %p415 = scmp.ne.s32.totalorder %s401, %s402
      %p416 = scmp.eq.s32.totalorder %s43, 3
      %p417 = por %p415, %p416
      %p419 = scmp.ne.s32.totalorder %s402, %s418
      %p420 = scmp.eq.s32.totalorder %s43, 0
      %p421 = por %p419, %p420
      %s422 = ssub.s32 %s45, %s52
      %p423 = scmp.eq.s32.totalorder %s422, 0
      %s425 = sadd.s32 %s424, 1
      %s426 = scalar_select %p423, %s424, %s425
      %p429 = pneg %p423
      %p430 = scmp.eq.s32.totalorder %s37, 3
      %p431 = por %p429, %p430
      %p432 = scmp.ne.s32.totalorder %s424, %s427
      %p433 = scmp.eq.s32.totalorder %s37, 0
      %p434 = por %p432, %p433
      %p435 = scmp.ne.s32.totalorder %s424, %s427
      %p436 = scmp.eq.s32.totalorder %s42, 3
      %p437 = por %p435, %p436
      %p438 = scmp.ne.s32.totalorder %s427, %s428
      %p439 = scmp.eq.s32.totalorder %s42, 0
      %p440 = por %p438, %p439
      %p441 = scmp.ne.s32.totalorder %s427, %s428
      %p442 = scmp.eq.s32.totalorder %s43, 3
      %p443 = por %p441, %p442
      %p445 = scmp.ne.s32.totalorder %s428, %s444
      %p446 = scmp.eq.s32.totalorder %s43, 0
      %p447 = por %p445, %p446
      %s448 = ssub.s32 %s45, %s52
      %p449 = scmp.eq.s32.totalorder %s448, 0
      %s451 = sadd.s32 %s450, 1
      %s452 = scalar_select %p449, %s450, %s451
      %p455 = pneg %p449
      %p456 = scmp.eq.s32.totalorder %s37, 3
      %p457 = por %p455, %p456
      %p458 = scmp.ne.s32.totalorder %s450, %s453
      %p459 = scmp.eq.s32.totalorder %s37, 0
      %p460 = por %p458, %p459
      %p461 = scmp.ne.s32.totalorder %s450, %s453
      %p462 = scmp.eq.s32.totalorder %s42, 3
      %p463 = por %p461, %p462
      %p464 = scmp.ne.s32.totalorder %s453, %s454
      %p465 = scmp.eq.s32.totalorder %s42, 0
      %p466 = por %p464, %p465
      %p467 = scmp.ne.s32.totalorder %s453, %s454
      %p468 = scmp.eq.s32.totalorder %s43, 3
      %p469 = por %p467, %p468
      %p471 = scmp.ne.s32.totalorder %s454, %s470
      %p472 = scmp.eq.s32.totalorder %s43, 0
      %p473 = por %p471, %p472
      %s474 = ssub.s32 %s45, %s52
      %p475 = scmp.eq.s32.totalorder %s474, 0
      %s477 = sadd.s32 %s476, 1
      %s478 = scalar_select %p475, %s476, %s477
      %p481 = pneg %p475
      %p482 = scmp.eq.s32.totalorder %s37, 3
      %p483 = por %p481, %p482
      %p484 = scmp.ne.s32.totalorder %s476, %s479
      %p485 = scmp.eq.s32.totalorder %s37, 0
      %p486 = por %p484, %p485
      %p487 = scmp.ne.s32.totalorder %s476, %s479
      %p488 = scmp.eq.s32.totalorder %s42, 3
      %p489 = por %p487, %p488
      %p490 = scmp.ne.s32.totalorder %s479, %s480
      %p491 = scmp.eq.s32.totalorder %s42, 0
      %p492 = por %p490, %p491
      %p493 = scmp.ne.s32.totalorder %s479, %s480
      %p494 = scmp.eq.s32.totalorder %s43, 3
      %p495 = por %p493, %p494
      %p497 = scmp.ne.s32.totalorder %s480, %s496
      %p498 = scmp.eq.s32.totalorder %s43, 0
      %p499 = por %p497, %p498
      %s501 = sadd.s32 %s500, 1
      %p504 = scmp.eq.s32.totalorder %s37, 3
      %p505 = scmp.ne.s32.totalorder %s500, %s502
      %p506 = scmp.eq.s32.totalorder %s37, 0
      %p507 = por %p505, %p506
      %p508 = scmp.ne.s32.totalorder %s500, %s502
      %p509 = scmp.eq.s32.totalorder %s42, 3
      %p510 = por %p508, %p509
      %p511 = scmp.ne.s32.totalorder %s502, %s503
      %p512 = scmp.eq.s32.totalorder %s42, 0
      %p513 = por %p511, %p512
      %p514 = scmp.ne.s32.totalorder %s502, %s503
      %p515 = scmp.eq.s32.totalorder %s43, 3
      %p516 = por %p514, %p515
      %p518 = scmp.ne.s32.totalorder %s503, %s517
      %p519 = scmp.eq.s32.totalorder %s43, 0
      %p520 = por %p518, %p519
      %s522 = sadd.s32 %s521, 1
      %p525 = scmp.eq.s32.totalorder %s37, 3
      %p526 = scmp.ne.s32.totalorder %s521, %s523
      %p527 = scmp.eq.s32.totalorder %s37, 0
      %p528 = por %p526, %p527
      %p529 = scmp.ne.s32.totalorder %s521, %s523
      %p530 = scmp.eq.s32.totalorder %s42, 3
      %p531 = por %p529, %p530
      %p532 = scmp.ne.s32.totalorder %s523, %s524
      %p533 = scmp.eq.s32.totalorder %s42, 0
      %p534 = por %p532, %p533
      %p535 = scmp.ne.s32.totalorder %s523, %s524
      %p536 = scmp.eq.s32.totalorder %s43, 3
      %p537 = por %p535, %p536
      %p539 = scmp.ne.s32.totalorder %s524, %s538
      %p540 = scmp.eq.s32.totalorder %s43, 0
      %p541 = por %p539, %p540
      %s543 = sadd.s32 %s542, 1
      %p546 = scmp.eq.s32.totalorder %s37, 3
      %p547 = scmp.ne.s32.totalorder %s542, %s544
      %p548 = scmp.eq.s32.totalorder %s37, 0
      %p549 = por %p547, %p548
      %p550 = scmp.ne.s32.totalorder %s542, %s544
      %p551 = scmp.eq.s32.totalorder %s42, 3
      %p552 = por %p550, %p551
      %p553 = scmp.ne.s32.totalorder %s544, %s545
      %p554 = scmp.eq.s32.totalorder %s42, 0
      %p555 = por %p553, %p554
      %p556 = scmp.ne.s32.totalorder %s544, %s545
      %p557 = scmp.eq.s32.totalorder %s43, 3
      %p558 = por %p556, %p557
      %p560 = scmp.ne.s32.totalorder %s545, %s559
      %p561 = scmp.eq.s32.totalorder %s43, 0
      %p562 = por %p560, %p561
      %s564 = sadd.s32 %s563, 1
      %p567 = scmp.eq.s32.totalorder %s37, 3
      %p568 = scmp.ne.s32.totalorder %s563, %s565
      %p569 = scmp.eq.s32.totalorder %s37, 0
      %p570 = por %p568, %p569
      %p571 = scmp.ne.s32.totalorder %s563, %s565
      %p572 = scmp.eq.s32.totalorder %s42, 3
      %p573 = por %p571, %p572
      %p574 = scmp.ne.s32.totalorder %s565, %s566
      %p575 = scmp.eq.s32.totalorder %s42, 0
      %p576 = por %p574, %p575
      %p577 = scmp.ne.s32.totalorder %s565, %s566
      %p578 = scmp.eq.s32.totalorder %s43, 3
      %p579 = por %p577, %p578
      %p581 = scmp.ne.s32.totalorder %s566, %s580
      %p582 = scmp.eq.s32.totalorder %s43, 0
      %p583 = por %p581, %p582
      %s584 = ssub.s32 %s44, %s56
      %p585 = scmp.eq.s32.totalorder %s584, 0
      %s587 = sadd.s32 %s586, 1
      %s588 = scalar_select %p585, %s586, %s587
      %p591 = pneg %p585
      %p592 = scmp.eq.s32.totalorder %s37, 3
      %p593 = por %p591, %p592
      %p594 = scmp.ne.s32.totalorder %s586, %s589
      %p595 = scmp.eq.s32.totalorder %s37, 0
      %p596 = por %p594, %p595
      %p597 = scmp.ne.s32.totalorder %s586, %s589
      %p598 = scmp.eq.s32.totalorder %s42, 3
      %p599 = por %p597, %p598
      %p600 = scmp.ne.s32.totalorder %s589, %s590
      %p601 = scmp.eq.s32.totalorder %s42, 0
      %p602 = por %p600, %p601
      %p603 = scmp.ne.s32.totalorder %s589, %s590
      %p604 = scmp.eq.s32.totalorder %s43, 3
      %p605 = por %p603, %p604
      %p607 = scmp.ne.s32.totalorder %s590, %s606
      %p608 = scmp.eq.s32.totalorder %s43, 0
      %p609 = por %p607, %p608
      %p610 = scmp.le.s32.totalorder 1, %s37
      %p611 = scmp.lt.s32.totalorder %s37, 5
      %p612 = pnand %p610, %p611
      %p613 = pneg %p612
      // Predicated region
      $region9: #{tpu_custom_call.1} parent=5 // pred_check
        _
      $region10: #{tpu_custom_call.1} parent=5 // pred_check_branch
        %615 = sbr.rel (%p612) target = $region12
      $region11: #{tpu_custom_call.1} parent=5 // pred_region
        %s616 = ssub.s32 %s37, 1
        // Predicated region
        $region13: #{tpu_custom_call.1} parent=11 // pred_check
          %p617 = pneg %p96
        $region14: #{tpu_custom_call.1} parent=11 // pred_check_branch
          %619 = sbr.rel (%p617) target = $region16
        $region15: #{tpu_custom_call.1} parent=11 // pred_region
          %s621 = ssub.s32 128, 128
          %622 = vsyncadd [#allocation7], %s621
          %s624 = sshll.u32 [#allocation6], 4
          %s625 = int_to_ptr.vmem [resolvable:$true] %s624
          %627 = dma.hbm_to_vmem [thread:$0]  %s1, 128, %s625, [#allocation7]
        $region16: #{tpu_custom_call.1} parent=11 // pred_fallthru
          _
        // Predicated region
        $region17: #{tpu_custom_call.1} parent=11 // pred_check
          %p628 = pneg %p117
        $region18: #{tpu_custom_call.1} parent=11 // pred_check_branch
          %630 = sbr.rel (%p628) target = $region20
        $region19: #{tpu_custom_call.1} parent=11 // pred_region
          %s632 = ssub.s32 2048, 2048
          %633 = vsyncadd [#allocation7], %s632
          %s634 = sshll.u32 [#allocation8], 4
          %s635 = int_to_ptr.vmem [resolvable:$true] %s634
          %640 = dma.hbm_to_vmem [thread:$0]  %s2, 2048, %s635, [#allocation7], 128, 128, 8
        $region20: #{tpu_custom_call.1} parent=11 // pred_fallthru
          _
        // Predicated region
        $region21: #{tpu_custom_call.1} parent=11 // pred_check
          %p641 = pneg %p138
        $region22: #{tpu_custom_call.1} parent=11 // pred_check_branch
          %643 = sbr.rel (%p641) target = $region24
        $region23: #{tpu_custom_call.1} parent=11 // pred_region
          %s645 = ssub.s32 16, 16
          %646 = vsyncadd [#allocation10], %s645
          %s648 = sshll.u32 [#allocation9], 4
          %s649 = int_to_ptr.vmem [resolvable:$true] %s648
          %651 = dma.hbm_to_vmem [thread:$0]  %s3, 16, %s649, [#allocation10]
        $region24: #{tpu_custom_call.1} parent=11 // pred_fallthru
          _
        // Predicated region
        $region25: #{tpu_custom_call.1} parent=11 // pred_check
          %p652 = pneg %p159
        $region26: #{tpu_custom_call.1} parent=11 // pred_check_branch
          %654 = sbr.rel (%p652) target = $region28
        $region27: #{tpu_custom_call.1} parent=11 // pred_region
          %s656 = ssub.s32 16, 16
          %657 = vsyncadd [#allocation10], %s656
          %s659 = sshll.u32 [#allocation11], 4
          %s660 = int_to_ptr.vmem [resolvable:$true] %s659
          %662 = dma.hbm_to_vmem [thread:$0]  %s4, 16, %s660, [#allocation10]
        $region28: #{tpu_custom_call.1} parent=11 // pred_fallthru
          _
        // Predicated region
        $region29: #{tpu_custom_call.1} parent=11 // pred_check
          %p663 = pneg %p180
        $region30: #{tpu_custom_call.1} parent=11 // pred_check_branch
          %665 = sbr.rel (%p663) target = $region32
        $region31: #{tpu_custom_call.1} parent=11 // pred_region
          %s667 = ssub.s32 16, 16
          %668 = vsyncadd [#allocation13], %s667
          %s670 = sshll.u32 [#allocation12], 4
          %s671 = int_to_ptr.vmem [resolvable:$true] %s670
          %673 = dma.hbm_to_vmem [thread:$0]  %s5, 16, %s671, [#allocation13]
        $region32: #{tpu_custom_call.1} parent=11 // pred_fallthru
          _
        // Predicated region
        $region33: #{tpu_custom_call.1} parent=11 // pred_check
          %p674 = pneg %p513
        $region34: #{tpu_custom_call.1} parent=11 // pred_check_branch
          %676 = sbr.rel (%p674) target = $region36
        $region35: #{tpu_custom_call.1} parent=11 // pred_region
          %s678 = ssub.s32 2048, 2048
          %679 = vsyncadd [#allocation7], %s678
          %s680 = sshll.u32 [#allocation18], 4
          %s681 = int_to_ptr.vmem [resolvable:$true] %s680
          %686 = dma.hbm_to_vmem [thread:$0]  %s18, 2048, %s681, [#allocation7], 128, 128, 8
        $region36: #{tpu_custom_call.1} parent=11 // pred_fallthru
          _
        // Predicated region
        $region37: #{tpu_custom_call.1} parent=11 // pred_check
          %p687 = pneg %p534
        $region38: #{tpu_custom_call.1} parent=11 // pred_check_branch
          %689 = sbr.rel (%p687) target = $region40
        $region39: #{tpu_custom_call.1} parent=11 // pred_region
          _
        $region40: #{tpu_custom_call.1} parent=11 // pred_fallthru
          _
        // Predicated region
        $region41: #{tpu_custom_call.1} parent=11 // pred_check
          %p690 = pneg %p555
        $region42: #{tpu_custom_call.1} parent=11 // pred_check_branch
          %692 = sbr.rel (%p690) target = $region44
        $region43: #{tpu_custom_call.1} parent=11 // pred_region
          %s694 = ssub.s32 2048, 2048
          %695 = vsyncadd [#allocation10], %s694
          %s696 = sshll.u32 [#allocation19], 4
          %s697 = int_to_ptr.vmem [resolvable:$true] %s696
          %702 = dma.hbm_to_vmem [thread:$0]  %s20, 2048, %s697, [#allocation10], 128, 128, 8
        $region44: #{tpu_custom_call.1} parent=11 // pred_fallthru
          _
        // Predicated region
        $region45: #{tpu_custom_call.1} parent=11 // pred_check
          %p703 = pneg %p576
        $region46: #{tpu_custom_call.1} parent=11 // pred_check_branch
          %705 = sbr.rel (%p703) target = $region48
        $region47: #{tpu_custom_call.1} parent=11 // pred_region
          _
        $region48: #{tpu_custom_call.1} parent=11 // pred_fallthru
          _
      $region12: #{tpu_custom_call.1} parent=5 // pred_fallthru
        _
      %p706 = scmp.lt.s32.totalorder %s37, 4
      // Predicated region
      $region49: #{tpu_custom_call.1} parent=5 // pred_check
        %p707 = pneg %p706
      $region50: #{tpu_custom_call.1} parent=5 // pred_check_branch
        %709 = sbr.rel (%p707) target = $region52
      $region51: #{tpu_custom_call.1} parent=5 // pred_region
        // Predicated region
        $region53: #{tpu_custom_call.1} parent=51 // pred_check
          %p710 = pneg %p69
        $region54: #{tpu_custom_call.1} parent=51 // pred_check_branch
          %712 = sbr.rel (%p710) target = $region56
        $region55: #{tpu_custom_call.1} parent=51 // pred_region
          %s713 = sand.u32 %s37, 1
          %s714 = scalar_lea.sflag [#allocation4], %s713
          %s715 = sand.u32 %s59, 1
          %s716 = smul.addr %s715, 8
          %s717 = scalar_lea.vmem [#allocation3], %s716
          %s719 = ssub.s32 128, 128
          %720 = vsyncadd %s714, %s719
          %s721 = smul.addr %s44, 128
          %s722 = scalar_lea.hbm %s0, %s721
          %s724 = sshll.u32 %s717, 4
          %s725 = int_to_ptr.vmem [resolvable:$true] %s724
          %727 = dma.hbm_to_vmem [thread:$0]  %s722, 128, %s725, %s714
        $region56: #{tpu_custom_call.1} parent=51 // pred_fallthru
          _
        // Predicated region
        $region57: #{tpu_custom_call.1} parent=51 // pred_check
          %p728 = pneg %p200
        $region58: #{tpu_custom_call.1} parent=51 // pred_check_branch
          %730 = sbr.rel (%p728) target = $region60
        $region59: #{tpu_custom_call.1} parent=51 // pred_region
          %s731 = sand.u32 %s37, 1
          %s732 = scalar_lea.sflag [#allocation4], %s731
          %s733 = sand.u32 %s190, 1
          %s734 = smul.addr %s733, 384
          %s735 = scalar_lea.vmem [#allocation14], %s734
          %s737 = ssub.s32 6144, 6144
          %738 = vsyncadd %s732, %s737
          %s739 = smul.addr %s45, 48
          %s740 = smul.addr %s739, 128
          %s741 = scalar_lea.hbm %s6, %s740
          %s742 = sshll.u32 %s735, 4
          %s743 = int_to_ptr.vmem [resolvable:$true] %s742
          %748 = dma.hbm_to_vmem [thread:$0]  %s741, 6144, %s743, %s732, 384, 384, 24
        $region60: #{tpu_custom_call.1} parent=51 // pred_fallthru
          _
        // Predicated region
        $region61: #{tpu_custom_call.1} parent=51 // pred_check
          %p749 = pneg %p226
        $region62: #{tpu_custom_call.1} parent=51 // pred_check_branch
          %751 = sbr.rel (%p749) target = $region64
        $region63: #{tpu_custom_call.1} parent=51 // pred_region
          %p752 = scmp.lt.s32.totalorder %s45, 1
          %s753 = scalar_select %p752, %s45, 1
          %s754 = smul.addr %s753, 3
          %s755 = scalar_lea.vmem %s7, %s754
        $region64: #{tpu_custom_call.1} parent=51 // pred_fallthru
          _
        // Predicated region
        $region65: #{tpu_custom_call.1} parent=51 // pred_check
          %p756 = pneg %p252
        $region66: #{tpu_custom_call.1} parent=51 // pred_check_branch
          %758 = sbr.rel (%p756) target = $region68
        $region67: #{tpu_custom_call.1} parent=51 // pred_region
          %s759 = sand.u32 %s37, 1
          %s760 = scalar_lea.sflag [#allocation4], %s759
          %s761 = sand.u32 %s242, 1
          %s762 = smul.addr %s761, 128
          %s763 = scalar_lea.vmem [#allocation15], %s762
          %s765 = ssub.s32 2048, 2048
          %766 = vsyncadd %s760, %s765
          %s767 = smul.addr %s45, 16
          %s768 = smul.addr %s767, 128
          %s769 = scalar_lea.hbm %s8, %s768
          %s770 = sshll.u32 %s763, 4
          %s771 = int_to_ptr.vmem [resolvable:$true] %s770
          %776 = dma.hbm_to_vmem [thread:$0]  %s769, 2048, %s771, %s760, 128, 128, 8
        $region68: #{tpu_custom_call.1} parent=51 // pred_fallthru
          _
        // Predicated region
        $region69: #{tpu_custom_call.1} parent=51 // pred_check
          %p777 = pneg %p278
        $region70: #{tpu_custom_call.1} parent=51 // pred_check_branch
          %779 = sbr.rel (%p777) target = $region72
        $region71: #{tpu_custom_call.1} parent=51 // pred_region
          %p780 = scmp.lt.s32.totalorder %s45, 1
          %s781 = scalar_select %p780, %s45, 1
          %s782 = scalar_lea.vmem %s9, %s781
        $region72: #{tpu_custom_call.1} parent=51 // pred_fallthru
          _
        // Predicated region
        $region73: #{tpu_custom_call.1} parent=51 // pred_check
          %p783 = pneg %p304
        $region74: #{tpu_custom_call.1} parent=51 // pred_check_branch
          %785 = sbr.rel (%p783) target = $region76
        $region75: #{tpu_custom_call.1} parent=51 // pred_region
          %p786 = scmp.lt.s32.totalorder %s45, 1
          %s787 = scalar_select %p786, %s45, 1
          %s788 = scalar_lea.vmem %s10, %s787
        $region76: #{tpu_custom_call.1} parent=51 // pred_fallthru
          _
        // Predicated region
        $region77: #{tpu_custom_call.1} parent=51 // pred_check
          %p789 = pneg %p330
        $region78: #{tpu_custom_call.1} parent=51 // pred_check_branch
          %791 = sbr.rel (%p789) target = $region80
        $region79: #{tpu_custom_call.1} parent=51 // pred_region
          %p792 = scmp.lt.s32.totalorder %s45, 1
          %s793 = scalar_select %p792, %s45, 1
          %s794 = scalar_lea.vmem %s11, %s793
        $region80: #{tpu_custom_call.1} parent=51 // pred_fallthru
          _
        // Predicated region
        $region81: #{tpu_custom_call.1} parent=51 // pred_check
          %p795 = pneg %p356
        $region82: #{tpu_custom_call.1} parent=51 // pred_check_branch
          %797 = sbr.rel (%p795) target = $region84
        $region83: #{tpu_custom_call.1} parent=51 // pred_region
          %s798 = sand.u32 %s37, 1
          %s799 = scalar_lea.sflag [#allocation4], %s798
          %s800 = sand.u32 %s346, 1
          %s801 = smul.addr %s800, 512
          %s802 = scalar_lea.vmem [#allocation16], %s801
          %s804 = ssub.s32 8192, 8192
          %805 = vsyncadd %s799, %s804
          %s806 = smul.addr %s45, 64
          %s807 = smul.addr %s806, 128
          %s808 = scalar_lea.hbm %s12, %s807
          %s809 = sshll.u32 %s802, 4
          %s810 = int_to_ptr.vmem [resolvable:$true] %s809
          %815 = dma.hbm_to_vmem [thread:$0]  %s808, 8192, %s810, %s799, 512, 512, 32
        $region84: #{tpu_custom_call.1} parent=51 // pred_fallthru
          _
        // Predicated region
        $region85: #{tpu_custom_call.1} parent=51 // pred_check
          %p816 = pneg %p382
        $region86: #{tpu_custom_call.1} parent=51 // pred_check_branch
          %818 = sbr.rel (%p816) target = $region88
        $region87: #{tpu_custom_call.1} parent=51 // pred_region
          %p819 = scmp.lt.s32.totalorder %s45, 1
          %s820 = scalar_select %p819, %s45, 1
          %s821 = smul.addr %s820, 4
          %s822 = scalar_lea.vmem %s13, %s821
        $region88: #{tpu_custom_call.1} parent=51 // pred_fallthru
          _
        // Predicated region
        $region89: #{tpu_custom_call.1} parent=51 // pred_check
          %p823 = pneg %p408
        $region90: #{tpu_custom_call.1} parent=51 // pred_check_branch
          %825 = sbr.rel (%p823) target = $region92
        $region91: #{tpu_custom_call.1} parent=51 // pred_region
          %s826 = sand.u32 %s37, 1
          %s827 = scalar_lea.sflag [#allocation4], %s826
          %s828 = sand.u32 %s398, 1
          %s829 = smul.addr %s828, 512
          %s830 = scalar_lea.vmem [#allocation17], %s829
          %s832 = ssub.s32 8192, 8192
          %833 = vsyncadd %s827, %s832
          %s834 = smul.addr %s45, 64
          %s835 = smul.addr %s834, 128
          %s836 = scalar_lea.hbm %s14, %s835
          %s837 = sshll.u32 %s830, 4
          %s838 = int_to_ptr.vmem [resolvable:$true] %s837
          %843 = dma.hbm_to_vmem [thread:$0]  %s836, 8192, %s838, %s827, 128, 128, 8
        $region92: #{tpu_custom_call.1} parent=51 // pred_fallthru
          _
        // Predicated region
        $region93: #{tpu_custom_call.1} parent=51 // pred_check
          %p844 = pneg %p434
        $region94: #{tpu_custom_call.1} parent=51 // pred_check_branch
          %846 = sbr.rel (%p844) target = $region96
        $region95: #{tpu_custom_call.1} parent=51 // pred_region
          %p847 = scmp.lt.s32.totalorder %s45, 1
          %s848 = scalar_select %p847, %s45, 1
          %s849 = scalar_lea.vmem %s15, %s848
        $region96: #{tpu_custom_call.1} parent=51 // pred_fallthru
          _
        // Predicated region
        $region97: #{tpu_custom_call.1} parent=51 // pred_check
          %p850 = pneg %p460
        $region98: #{tpu_custom_call.1} parent=51 // pred_check_branch
          %852 = sbr.rel (%p850) target = $region100
        $region99: #{tpu_custom_call.1} parent=51 // pred_region
          %p853 = scmp.lt.s32.totalorder %s45, 1
          %s854 = scalar_select %p853, %s45, 1
          %s855 = scalar_lea.vmem %s16, %s854
        $region100: #{tpu_custom_call.1} parent=51 // pred_fallthru
          _
        // Predicated region
        $region101: #{tpu_custom_call.1} parent=51 // pred_check
          %p856 = pneg %p486
        $region102: #{tpu_custom_call.1} parent=51 // pred_check_branch
          %858 = sbr.rel (%p856) target = $region104
        $region103: #{tpu_custom_call.1} parent=51 // pred_region
          %p859 = scmp.lt.s32.totalorder %s45, 1
          %s860 = scalar_select %p859, %s45, 1
          %s861 = scalar_lea.vmem %s17, %s860
        $region104: #{tpu_custom_call.1} parent=51 // pred_fallthru
          _
      $region52: #{tpu_custom_call.1} parent=5 // pred_fallthru
        _
      %p862 = scmp.le.s32.totalorder 1, %s37
      %p863 = scmp.lt.s32.totalorder %s37, 5
      %p864 = pnand %p862, %p863
      %p865 = pneg %p864
      // Predicated region
      $region105: #{tpu_custom_call.1} parent=5 // pred_check
        _
      $region106: #{tpu_custom_call.1} parent=5 // pred_check_branch
        %867 = sbr.rel (%p864) target = $region108
      $region107: #{tpu_custom_call.1} parent=5 // pred_region
        %s868 = ssub.s32 %s37, 1
        %s869 = sand.u32 %s42, 1
        %s870 = scalar_lea.sflag [#allocation4], %s869
        %s871 = sand.u32 %s62, 1
        %s872 = smul.addr %s871, 8
        %s873 = scalar_lea.vmem [#allocation3], %s872
        // Predicated region
        $region109: #{tpu_custom_call.1} parent=107 // pred_check
          %p874 = pneg %p75
        $region110: #{tpu_custom_call.1} parent=107 // pred_check_branch
          %876 = sbr.rel (%p874) target = $region112
        $region111: #{tpu_custom_call.1} parent=107 // pred_region
          %877 = dma.done %s870, 128
        $region112: #{tpu_custom_call.1} parent=107 // pred_fallthru
          _
        // Predicated region
        $region113: #{tpu_custom_call.1} parent=107 // pred_check
          %p878 = pneg %p96
        $region114: #{tpu_custom_call.1} parent=107 // pred_check_branch
          %880 = sbr.rel (%p878) target = $region116
        $region115: #{tpu_custom_call.1} parent=107 // pred_region
          %881 = dma.done [#allocation7], 128
        $region116: #{tpu_custom_call.1} parent=107 // pred_fallthru
          _
        // Predicated region
        $region117: #{tpu_custom_call.1} parent=107 // pred_check
          %p882 = pneg %p117
        $region118: #{tpu_custom_call.1} parent=107 // pred_check_branch
          %884 = sbr.rel (%p882) target = $region120
        $region119: #{tpu_custom_call.1} parent=107 // pred_region
          %885 = dma.done [#allocation7], 2048
        $region120: #{tpu_custom_call.1} parent=107 // pred_fallthru
          _
        // Predicated region
        $region121: #{tpu_custom_call.1} parent=107 // pred_check
          %p886 = pneg %p138
        $region122: #{tpu_custom_call.1} parent=107 // pred_check_branch
          %888 = sbr.rel (%p886) target = $region124
        $region123: #{tpu_custom_call.1} parent=107 // pred_region
          %889 = dma.done [#allocation10], 16
        $region124: #{tpu_custom_call.1} parent=107 // pred_fallthru
          _
        // Predicated region
        $region125: #{tpu_custom_call.1} parent=107 // pred_check
          %p890 = pneg %p159
        $region126: #{tpu_custom_call.1} parent=107 // pred_check_branch
          %892 = sbr.rel (%p890) target = $region128
        $region127: #{tpu_custom_call.1} parent=107 // pred_region
          %893 = dma.done [#allocation10], 16
        $region128: #{tpu_custom_call.1} parent=107 // pred_fallthru
          _
        // Predicated region
        $region129: #{tpu_custom_call.1} parent=107 // pred_check
          %p894 = pneg %p180
        $region130: #{tpu_custom_call.1} parent=107 // pred_check_branch
          %896 = sbr.rel (%p894) target = $region132
        $region131: #{tpu_custom_call.1} parent=107 // pred_region
          %897 = dma.done [#allocation13], 16
        $region132: #{tpu_custom_call.1} parent=107 // pred_fallthru
          _
        %s898 = sand.u32 %s42, 1
        %s899 = scalar_lea.sflag [#allocation4], %s898
        %s900 = sand.u32 %s193, 1
        %s901 = smul.addr %s900, 384
        %s902 = scalar_lea.vmem [#allocation14], %s901
        // Predicated region
        $region133: #{tpu_custom_call.1} parent=107 // pred_check
          %p903 = pneg %p206
        $region134: #{tpu_custom_call.1} parent=107 // pred_check_branch
          %905 = sbr.rel (%p903) target = $region136
        $region135: #{tpu_custom_call.1} parent=107 // pred_region
          %906 = dma.done %s899, 6144
        $region136: #{tpu_custom_call.1} parent=107 // pred_fallthru
          _
        %s907 = sand.u32 %s42, 1
        %s908 = scalar_lea.sflag [#allocation4], %s907
        %s909 = sand.u32 %s245, 1
        %s910 = smul.addr %s909, 128
        %s911 = scalar_lea.vmem [#allocation15], %s910
        // Predicated region
        $region137: #{tpu_custom_call.1} parent=107 // pred_check
          %p912 = pneg %p258
        $region138: #{tpu_custom_call.1} parent=107 // pred_check_branch
          %914 = sbr.rel (%p912) target = $region140
        $region139: #{tpu_custom_call.1} parent=107 // pred_region
          %915 = dma.done %s908, 2048
        $region140: #{tpu_custom_call.1} parent=107 // pred_fallthru
          _
        %s916 = sand.u32 %s42, 1
        %s917 = scalar_lea.sflag [#allocation4], %s916
        %s918 = sand.u32 %s349, 1
        %s919 = smul.addr %s918, 512
        %s920 = scalar_lea.vmem [#allocation16], %s919
        // Predicated region
        $region141: #{tpu_custom_call.1} parent=107 // pred_check
          %p921 = pneg %p362
        $region142: #{tpu_custom_call.1} parent=107 // pred_check_branch
          %923 = sbr.rel (%p921) target = $region144
        $region143: #{tpu_custom_call.1} parent=107 // pred_region
          %924 = dma.done %s917, 8192
        $region144: #{tpu_custom_call.1} parent=107 // pred_fallthru
          _
        %s925 = sand.u32 %s42, 1
        %s926 = scalar_lea.sflag [#allocation4], %s925
        %s927 = sand.u32 %s401, 1
        %s928 = smul.addr %s927, 512
        %s929 = scalar_lea.vmem [#allocation17], %s928
        // Predicated region
        $region145: #{tpu_custom_call.1} parent=107 // pred_check
          %p930 = pneg %p414
        $region146: #{tpu_custom_call.1} parent=107 // pred_check_branch
          %932 = sbr.rel (%p930) target = $region148
        $region147: #{tpu_custom_call.1} parent=107 // pred_region
          %933 = dma.done %s926, 8192
        $region148: #{tpu_custom_call.1} parent=107 // pred_fallthru
          _
        // Predicated region
        $region149: #{tpu_custom_call.1} parent=107 // pred_check
          %p934 = pneg %p513
        $region150: #{tpu_custom_call.1} parent=107 // pred_check_branch
          %936 = sbr.rel (%p934) target = $region152
        $region151: #{tpu_custom_call.1} parent=107 // pred_region
          %937 = dma.done [#allocation7], 2048
        $region152: #{tpu_custom_call.1} parent=107 // pred_fallthru
          _
        // Predicated region
        $region153: #{tpu_custom_call.1} parent=107 // pred_check
          %p938 = pneg %p555
        $region154: #{tpu_custom_call.1} parent=107 // pred_check_branch
          %940 = sbr.rel (%p938) target = $region156
        $region155: #{tpu_custom_call.1} parent=107 // pred_region
          %941 = dma.done [#allocation10], 2048
        $region156: #{tpu_custom_call.1} parent=107 // pred_fallthru
          _
        %s942 = sand.u32 %s42, 1
        %s943 = scalar_lea.sflag [#allocation4], %s942
        %s944 = sand.u32 %s62, 1
        %s945 = smul.addr %s944, 8
        %s946 = scalar_lea.vmem [#allocation3], %s945
        %p947 = pneg %p75
        %p948 = pneg %p72
        %p949 = pneg %p96
        %p950 = pneg %p93
        %p951 = pneg %p117
        %p952 = pneg %p114
        %p953 = pneg %p138
        %p954 = pneg %p135
        %p955 = pneg %p159
        %p956 = pneg %p156
        %p957 = pneg %p180
        %p958 = pneg %p177
        %s959 = sand.u32 %s42, 1
        %s960 = scalar_lea.sflag [#allocation4], %s959
        %s961 = sand.u32 %s193, 1
        %s962 = smul.addr %s961, 384
        %s963 = scalar_lea.vmem [#allocation14], %s962
        %p964 = pneg %p206
        %p965 = pneg %p203
        %p966 = scmp.lt.s32.totalorder %s47, 1
        %s967 = scalar_select %p966, %s47, 1
        %s968 = smul.addr %s967, 3
        %s969 = scalar_lea.vmem %s7, %s968
        %p970 = pneg %p232
        %p971 = pneg %p229
        %s972 = sand.u32 %s42, 1
        %s973 = scalar_lea.sflag [#allocation4], %s972
        %s974 = sand.u32 %s245, 1
        %s975 = smul.addr %s974, 128
        %s976 = scalar_lea.vmem [#allocation15], %s975
        %p977 = pneg %p258
        %p978 = pneg %p255
        %p979 = scmp.lt.s32.totalorder %s47, 1
        %s980 = scalar_select %p979, %s47, 1
        %s981 = scalar_lea.vmem %s9, %s980
        %p982 = pneg %p284
        %p983 = pneg %p281
        %p984 = scmp.lt.s32.totalorder %s47, 1
        %s985 = scalar_select %p984, %s47, 1
        %s986 = scalar_lea.vmem %s10, %s985
        %p987 = pneg %p310
        %p988 = pneg %p307
        %p989 = scmp.lt.s32.totalorder %s47, 1
        %s990 = scalar_select %p989, %s47, 1
        %s991 = scalar_lea.vmem %s11, %s990
        %p992 = pneg %p336
        %p993 = pneg %p333
        %s994 = sand.u32 %s42, 1
        %s995 = scalar_lea.sflag [#allocation4], %s994
        %s996 = sand.u32 %s349, 1
        %s997 = smul.addr %s996, 512
        %s998 = scalar_lea.vmem [#allocation16], %s997
        %p999 = pneg %p362
        %p1000 = pneg %p359
        %p1001 = scmp.lt.s32.totalorder %s47, 1
        %s1002 = scalar_select %p1001, %s47, 1
        %s1003 = smul.addr %s1002, 4
        %s1004 = scalar_lea.vmem %s13, %s1003
        %p1005 = pneg %p388
        %p1006 = pneg %p385
        %s1007 = sand.u32 %s42, 1
        %s1008 = scalar_lea.sflag [#allocation4], %s1007
        %s1009 = sand.u32 %s401, 1
        %s1010 = smul.addr %s1009, 512
        %s1011 = scalar_lea.vmem [#allocation17], %s1010
        %p1012 = pneg %p414
        %p1013 = pneg %p411
        %p1014 = scmp.lt.s32.totalorder %s47, 1
        %s1015 = scalar_select %p1014, %s47, 1
        %s1016 = scalar_lea.vmem %s15, %s1015
        %p1017 = pneg %p440
        %p1018 = pneg %p437
        %p1019 = scmp.lt.s32.totalorder %s47, 1
        %s1020 = scalar_select %p1019, %s47, 1
        %s1021 = scalar_lea.vmem %s16, %s1020
        %p1022 = pneg %p466
        %p1023 = pneg %p463
        %p1024 = scmp.lt.s32.totalorder %s47, 1
        %s1025 = scalar_select %p1024, %s47, 1
        %s1026 = scalar_lea.vmem %s17, %s1025
        %p1027 = pneg %p492
        %p1028 = pneg %p489
        %p1029 = pneg %p513
        %p1030 = pneg %p510
        %p1031 = pneg %p534
        %p1032 = pneg %p531
        %p1033 = pneg %p555
        %p1034 = pneg %p552
        %p1035 = pneg %p576
        %p1036 = pneg %p573
        %p1037 = pneg %p602
        %p1038 = pneg %p599
        %s1039 = sand.u32 %s589, 1
        %s1040 = scalar_lea.sflag [#allocation5], %s1039
        %s1041 = sand.u32 %s589, 1
        %s1042 = smul.addr %s1041, 8
        %s1043 = scalar_lea.vmem [#allocation20], %s1042
        %p1044 = scmp.lt.s32.totalorder %s47, 1
        %s1045 = scalar_select %p1044, %s47, 1
        %s1046 = smul.addr %s1045, 3
        %s1047 = scalar_lea.vmem %s7, %s1046
        %p1048 = scmp.lt.s32.totalorder %s47, 1
        %s1049 = scalar_select %p1048, %s47, 1
        %s1050 = scalar_lea.vmem %s9, %s1049
        %p1051 = scmp.lt.s32.totalorder %s47, 1
        %s1052 = scalar_select %p1051, %s47, 1
        %s1053 = scalar_lea.vmem %s10, %s1052
        %p1054 = scmp.lt.s32.totalorder %s47, 1
        %s1055 = scalar_select %p1054, %s47, 1
        %s1056 = scalar_lea.vmem %s11, %s1055
        %p1057 = scmp.lt.s32.totalorder %s47, 1
        %s1058 = scalar_select %p1057, %s47, 1
        %s1059 = smul.addr %s1058, 4
        %s1060 = scalar_lea.vmem %s13, %s1059
        %p1061 = scmp.lt.s32.totalorder %s47, 1
        %s1062 = scalar_select %p1061, %s47, 1
        %s1063 = scalar_lea.vmem %s15, %s1062
        %p1064 = scmp.lt.s32.totalorder %s47, 1
        %s1065 = scalar_select %p1064, %s47, 1
        %s1066 = scalar_lea.vmem %s16, %s1065
        %p1067 = scmp.lt.s32.totalorder %s47, 1
        %s1068 = scalar_select %p1067, %s47, 1
        %s1069 = scalar_lea.vmem %s17, %s1068
        %p1070 = scmp.eq.s32.totalorder %s47, 0
        // Predicated region
        $region157: #{tpu_custom_call.1} parent=107 // pred_check
          %p1071 = pneg %p1070
        $region158: #{tpu_custom_call.1} parent=107 // pred_check_branch
          %1073 = sbr.rel (%p1071) target = $region160
        $region159: #{tpu_custom_call.1} parent=107 // pred_region
          %v1074 = vld [vmem:[%s873] sm:$0xff]
          %v1075 = vld [vmem:[#allocation8] sm:$0xff]
          %v1076 = vld [vmem:[#allocation8 + $0x8] sm:$0xff]
          %v1077 = vld [vmem:[#allocation8 + $0x10] sm:$0xff]
          %v1078 = vld [vmem:[#allocation8 + $0x18] sm:$0xff]
          %v1079 = vld [vmem:[#allocation8 + $0x20] sm:$0xff]
          %v1080 = vld [vmem:[#allocation8 + $0x28] sm:$0xff]
          %v1081 = vld [vmem:[#allocation8 + $0x30] sm:$0xff]
          %v1082 = vld [vmem:[#allocation8 + $0x38] sm:$0xff]
          %v1083 = vld [vmem:[#allocation8 + $0x40] sm:$0xff]
          %v1084 = vld [vmem:[#allocation8 + $0x48] sm:$0xff]
          %v1085 = vld [vmem:[#allocation8 + $0x50] sm:$0xff]
          %v1086 = vld [vmem:[#allocation8 + $0x58] sm:$0xff]
          %v1087 = vld [vmem:[#allocation8 + $0x60] sm:$0xff]
          %v1088 = vld [vmem:[#allocation8 + $0x68] sm:$0xff]
          %v1089 = vld [vmem:[#allocation8 + $0x70] sm:$0xff]
          %v1090 = vld [vmem:[#allocation8 + $0x78] sm:$0xff]
          %v1091 = vld [vmem:[#allocation9] sm:$0x1]
          %v1093 = vlaneseq
          %v1094 = vshrl.u32 %v1093, 7
          %v1095 = vsub.s32 0, %v1094
          %v1096 = vrot.slane %v1091, %v1095
          %1098 = vmatprep.subr.mxu0 0.0
          %1099 = vmatpush1.msra.mxu0 %v1075
          %1100 = vmatprep.subr.mxu0 0.0
          %1101 = vmatpush1.msra.mxu0 %v1076
          %1102 = vmatprep.subr.mxu0 0.0
          %1103 = vmatpush1.msra.mxu0 %v1077
          %1104 = vmatprep.subr.mxu0 0.0
          %1105 = vmatpush1.msra.mxu0 %v1078
          %1106 = vmatprep.subr.mxu0 0.0
          %1107 = vmatpush1.msra.mxu0 %v1079
          %1108 = vmatprep.subr.mxu0 0.0
          %1109 = vmatpush1.msra.mxu0 %v1080
          %1110 = vmatprep.subr.mxu0 0.0
          %1111 = vmatpush1.msra.mxu0 %v1081
          %1112 = vmatprep.subr.mxu0 0.0
          %1113 = vmatpush1.msra.mxu0 %v1082
          %1114 = vmatprep.subr.mxu0 0.0
          %1115 = vmatpush1.msra.mxu0 %v1083
          %1116 = vmatprep.subr.mxu0 0.0
          %1117 = vmatpush1.msra.mxu0 %v1084
          %1118 = vmatprep.subr.mxu0 0.0
          %1119 = vmatpush1.msra.mxu0 %v1085
          %1120 = vmatprep.subr.mxu0 0.0
          %1121 = vmatpush1.msra.mxu0 %v1086
          %1122 = vmatprep.subr.mxu0 0.0
          %1123 = vmatpush1.msra.mxu0 %v1087
          %1124 = vmatprep.subr.mxu0 0.0
          %1125 = vmatpush1.msra.mxu0 %v1088
          %1126 = vmatprep.subr.mxu0 0.0
          %1127 = vmatpush1.msra.mxu0 %v1089
          %1128 = vmatprep.subr.mxu0 0.0
          %1129 = vmatpush1.msra.mxu0 %v1090
          %1130 = vmatprep.subr.mxu0 0.0
          %1131 = vmatpush1.msra.mxu0 0.0
          %1132 = vmatprep.subr.mxu0 0.0
          %1133 = vmatpush1.msra.mxu0 0.0
          %1134 = vmatprep.subr.mxu0 0.0
          %1135 = vmatpush1.msra.mxu0 0.0
          %1136 = vmatprep.subr.mxu0 0.0
          %1137 = vmatpush1.msra.mxu0 0.0
          %1138 = vmatprep.subr.mxu0 0.0
          %1139 = vmatpush1.msra.mxu0 0.0
          %1140 = vmatprep.subr.mxu0 0.0
          %1141 = vmatpush1.msra.mxu0 0.0
          %1142 = vmatprep.subr.mxu0 0.0
          %1143 = vmatpush1.msra.mxu0 0.0
          %1144 = vmatprep.subr.mxu0 0.0
          %1145 = vmatpush1.msra.mxu0 0.0
          %1146 = vmatprep.subr.mxu0 0.0
          %1147 = vmatpush1.msra.mxu0 0.0
          %1148 = vmatprep.subr.mxu0 0.0
          %1149 = vmatpush1.msra.mxu0 0.0
          %1150 = vmatprep.subr.mxu0 0.0
          %1151 = vmatpush1.msra.mxu0 0.0
          %1152 = vmatprep.subr.mxu0 0.0
          %1153 = vmatpush1.msra.mxu0 0.0
          %1154 = vmatprep.subr.mxu0 0.0
          %1155 = vmatpush1.msra.mxu0 0.0
          %1156 = vmatprep.subr.mxu0 0.0
          %1157 = vmatpush1.msra.mxu0 0.0
          %1158 = vmatprep.subr.mxu0 0.0
          %1159 = vmatpush1.msra.mxu0 0.0
          %1160 = vmatprep.subr.mxu0 0.0
          %1161 = vmatpush1.msra.mxu0 0.0
          %1162 = vmatprep.mubr.f32.mxu0 0.0
          %1163 = vmatmul.mubr.f32.gmra.mrb[0].mxu0 %v1074
          %v1164 = vpop.f32.mrb[0].mxu0
          %v1165 = vadd.f32 %v1096, %v1164
          %v1166 = vpop.f32.mrb[0].mxu0
          %1167 = vdwg.mxu0
          %v1168 = vld [vmem:[#allocation6] sm:$0xff]
          %v1169 = vadd.f32 %v1165, %v1168
          %v1170 = vld [vmem:[#allocation11] sm:$0x1]
          %v1171 = vld [vmem:[#allocation12] sm:$0x1]
          %1172 = vadd.xlane.f32.xlu0 %v1169
          %v1173 = vpop.xlane.xlu0 %1172
          %v1174 = vrcp.pop 128.0
          %v1175 = vmul.f32 %v1173, %v1174
          %v1176 = vsub.f32 %v1169, %v1175
          %v1177 = vmul.f32 %v1176, %v1176
          %1178 = vadd.xlane.f32.xlu0 %v1177
          %v1179 = vpop.xlane.xlu0 %1178
          %v1180 = vmul.f32 %v1179, %v1174
          %v1181 = vadd.f32 %v1180, 1e-05
          %v1182 = vrsqrt.pop %v1181
          %v1183 = vmul.f32 %v1176, %v1182
          %v1185 = vlaneseq
          %v1186 = vshrl.u32 %v1185, 7
          %v1187 = vsub.s32 0, %v1186
          %v1188 = vrot.slane %v1170, %v1187
          %v1190 = vmul.f32 %v1183, %v1188
          %v1192 = vlaneseq
          %v1193 = vshrl.u32 %v1192, 7
          %v1194 = vsub.s32 0, %v1193
          %v1195 = vrot.slane %v1171, %v1194
          %v1197 = vadd.f32 %v1190, %v1195
          %1198 = vst [vmem:[#allocation2] sm:$0xff] %v1197
        $region160: #{tpu_custom_call.1} parent=107 // pred_fallthru
          _
        %v1199 = vld [vmem:[#allocation2] sm:$0xff]
        %v1200 = vld [vmem:[%s902] sm:$0xff]
        %v1201 = vld [vmem:[%s902 + $0x8] sm:$0xff]
        %v1202 = vld [vmem:[%s902 + $0x10] sm:$0xff]
        %v1203 = vld [vmem:[%s902 + $0x18] sm:$0xff]
        %v1204 = vld [vmem:[%s902 + $0x20] sm:$0xff]
        %v1205 = vld [vmem:[%s902 + $0x28] sm:$0xff]
        %v1206 = vld [vmem:[%s902 + $0x30] sm:$0xff]
        %v1207 = vld [vmem:[%s902 + $0x38] sm:$0xff]
        %v1208 = vld [vmem:[%s902 + $0x40] sm:$0xff]
        %v1209 = vld [vmem:[%s902 + $0x48] sm:$0xff]
        %v1210 = vld [vmem:[%s902 + $0x50] sm:$0xff]
        %v1211 = vld [vmem:[%s902 + $0x58] sm:$0xff]
        %v1212 = vld [vmem:[%s902 + $0x60] sm:$0xff]
        %v1213 = vld [vmem:[%s902 + $0x68] sm:$0xff]
        %v1214 = vld [vmem:[%s902 + $0x70] sm:$0xff]
        %v1215 = vld [vmem:[%s902 + $0x78] sm:$0xff]
        %v1216 = vld [vmem:[%s902 + $0x80] sm:$0xff]
        %v1217 = vld [vmem:[%s902 + $0x88] sm:$0xff]
        %v1218 = vld [vmem:[%s902 + $0x90] sm:$0xff]
        %v1219 = vld [vmem:[%s902 + $0x98] sm:$0xff]
        %v1220 = vld [vmem:[%s902 + $0xa0] sm:$0xff]
        %v1221 = vld [vmem:[%s902 + $0xa8] sm:$0xff]
        %v1222 = vld [vmem:[%s902 + $0xb0] sm:$0xff]
        %v1223 = vld [vmem:[%s902 + $0xb8] sm:$0xff]
        %v1224 = vld [vmem:[%s902 + $0xc0] sm:$0xff]
        %v1225 = vld [vmem:[%s902 + $0xc8] sm:$0xff]
        %v1226 = vld [vmem:[%s902 + $0xd0] sm:$0xff]
        %v1227 = vld [vmem:[%s902 + $0xd8] sm:$0xff]
        %v1228 = vld [vmem:[%s902 + $0xe0] sm:$0xff]
        %v1229 = vld [vmem:[%s902 + $0xe8] sm:$0xff]
        %v1230 = vld [vmem:[%s902 + $0xf0] sm:$0xff]
        %v1231 = vld [vmem:[%s902 + $0xf8] sm:$0xff]
        %v1232 = vld [vmem:[%s902 + $0x100] sm:$0xff]
        %v1233 = vld [vmem:[%s902 + $0x108] sm:$0xff]
        %v1234 = vld [vmem:[%s902 + $0x110] sm:$0xff]
        %v1235 = vld [vmem:[%s902 + $0x118] sm:$0xff]
        %v1236 = vld [vmem:[%s902 + $0x120] sm:$0xff]
        %v1237 = vld [vmem:[%s902 + $0x128] sm:$0xff]
        %v1238 = vld [vmem:[%s902 + $0x130] sm:$0xff]
        %v1239 = vld [vmem:[%s902 + $0x138] sm:$0xff]
        %v1240 = vld [vmem:[%s902 + $0x140] sm:$0xff]
        %v1241 = vld [vmem:[%s902 + $0x148] sm:$0xff]
        %v1242 = vld [vmem:[%s902 + $0x150] sm:$0xff]
        %v1243 = vld [vmem:[%s902 + $0x158] sm:$0xff]
        %v1244 = vld [vmem:[%s902 + $0x160] sm:$0xff]
        %v1245 = vld [vmem:[%s902 + $0x168] sm:$0xff]
        %v1246 = vld [vmem:[%s902 + $0x170] sm:$0xff]
        %v1247 = vld [vmem:[%s902 + $0x178] sm:$0xff]
        %v1248 = vld [vmem:[%s1047] sm:$0x7]
        %v1250 = vlaneseq
        %v1251 = vshrl.u32 %v1250, 7
        %v1252 = vsub.s32 0, %v1251
        %v1253 = vrot.slane %v1248, %v1252
        %v1254 = vlaneseq
        %v1255 = vshrl.u32 %v1254, 7
        %v1256 = vsub.s32 1, %v1255
        %v1257 = vrot.slane %v1248, %v1256
        %v1258 = vlaneseq
        %v1259 = vshrl.u32 %v1258, 7
        %v1260 = vsub.s32 2, %v1259
        %v1261 = vrot.slane %v1248, %v1260
        %1265 = vmatprep.subr.mxu0 %v1201
        %1266 = vmatpush1.msra.mxu0 %v1200
        %1267 = vmatprep.subr.mxu0 %v1204
        %1268 = vmatpush1.msra.mxu0 %v1203
        %1269 = vmatprep.subr.mxu0 %v1207
        %1270 = vmatpush1.msra.mxu0 %v1206
        %1271 = vmatprep.subr.mxu0 %v1210
        %1272 = vmatpush1.msra.mxu0 %v1209
        %1273 = vmatprep.subr.mxu0 %v1213
        %1274 = vmatpush1.msra.mxu0 %v1212
        %1275 = vmatprep.subr.mxu0 %v1216
        %1276 = vmatpush1.msra.mxu0 %v1215
        %1277 = vmatprep.subr.mxu0 %v1219
        %1278 = vmatpush1.msra.mxu0 %v1218
        %1279 = vmatprep.subr.mxu0 %v1222
        %1280 = vmatpush1.msra.mxu0 %v1221
        %1281 = vmatprep.subr.mxu0 %v1225
        %1282 = vmatpush1.msra.mxu0 %v1224
        %1283 = vmatprep.subr.mxu0 %v1228
        %1284 = vmatpush1.msra.mxu0 %v1227
        %1285 = vmatprep.subr.mxu0 %v1231
        %1286 = vmatpush1.msra.mxu0 %v1230
        %1287 = vmatprep.subr.mxu0 %v1234
        %1288 = vmatpush1.msra.mxu0 %v1233
        %1289 = vmatprep.subr.mxu0 %v1237
        %1290 = vmatpush1.msra.mxu0 %v1236
        %1291 = vmatprep.subr.mxu0 %v1240
        %1292 = vmatpush1.msra.mxu0 %v1239
        %1293 = vmatprep.subr.mxu0 %v1243
        %1294 = vmatpush1.msra.mxu0 %v1242
        %1295 = vmatprep.subr.mxu0 %v1246
        %1296 = vmatpush1.msra.mxu0 %v1245
        %1297 = vmatprep.subr.mxu0 0.0
        %1298 = vmatpush1.msra.mxu0 0.0
        %1299 = vmatprep.subr.mxu0 0.0
        %1300 = vmatpush1.msra.mxu0 0.0
        %1301 = vmatprep.subr.mxu0 0.0
        %1302 = vmatpush1.msra.mxu0 0.0
        %1303 = vmatprep.subr.mxu0 0.0
        %1304 = vmatpush1.msra.mxu0 0.0
        %1305 = vmatprep.subr.mxu0 0.0
        %1306 = vmatpush1.msra.mxu0 0.0
        %1307 = vmatprep.subr.mxu0 0.0
        %1308 = vmatpush1.msra.mxu0 0.0
        %1309 = vmatprep.subr.mxu0 0.0
        %1310 = vmatpush1.msra.mxu0 0.0
        %1311 = vmatprep.subr.mxu0 0.0
        %1312 = vmatpush1.msra.mxu0 0.0
        %1313 = vmatprep.subr.mxu0 0.0
        %1314 = vmatpush1.msra.mxu0 0.0
        %1315 = vmatprep.subr.mxu0 0.0
        %1316 = vmatpush1.msra.mxu0 0.0
        %1317 = vmatprep.subr.mxu0 0.0
        %1318 = vmatpush1.msra.mxu0 0.0
        %1319 = vmatprep.subr.mxu0 0.0
        %1320 = vmatpush1.msra.mxu0 0.0
        %1321 = vmatprep.subr.mxu0 0.0
        %1322 = vmatpush1.msra.mxu0 0.0
        %1323 = vmatprep.subr.mxu0 0.0
        %1324 = vmatpush1.msra.mxu0 0.0
        %1325 = vmatprep.subr.mxu0 0.0
        %1326 = vmatpush1.msra.mxu0 0.0
        %1327 = vmatprep.subr.mxu0 0.0
        %1328 = vmatpush1.msra.mxu0 0.0
        %1329 = vmatprep.mubr.f32.mxu0 0.0
        %1330 = vmatmul.mubr.f32.gmra.mrb[0].mxu0 %v1199
        %v1331 = vpop.f32.mrb[0].mxu0
        %v1332 = vadd.f32 %v1253, %v1331
        %v1333 = vpop.f32.mrb[0].mxu0
        %v1334 = vadd.f32 %v1257, %v1333
        %1335 = vdwg.mxu0
        %1336 = vmatprep.subr.mxu0 0.0
        %1337 = vmatpush1.msra.mxu0 %v1202
        %1338 = vmatprep.subr.mxu0 0.0
        %1339 = vmatpush1.msra.mxu0 %v1205
        %1340 = vmatprep.subr.mxu0 0.0
        %1341 = vmatpush1.msra.mxu0 %v1208
        %1342 = vmatprep.subr.mxu0 0.0
        %1343 = vmatpush1.msra.mxu0 %v1211
        %1344 = vmatprep.subr.mxu0 0.0
        %1345 = vmatpush1.msra.mxu0 %v1214
        %1346 = vmatprep.subr.mxu0 0.0
        %1347 = vmatpush1.msra.mxu0 %v1217
        %1348 = vmatprep.subr.mxu0 0.0
        %1349 = vmatpush1.msra.mxu0 %v1220
        %1350 = vmatprep.subr.mxu0 0.0
        %1351 = vmatpush1.msra.mxu0 %v1223
        %1352 = vmatprep.subr.mxu0 0.0
        %1353 = vmatpush1.msra.mxu0 %v1226
        %1354 = vmatprep.subr.mxu0 0.0
        %1355 = vmatpush1.msra.mxu0 %v1229
        %1356 = vmatprep.subr.mxu0 0.0
        %1357 = vmatpush1.msra.mxu0 %v1232
        %1358 = vmatprep.subr.mxu0 0.0
        %1359 = vmatpush1.msra.mxu0 %v1235
        %1360 = vmatprep.subr.mxu0 0.0
        %1361 = vmatpush1.msra.mxu0 %v1238
        %1362 = vmatprep.subr.mxu0 0.0
        %1363 = vmatpush1.msra.mxu0 %v1241
        %1364 = vmatprep.subr.mxu0 0.0
        %1365 = vmatpush1.msra.mxu0 %v1244
        %1366 = vmatprep.subr.mxu0 0.0
        %1367 = vmatpush1.msra.mxu0 %v1247
        %1368 = vmatprep.subr.mxu0 0.0
        %1369 = vmatpush1.msra.mxu0 0.0
        %1370 = vmatprep.subr.mxu0 0.0
        %1371 = vmatpush1.msra.mxu0 0.0
        %1372 = vmatprep.subr.mxu0 0.0
        %1373 = vmatpush1.msra.mxu0 0.0
        %1374 = vmatprep.subr.mxu0 0.0
        %1375 = vmatpush1.msra.mxu0 0.0
        %1376 = vmatprep.subr.mxu0 0.0
        %1377 = vmatpush1.msra.mxu0 0.0
        %1378 = vmatprep.subr.mxu0 0.0
        %1379 = vmatpush1.msra.mxu0 0.0
        %1380 = vmatprep.subr.mxu0 0.0
        %1381 = vmatpush1.msra.mxu0 0.0
        %1382 = vmatprep.subr.mxu0 0.0
        %1383 = vmatpush1.msra.mxu0 0.0
        %1384 = vmatprep.subr.mxu0 0.0
        %1385 = vmatpush1.msra.mxu0 0.0
        %1386 = vmatprep.subr.mxu0 0.0
        %1387 = vmatpush1.msra.mxu0 0.0
        %1388 = vmatprep.subr.mxu0 0.0
        %1389 = vmatpush1.msra.mxu0 0.0
        %1390 = vmatprep.subr.mxu0 0.0
        %1391 = vmatpush1.msra.mxu0 0.0
        %1392 = vmatprep.subr.mxu0 0.0
        %1393 = vmatpush1.msra.mxu0 0.0
        %1394 = vmatprep.subr.mxu0 0.0
        %1395 = vmatpush1.msra.mxu0 0.0
        %1396 = vmatprep.subr.mxu0 0.0
        %1397 = vmatpush1.msra.mxu0 0.0
        %1398 = vmatprep.subr.mxu0 0.0
        %1399 = vmatpush1.msra.mxu0 0.0
        %1400 = vmatprep.mubr.f32.mxu0 0.0
        %1401 = vmatmul.mubr.f32.gmra.mrb[0].mxu0 %v1199
        %v1402 = vpop.f32.mrb[0].mxu0
        %v1403 = vadd.f32 %v1261, %v1402
        %v1404 = vpop.f32.mrb[0].mxu0
        %1405 = vdwg.mxu0
        %v1406 = vmul.f32 %v1332, 0.17677669
        %vm1407 = vcmask 261120
        %v1409 = vsel %vm1407, %v1406, 0
        %v1412 = vsel %vm1407, %v1334, 0
        %1414 = vmatprep.subr.mxu0 0.0
        %1415 = vmatpush1.xpose.msra.mxu0 %v1412
        %1416 = vmatprep.subr.mxu0 0.0
        %1417 = vmatpush1.xpose.msra.mxu0 0.0
        %1418 = vmatprep.subr.mxu0 0.0
        %1419 = vmatpush1.xpose.msra.mxu0 0.0
        %1420 = vmatprep.subr.mxu0 0.0
        %1421 = vmatpush1.xpose.msra.mxu0 0.0
        %1422 = vmatprep.subr.mxu0 0.0
        %1423 = vmatpush1.xpose.msra.mxu0 0.0
        %1424 = vmatprep.subr.mxu0 0.0
        %1425 = vmatpush1.xpose.msra.mxu0 0.0
        %1426 = vmatprep.subr.mxu0 0.0
        %1427 = vmatpush1.xpose.msra.mxu0 0.0
        %1428 = vmatprep.subr.mxu0 0.0
        %1429 = vmatpush1.xpose.msra.mxu0 0.0
        %1430 = vmatprep.subr.mxu0 0.0
        %1431 = vmatpush1.xpose.msra.mxu0 0.0
        %1432 = vmatprep.subr.mxu0 0.0
        %1433 = vmatpush1.xpose.msra.mxu0 0.0
        %1434 = vmatprep.subr.mxu0 0.0
        %1435 = vmatpush1.xpose.msra.mxu0 0.0
        %1436 = vmatprep.subr.mxu0 0.0
        %1437 = vmatpush1.xpose.msra.mxu0 0.0
        %1438 = vmatprep.subr.mxu0 0.0
        %1439 = vmatpush1.xpose.msra.mxu0 0.0
        %1440 = vmatprep.subr.mxu0 0.0
        %1441 = vmatpush1.xpose.msra.mxu0 0.0
        %1442 = vmatprep.subr.mxu0 0.0
        %1443 = vmatpush1.xpose.msra.mxu0 0.0
        %1444 = vmatprep.subr.mxu0 0.0
        %1445 = vmatpush1.xpose.msra.mxu0 0.0
        %1446 = vmatprep.subr.mxu0 0.0
        %1447 = vmatpush1.xpose.msra.mxu0 0.0
        %1448 = vmatprep.subr.mxu0 0.0
        %1449 = vmatpush1.xpose.msra.mxu0 0.0
        %1450 = vmatprep.subr.mxu0 0.0
        %1451 = vmatpush1.xpose.msra.mxu0 0.0
        %1452 = vmatprep.subr.mxu0 0.0
        %1453 = vmatpush1.xpose.msra.mxu0 0.0
        %1454 = vmatprep.subr.mxu0 0.0
        %1455 = vmatpush1.xpose.msra.mxu0 0.0
        %1456 = vmatprep.subr.mxu0 0.0
        %1457 = vmatpush1.xpose.msra.mxu0 0.0
        %1458 = vmatprep.subr.mxu0 0.0
        %1459 = vmatpush1.xpose.msra.mxu0 0.0
        %1460 = vmatprep.subr.mxu0 0.0
        %1461 = vmatpush1.xpose.msra.mxu0 0.0
        %1462 = vmatprep.subr.mxu0 0.0
        %1463 = vmatpush1.xpose.msra.mxu0 0.0
        %1464 = vmatprep.subr.mxu0 0.0
        %1465 = vmatpush1.xpose.msra.mxu0 0.0
        %1466 = vmatprep.subr.mxu0 0.0
        %1467 = vmatpush1.xpose.msra.mxu0 0.0
        %1468 = vmatprep.subr.mxu0 0.0
        %1469 = vmatpush1.xpose.msra.mxu0 0.0
        %1470 = vmatprep.subr.mxu0 0.0
        %1471 = vmatpush1.xpose.msra.mxu0 0.0
        %1472 = vmatprep.subr.mxu0 0.0
        %1473 = vmatpush1.xpose.msra.mxu0 0.0
        %1474 = vmatprep.subr.mxu0 0.0
        %1475 = vmatpush1.xpose.msra.mxu0 0.0
        %1476 = vmatprep.subr.mxu0 0.0
        %1477 = vmatpush1.xpose.msra.mxu0 0.0
        %1478 = vmatprep.mubr.f32.mxu0 0.0
        %1479 = vmatmul.mubr.f32.gmra.mrb[0].mxu0 %v1409
        %v1480 = vpop.f32.mrb[0].mxu0
        %v1481 = vadd.f32 0.0, %v1480
        %v1482 = vpop.f32.mrb[0].mxu0
        %1483 = vdwg.mxu0
        %vm1484 = vcmask 64512
        %v1485 = vsel %vm1484, %v1481, -inf
        %1486 = vmax.xlane.f32.xlu0 %v1485
        %v1487 = vpop.xlane.xlu0 %1486
        %v1488 = vsub.f32 %v1481, %v1487
        %v1489 = vmul.f32 %v1488, 1.442695
        %v1490 = vpow.pop %v1489
        %v1491 = vsel %vm1484, %v1490, 0.0
        %1492 = vadd.xlane.f32.xlu0 %v1491
        %v1493 = vpop.xlane.xlu0 %1492
        %v1494 = vrcp.pop %v1493
        %v1495 = vmul.f32 %v1490, %v1494
        %v1497 = vsel %vm1484, %v1495, 0
        %1499 = vmatprep.subr.mxu0 0.0
        %1500 = vmatpush1.msra.mxu0 %v1403
        %1501 = vmatprep.subr.mxu0 0.0
        %1502 = vmatpush1.msra.mxu0 0.0
        %1503 = vmatprep.subr.mxu0 0.0
        %1504 = vmatpush1.msra.mxu0 0.0
        %1505 = vmatprep.subr.mxu0 0.0
        %1506 = vmatpush1.msra.mxu0 0.0
        %1507 = vmatprep.subr.mxu0 0.0
        %1508 = vmatpush1.msra.mxu0 0.0
        %1509 = vmatprep.subr.mxu0 0.0
        %1510 = vmatpush1.msra.mxu0 0.0
        %1511 = vmatprep.subr.mxu0 0.0
        %1512 = vmatpush1.msra.mxu0 0.0
        %1513 = vmatprep.subr.mxu0 0.0
        %1514 = vmatpush1.msra.mxu0 0.0
        %1515 = vmatprep.subr.mxu0 0.0
        %1516 = vmatpush1.msra.mxu0 0.0
        %1517 = vmatprep.subr.mxu0 0.0
        %1518 = vmatpush1.msra.mxu0 0.0
        %1519 = vmatprep.subr.mxu0 0.0
        %1520 = vmatpush1.msra.mxu0 0.0
        %1521 = vmatprep.subr.mxu0 0.0
        %1522 = vmatpush1.msra.mxu0 0.0
        %1523 = vmatprep.subr.mxu0 0.0
        %1524 = vmatpush1.msra.mxu0 0.0
        %1525 = vmatprep.subr.mxu0 0.0
        %1526 = vmatpush1.msra.mxu0 0.0
        %1527 = vmatprep.subr.mxu0 0.0
        %1528 = vmatpush1.msra.mxu0 0.0
        %1529 = vmatprep.subr.mxu0 0.0
        %1530 = vmatpush1.msra.mxu0 0.0
        %1531 = vmatprep.subr.mxu0 0.0
        %1532 = vmatpush1.msra.mxu0 0.0
        %1533 = vmatprep.subr.mxu0 0.0
        %1534 = vmatpush1.msra.mxu0 0.0
        %1535 = vmatprep.subr.mxu0 0.0
        %1536 = vmatpush1.msra.mxu0 0.0
        %1537 = vmatprep.subr.mxu0 0.0
        %1538 = vmatpush1.msra.mxu0 0.0
        %1539 = vmatprep.subr.mxu0 0.0
        %1540 = vmatpush1.msra.mxu0 0.0
        %1541 = vmatprep.subr.mxu0 0.0
        %1542 = vmatpush1.msra.mxu0 0.0
        %1543 = vmatprep.subr.mxu0 0.0
        %1544 = vmatpush1.msra.mxu0 0.0
        %1545 = vmatprep.subr.mxu0 0.0
        %1546 = vmatpush1.msra.mxu0 0.0
        %1547 = vmatprep.subr.mxu0 0.0
        %1548 = vmatpush1.msra.mxu0 0.0
        %1549 = vmatprep.subr.mxu0 0.0
        %1550 = vmatpush1.msra.mxu0 0.0
        %1551 = vmatprep.subr.mxu0 0.0
        %1552 = vmatpush1.msra.mxu0 0.0
        %1553 = vmatprep.subr.mxu0 0.0
        %1554 = vmatpush1.msra.mxu0 0.0
        %1555 = vmatprep.subr.mxu0 0.0
        %1556 = vmatpush1.msra.mxu0 0.0
        %1557 = vmatprep.subr.mxu0 0.0
        %1558 = vmatpush1.msra.mxu0 0.0
        %1559 = vmatprep.subr.mxu0 0.0
        %1560 = vmatpush1.msra.mxu0 0.0
        %1561 = vmatprep.subr.mxu0 0.0
        %1562 = vmatpush1.msra.mxu0 0.0
        %1563 = vmatprep.mubr.f32.mxu0 0.0
        %1564 = vmatmul.mubr.f32.gmra.mrb[0].mxu0 %v1497
        %v1565 = vpop.f32.mrb[0].mxu0
        %v1566 = vadd.f32 0.0, %v1565
        %v1567 = vpop.f32.mrb[0].mxu0
        %1568 = vdwg.mxu0
        %1569 = vrot.lane.b32.xlu0 %v1406, 96
        %v1570 = vpop.permute.xlu0 %1569
        %1571 = vrot.lane.b32.xlu0 %v1334, 96
        %v1572 = vpop.permute.xlu0 %1571
        %v1573 = vsel %vm1407, %v1570, 0
        %v1575 = vsel %vm1407, %v1572, 0
        %1577 = vmatprep.subr.mxu0 0.0
        %1578 = vmatpush1.xpose.msra.mxu0 %v1575
        %1579 = vmatprep.subr.mxu0 0.0
        %1580 = vmatpush1.xpose.msra.mxu0 0.0
        %1581 = vmatprep.subr.mxu0 0.0
        %1582 = vmatpush1.xpose.msra.mxu0 0.0
        %1583 = vmatprep.subr.mxu0 0.0
        %1584 = vmatpush1.xpose.msra.mxu0 0.0
        %1585 = vmatprep.subr.mxu0 0.0
        %1586 = vmatpush1.xpose.msra.mxu0 0.0
        %1587 = vmatprep.subr.mxu0 0.0
        %1588 = vmatpush1.xpose.msra.mxu0 0.0
        %1589 = vmatprep.subr.mxu0 0.0
        %1590 = vmatpush1.xpose.msra.mxu0 0.0
        %1591 = vmatprep.subr.mxu0 0.0
        %1592 = vmatpush1.xpose.msra.mxu0 0.0
        %1593 = vmatprep.subr.mxu0 0.0
        %1594 = vmatpush1.xpose.msra.mxu0 0.0
        %1595 = vmatprep.subr.mxu0 0.0
        %1596 = vmatpush1.xpose.msra.mxu0 0.0
        %1597 = vmatprep.subr.mxu0 0.0
        %1598 = vmatpush1.xpose.msra.mxu0 0.0
        %1599 = vmatprep.subr.mxu0 0.0
        %1600 = vmatpush1.xpose.msra.mxu0 0.0
        %1601 = vmatprep.subr.mxu0 0.0
        %1602 = vmatpush1.xpose.msra.mxu0 0.0
        %1603 = vmatprep.subr.mxu0 0.0
        %1604 = vmatpush1.xpose.msra.mxu0 0.0
        %1605 = vmatprep.subr.mxu0 0.0
        %1606 = vmatpush1.xpose.msra.mxu0 0.0
        %1607 = vmatprep.subr.mxu0 0.0
        %1608 = vmatpush1.xpose.msra.mxu0 0.0
        %1609 = vmatprep.subr.mxu0 0.0
        %1610 = vmatpush1.xpose.msra.mxu0 0.0
        %1611 = vmatprep.subr.mxu0 0.0
        %1612 = vmatpush1.xpose.msra.mxu0 0.0
        %1613 = vmatprep.subr.mxu0 0.0
        %1614 = vmatpush1.xpose.msra.mxu0 0.0
        %1615 = vmatprep.subr.mxu0 0.0
        %1616 = vmatpush1.xpose.msra.mxu0 0.0
        %1617 = vmatprep.subr.mxu0 0.0
        %1618 = vmatpush1.xpose.msra.mxu0 0.0
        %1619 = vmatprep.subr.mxu0 0.0
        %1620 = vmatpush1.xpose.msra.mxu0 0.0
        %1621 = vmatprep.subr.mxu0 0.0
        %1622 = vmatpush1.xpose.msra.mxu0 0.0
        %1623 = vmatprep.subr.mxu0 0.0
        %1624 = vmatpush1.xpose.msra.mxu0 0.0
        %1625 = vmatprep.subr.mxu0 0.0
        %1626 = vmatpush1.xpose.msra.mxu0 0.0
        %1627 = vmatprep.subr.mxu0 0.0
        %1628 = vmatpush1.xpose.msra.mxu0 0.0
        %1629 = vmatprep.subr.mxu0 0.0
        %1630 = vmatpush1.xpose.msra.mxu0 0.0
        %1631 = vmatprep.subr.mxu0 0.0
        %1632 = vmatpush1.xpose.msra.mxu0 0.0
        %1633 = vmatprep.subr.mxu0 0.0
        %1634 = vmatpush1.xpose.msra.mxu0 0.0
        %1635 = vmatprep.subr.mxu0 0.0
        %1636 = vmatpush1.xpose.msra.mxu0 0.0
        %1637 = vmatprep.subr.mxu0 0.0
        %1638 = vmatpush1.xpose.msra.mxu0 0.0
        %1639 = vmatprep.subr.mxu0 0.0
        %1640 = vmatpush1.xpose.msra.mxu0 0.0
        %1641 = vmatprep.mubr.f32.mxu0 0.0
        %1642 = vmatmul.mubr.f32.gmra.mrb[0].mxu0 %v1573
        %v1643 = vpop.f32.mrb[0].mxu0
        %v1644 = vadd.f32 0.0, %v1643
        %v1645 = vpop.f32.mrb[0].mxu0
        %1646 = vdwg.mxu0
        %v1647 = vsel %vm1484, %v1644, -inf
        %1648 = vmax.xlane.f32.xlu0 %v1647
        %v1649 = vpop.xlane.xlu0 %1648
        %v1650 = vsub.f32 %v1644, %v1649
        %v1651 = vmul.f32 %v1650, 1.442695
        %v1652 = vpow.pop %v1651
        %v1653 = vsel %vm1484, %v1652, 0.0
        %1654 = vadd.xlane.f32.xlu0 %v1653
        %v1655 = vpop.xlane.xlu0 %1654
        %v1656 = vrcp.pop %v1655
        %v1657 = vmul.f32 %v1652, %v1656
        %1659 = vrot.lane.b32.xlu0 %v1403, 96
        %v1660 = vpop.permute.xlu0 %1659
        %v1663 = vsel %vm1484, %v1657, 0
        %1665 = vmatprep.subr.mxu0 0.0
        %1666 = vmatpush1.msra.mxu0 %v1660
        %1667 = vmatprep.subr.mxu0 0.0
        %1668 = vmatpush1.msra.mxu0 0.0
        %1669 = vmatprep.subr.mxu0 0.0
        %1670 = vmatpush1.msra.mxu0 0.0
        %1671 = vmatprep.subr.mxu0 0.0
        %1672 = vmatpush1.msra.mxu0 0.0
        %1673 = vmatprep.subr.mxu0 0.0
        %1674 = vmatpush1.msra.mxu0 0.0
        %1675 = vmatprep.subr.mxu0 0.0
        %1676 = vmatpush1.msra.mxu0 0.0
        %1677 = vmatprep.subr.mxu0 0.0
        %1678 = vmatpush1.msra.mxu0 0.0
        %1679 = vmatprep.subr.mxu0 0.0
        %1680 = vmatpush1.msra.mxu0 0.0
        %1681 = vmatprep.subr.mxu0 0.0
        %1682 = vmatpush1.msra.mxu0 0.0
        %1683 = vmatprep.subr.mxu0 0.0
        %1684 = vmatpush1.msra.mxu0 0.0
        %1685 = vmatprep.subr.mxu0 0.0
        %1686 = vmatpush1.msra.mxu0 0.0
        %1687 = vmatprep.subr.mxu0 0.0
        %1688 = vmatpush1.msra.mxu0 0.0
        %1689 = vmatprep.subr.mxu0 0.0
        %1690 = vmatpush1.msra.mxu0 0.0
        %1691 = vmatprep.subr.mxu0 0.0
        %1692 = vmatpush1.msra.mxu0 0.0
        %1693 = vmatprep.subr.mxu0 0.0
        %1694 = vmatpush1.msra.mxu0 0.0
        %1695 = vmatprep.subr.mxu0 0.0
        %1696 = vmatpush1.msra.mxu0 0.0
        %1697 = vmatprep.subr.mxu0 0.0
        %1698 = vmatpush1.msra.mxu0 0.0
        %1699 = vmatprep.subr.mxu0 0.0
        %1700 = vmatpush1.msra.mxu0 0.0
        %1701 = vmatprep.subr.mxu0 0.0
        %1702 = vmatpush1.msra.mxu0 0.0
        %1703 = vmatprep.subr.mxu0 0.0
        %1704 = vmatpush1.msra.mxu0 0.0
        %1705 = vmatprep.subr.mxu0 0.0
        %1706 = vmatpush1.msra.mxu0 0.0
        %1707 = vmatprep.subr.mxu0 0.0
        %1708 = vmatpush1.msra.mxu0 0.0
        %1709 = vmatprep.subr.mxu0 0.0
        %1710 = vmatpush1.msra.mxu0 0.0
        %1711 = vmatprep.subr.mxu0 0.0
        %1712 = vmatpush1.msra.mxu0 0.0
        %1713 = vmatprep.subr.mxu0 0.0
        %1714 = vmatpush1.msra.mxu0 0.0
        %1715 = vmatprep.subr.mxu0 0.0
        %1716 = vmatpush1.msra.mxu0 0.0
        %1717 = vmatprep.subr.mxu0 0.0
        %1718 = vmatpush1.msra.mxu0 0.0
        %1719 = vmatprep.subr.mxu0 0.0
        %1720 = vmatpush1.msra.mxu0 0.0
        %1721 = vmatprep.subr.mxu0 0.0
        %1722 = vmatpush1.msra.mxu0 0.0
        %1723 = vmatprep.subr.mxu0 0.0
        %1724 = vmatpush1.msra.mxu0 0.0
        %1725 = vmatprep.subr.mxu0 0.0
        %1726 = vmatpush1.msra.mxu0 0.0
        %1727 = vmatprep.subr.mxu0 0.0
        %1728 = vmatpush1.msra.mxu0 0.0
        %1729 = vmatprep.mubr.f32.mxu0 0.0
        %1730 = vmatmul.mubr.f32.gmra.mrb[0].mxu0 %v1663
        %v1731 = vpop.f32.mrb[0].mxu0
        %v1732 = vadd.f32 0.0, %v1731
        %v1733 = vpop.f32.mrb[0].mxu0
        %1734 = vdwg.mxu0
        %1735 = vrot.lane.b32.xlu0 %v1406, 64
        %v1736 = vpop.permute.xlu0 %1735
        %1737 = vrot.lane.b32.xlu0 %v1334, 64
        %v1738 = vpop.permute.xlu0 %1737
        %v1739 = vsel %vm1407, %v1736, 0
        %v1741 = vsel %vm1407, %v1738, 0
        %1743 = vmatprep.subr.mxu0 0.0
        %1744 = vmatpush1.xpose.msra.mxu0 %v1741
        %1745 = vmatprep.subr.mxu0 0.0
        %1746 = vmatpush1.xpose.msra.mxu0 0.0
        %1747 = vmatprep.subr.mxu0 0.0
        %1748 = vmatpush1.xpose.msra.mxu0 0.0
        %1749 = vmatprep.subr.mxu0 0.0
        %1750 = vmatpush1.xpose.msra.mxu0 0.0
        %1751 = vmatprep.subr.mxu0 0.0
        %1752 = vmatpush1.xpose.msra.mxu0 0.0
        %1753 = vmatprep.subr.mxu0 0.0
        %1754 = vmatpush1.xpose.msra.mxu0 0.0
        %1755 = vmatprep.subr.mxu0 0.0
        %1756 = vmatpush1.xpose.msra.mxu0 0.0
        %1757 = vmatprep.subr.mxu0 0.0
        %1758 = vmatpush1.xpose.msra.mxu0 0.0
        %1759 = vmatprep.subr.mxu0 0.0
        %1760 = vmatpush1.xpose.msra.mxu0 0.0
        %1761 = vmatprep.subr.mxu0 0.0
        %1762 = vmatpush1.xpose.msra.mxu0 0.0
        %1763 = vmatprep.subr.mxu0 0.0
        %1764 = vmatpush1.xpose.msra.mxu0 0.0
        %1765 = vmatprep.subr.mxu0 0.0
        %1766 = vmatpush1.xpose.msra.mxu0 0.0
        %1767 = vmatprep.subr.mxu0 0.0
        %1768 = vmatpush1.xpose.msra.mxu0 0.0
        %1769 = vmatprep.subr.mxu0 0.0
        %1770 = vmatpush1.xpose.msra.mxu0 0.0
        %1771 = vmatprep.subr.mxu0 0.0
        %1772 = vmatpush1.xpose.msra.mxu0 0.0
        %1773 = vmatprep.subr.mxu0 0.0
        %1774 = vmatpush1.xpose.msra.mxu0 0.0
        %1775 = vmatprep.subr.mxu0 0.0
        %1776 = vmatpush1.xpose.msra.mxu0 0.0
        %1777 = vmatprep.subr.mxu0 0.0
        %1778 = vmatpush1.xpose.msra.mxu0 0.0
        %1779 = vmatprep.subr.mxu0 0.0
        %1780 = vmatpush1.xpose.msra.mxu0 0.0
        %1781 = vmatprep.subr.mxu0 0.0
        %1782 = vmatpush1.xpose.msra.mxu0 0.0
        %1783 = vmatprep.subr.mxu0 0.0
        %1784 = vmatpush1.xpose.msra.mxu0 0.0
        %1785 = vmatprep.subr.mxu0 0.0
        %1786 = vmatpush1.xpose.msra.mxu0 0.0
        %1787 = vmatprep.subr.mxu0 0.0
        %1788 = vmatpush1.xpose.msra.mxu0 0.0
        %1789 = vmatprep.subr.mxu0 0.0
        %1790 = vmatpush1.xpose.msra.mxu0 0.0
        %1791 = vmatprep.subr.mxu0 0.0
        %1792 = vmatpush1.xpose.msra.mxu0 0.0
        %1793 = vmatprep.subr.mxu0 0.0
        %1794 = vmatpush1.xpose.msra.mxu0 0.0
        %1795 = vmatprep.subr.mxu0 0.0
        %1796 = vmatpush1.xpose.msra.mxu0 0.0
        %1797 = vmatprep.subr.mxu0 0.0
        %1798 = vmatpush1.xpose.msra.mxu0 0.0
        %1799 = vmatprep.subr.mxu0 0.0
        %1800 = vmatpush1.xpose.msra.mxu0 0.0
        %1801 = vmatprep.subr.mxu0 0.0
        %1802 = vmatpush1.xpose.msra.mxu0 0.0
        %1803 = vmatprep.subr.mxu0 0.0
        %1804 = vmatpush1.xpose.msra.mxu0 0.0
        %1805 = vmatprep.subr.mxu0 0.0
        %1806 = vmatpush1.xpose.msra.mxu0 0.0
        %1807 = vmatprep.mubr.f32.mxu0 0.0
        %1808 = vmatmul.mubr.f32.gmra.mrb[0].mxu0 %v1739
        %v1809 = vpop.f32.mrb[0].mxu0
        %v1810 = vadd.f32 0.0, %v1809
        %v1811 = vpop.f32.mrb[0].mxu0
        %1812 = vdwg.mxu0
        %v1813 = vsel %vm1484, %v1810, -inf
        %1814 = vmax.xlane.f32.xlu0 %v1813
        %v1815 = vpop.xlane.xlu0 %1814
        %v1816 = vsub.f32 %v1810, %v1815
        %v1817 = vmul.f32 %v1816, 1.442695
        %v1818 = vpow.pop %v1817
        %v1819 = vsel %vm1484, %v1818, 0.0
        %1820 = vadd.xlane.f32.xlu0 %v1819
        %v1821 = vpop.xlane.xlu0 %1820
        %v1822 = vrcp.pop %v1821
        %v1823 = vmul.f32 %v1818, %v1822
        %1824 = vrot.lane.b32.xlu0 %v1403, 64
        %v1825 = vpop.permute.xlu0 %1824
        %v1828 = vsel %vm1484, %v1823, 0
        %1830 = vmatprep.subr.mxu0 0.0
        %1831 = vmatpush1.msra.mxu0 %v1825
        %1832 = vmatprep.subr.mxu0 0.0
        %1833 = vmatpush1.msra.mxu0 0.0
        %1834 = vmatprep.subr.mxu0 0.0
        %1835 = vmatpush1.msra.mxu0 0.0
        %1836 = vmatprep.subr.mxu0 0.0
        %1837 = vmatpush1.msra.mxu0 0.0
        %1838 = vmatprep.subr.mxu0 0.0
        %1839 = vmatpush1.msra.mxu0 0.0
        %1840 = vmatprep.subr.mxu0 0.0
        %1841 = vmatpush1.msra.mxu0 0.0
        %1842 = vmatprep.subr.mxu0 0.0
        %1843 = vmatpush1.msra.mxu0 0.0
        %1844 = vmatprep.subr.mxu0 0.0
        %1845 = vmatpush1.msra.mxu0 0.0
        %1846 = vmatprep.subr.mxu0 0.0
        %1847 = vmatpush1.msra.mxu0 0.0
        %1848 = vmatprep.subr.mxu0 0.0
        %1849 = vmatpush1.msra.mxu0 0.0
        %1850 = vmatprep.subr.mxu0 0.0
        %1851 = vmatpush1.msra.mxu0 0.0
        %1852 = vmatprep.subr.mxu0 0.0
        %1853 = vmatpush1.msra.mxu0 0.0
        %1854 = vmatprep.subr.mxu0 0.0
        %1855 = vmatpush1.msra.mxu0 0.0
        %1856 = vmatprep.subr.mxu0 0.0
        %1857 = vmatpush1.msra.mxu0 0.0
        %1858 = vmatprep.subr.mxu0 0.0
        %1859 = vmatpush1.msra.mxu0 0.0
        %1860 = vmatprep.subr.mxu0 0.0
        %1861 = vmatpush1.msra.mxu0 0.0
        %1862 = vmatprep.subr.mxu0 0.0
        %1863 = vmatpush1.msra.mxu0 0.0
        %1864 = vmatprep.subr.mxu0 0.0
        %1865 = vmatpush1.msra.mxu0 0.0
        %1866 = vmatprep.subr.mxu0 0.0
        %1867 = vmatpush1.msra.mxu0 0.0
        %1868 = vmatprep.subr.mxu0 0.0
        %1869 = vmatpush1.msra.mxu0 0.0
        %1870 = vmatprep.subr.mxu0 0.0
        %1871 = vmatpush1.msra.mxu0 0.0
        %1872 = vmatprep.subr.mxu0 0.0
        %1873 = vmatpush1.msra.mxu0 0.0
        %1874 = vmatprep.subr.mxu0 0.0
        %1875 = vmatpush1.msra.mxu0 0.0
        %1876 = vmatprep.subr.mxu0 0.0
        %1877 = vmatpush1.msra.mxu0 0.0
        %1878 = vmatprep.subr.mxu0 0.0
        %1879 = vmatpush1.msra.mxu0 0.0
        %1880 = vmatprep.subr.mxu0 0.0
        %1881 = vmatpush1.msra.mxu0 0.0
        %1882 = vmatprep.subr.mxu0 0.0
        %1883 = vmatpush1.msra.mxu0 0.0
        %1884 = vmatprep.subr.mxu0 0.0
        %1885 = vmatpush1.msra.mxu0 0.0
        %1886 = vmatprep.subr.mxu0 0.0
        %1887 = vmatpush1.msra.mxu0 0.0
        %1888 = vmatprep.subr.mxu0 0.0
        %1889 = vmatpush1.msra.mxu0 0.0
        %1890 = vmatprep.subr.mxu0 0.0
        %1891 = vmatpush1.msra.mxu0 0.0
        %1892 = vmatprep.subr.mxu0 0.0
        %1893 = vmatpush1.msra.mxu0 0.0
        %1894 = vmatprep.mubr.f32.mxu0 0.0
        %1895 = vmatmul.mubr.f32.gmra.mrb[0].mxu0 %v1828
        %v1896 = vpop.f32.mrb[0].mxu0
        %v1897 = vadd.f32 0.0, %v1896
        %v1898 = vpop.f32.mrb[0].mxu0
        %1899 = vdwg.mxu0
        %1900 = vrot.lane.b32.xlu0 %v1406, 32
        %v1901 = vpop.permute.xlu0 %1900
        %1902 = vrot.lane.b32.xlu0 %v1334, 32
        %v1903 = vpop.permute.xlu0 %1902
        %v1904 = vsel %vm1407, %v1901, 0
        %v1906 = vsel %vm1407, %v1903, 0
        %1908 = vmatprep.subr.mxu0 0.0
        %1909 = vmatpush1.xpose.msra.mxu0 %v1906
        %1910 = vmatprep.subr.mxu0 0.0
        %1911 = vmatpush1.xpose.msra.mxu0 0.0
        %1912 = vmatprep.subr.mxu0 0.0
        %1913 = vmatpush1.xpose.msra.mxu0 0.0
        %1914 = vmatprep.subr.mxu0 0.0
        %1915 = vmatpush1.xpose.msra.mxu0 0.0
        %1916 = vmatprep.subr.mxu0 0.0
        %1917 = vmatpush1.xpose.msra.mxu0 0.0
        %1918 = vmatprep.subr.mxu0 0.0
        %1919 = vmatpush1.xpose.msra.mxu0 0.0
        %1920 = vmatprep.subr.mxu0 0.0
        %1921 = vmatpush1.xpose.msra.mxu0 0.0
        %1922 = vmatprep.subr.mxu0 0.0
        %1923 = vmatpush1.xpose.msra.mxu0 0.0
        %1924 = vmatprep.subr.mxu0 0.0
        %1925 = vmatpush1.xpose.msra.mxu0 0.0
        %1926 = vmatprep.subr.mxu0 0.0
        %1927 = vmatpush1.xpose.msra.mxu0 0.0
        %1928 = vmatprep.subr.mxu0 0.0
        %1929 = vmatpush1.xpose.msra.mxu0 0.0
        %1930 = vmatprep.subr.mxu0 0.0
        %1931 = vmatpush1.xpose.msra.mxu0 0.0
        %1932 = vmatprep.subr.mxu0 0.0
        %1933 = vmatpush1.xpose.msra.mxu0 0.0
        %1934 = vmatprep.subr.mxu0 0.0
        %1935 = vmatpush1.xpose.msra.mxu0 0.0
        %1936 = vmatprep.subr.mxu0 0.0
        %1937 = vmatpush1.xpose.msra.mxu0 0.0
        %1938 = vmatprep.subr.mxu0 0.0
        %1939 = vmatpush1.xpose.msra.mxu0 0.0
        %1940 = vmatprep.subr.mxu0 0.0
        %1941 = vmatpush1.xpose.msra.mxu0 0.0
        %1942 = vmatprep.subr.mxu0 0.0
        %1943 = vmatpush1.xpose.msra.mxu0 0.0
        %1944 = vmatprep.subr.mxu0 0.0
        %1945 = vmatpush1.xpose.msra.mxu0 0.0
        %1946 = vmatprep.subr.mxu0 0.0
        %1947 = vmatpush1.xpose.msra.mxu0 0.0
        %1948 = vmatprep.subr.mxu0 0.0
        %1949 = vmatpush1.xpose.msra.mxu0 0.0
        %1950 = vmatprep.subr.mxu0 0.0
        %1951 = vmatpush1.xpose.msra.mxu0 0.0
        %1952 = vmatprep.subr.mxu0 0.0
        %1953 = vmatpush1.xpose.msra.mxu0 0.0
        %1954 = vmatprep.subr.mxu0 0.0
        %1955 = vmatpush1.xpose.msra.mxu0 0.0
        %1956 = vmatprep.subr.mxu0 0.0
        %1957 = vmatpush1.xpose.msra.mxu0 0.0
        %1958 = vmatprep.subr.mxu0 0.0
        %1959 = vmatpush1.xpose.msra.mxu0 0.0
        %1960 = vmatprep.subr.mxu0 0.0
        %1961 = vmatpush1.xpose.msra.mxu0 0.0
        %1962 = vmatprep.subr.mxu0 0.0
        %1963 = vmatpush1.xpose.msra.mxu0 0.0
        %1964 = vmatprep.subr.mxu0 0.0
        %1965 = vmatpush1.xpose.msra.mxu0 0.0
        %1966 = vmatprep.subr.mxu0 0.0
        %1967 = vmatpush1.xpose.msra.mxu0 0.0
        %1968 = vmatprep.subr.mxu0 0.0
        %1969 = vmatpush1.xpose.msra.mxu0 0.0
        %1970 = vmatprep.subr.mxu0 0.0
        %1971 = vmatpush1.xpose.msra.mxu0 0.0
        %1972 = vmatprep.mubr.f32.mxu0 0.0
        %1973 = vmatmul.mubr.f32.gmra.mrb[0].mxu0 %v1904
        %v1974 = vpop.f32.mrb[0].mxu0
        %v1975 = vadd.f32 0.0, %v1974
        %v1976 = vpop.f32.mrb[0].mxu0
        %1977 = vdwg.mxu0
        %v1978 = vsel %vm1484, %v1975, -inf
        %1979 = vmax.xlane.f32.xlu0 %v1978
        %v1980 = vpop.xlane.xlu0 %1979
        %v1981 = vsub.f32 %v1975, %v1980
        %v1982 = vmul.f32 %v1981, 1.442695
        %v1983 = vpow.pop %v1982
        %v1984 = vsel %vm1484, %v1983, 0.0
        %1985 = vadd.xlane.f32.xlu0 %v1984
        %v1986 = vpop.xlane.xlu0 %1985
        %v1987 = vrcp.pop %v1986
        %v1988 = vmul.f32 %v1983, %v1987
        %1989 = vrot.lane.b32.xlu0 %v1403, 32
        %v1990 = vpop.permute.xlu0 %1989
        %v1993 = vsel %vm1484, %v1988, 0
        %1995 = vmatprep.subr.mxu0 0.0
        %1996 = vmatpush1.msra.mxu0 %v1990
        %1997 = vmatprep.subr.mxu0 0.0
        %1998 = vmatpush1.msra.mxu0 0.0
        %1999 = vmatprep.subr.mxu0 0.0
        %2000 = vmatpush1.msra.mxu0 0.0
        %2001 = vmatprep.subr.mxu0 0.0
        %2002 = vmatpush1.msra.mxu0 0.0
        %2003 = vmatprep.subr.mxu0 0.0
        %2004 = vmatpush1.msra.mxu0 0.0
        %2005 = vmatprep.subr.mxu0 0.0
        %2006 = vmatpush1.msra.mxu0 0.0
        %2007 = vmatprep.subr.mxu0 0.0
        %2008 = vmatpush1.msra.mxu0 0.0
        %2009 = vmatprep.subr.mxu0 0.0
        %2010 = vmatpush1.msra.mxu0 0.0
        %2011 = vmatprep.subr.mxu0 0.0
        %2012 = vmatpush1.msra.mxu0 0.0
        %2013 = vmatprep.subr.mxu0 0.0
        %2014 = vmatpush1.msra.mxu0 0.0
        %2015 = vmatprep.subr.mxu0 0.0
        %2016 = vmatpush1.msra.mxu0 0.0
        %2017 = vmatprep.subr.mxu0 0.0
        %2018 = vmatpush1.msra.mxu0 0.0
        %2019 = vmatprep.subr.mxu0 0.0
        %2020 = vmatpush1.msra.mxu0 0.0
        %2021 = vmatprep.subr.mxu0 0.0
        %2022 = vmatpush1.msra.mxu0 0.0
        %2023 = vmatprep.subr.mxu0 0.0
        %2024 = vmatpush1.msra.mxu0 0.0
        %2025 = vmatprep.subr.mxu0 0.0
        %2026 = vmatpush1.msra.mxu0 0.0
        %2027 = vmatprep.subr.mxu0 0.0
        %2028 = vmatpush1.msra.mxu0 0.0
        %2029 = vmatprep.subr.mxu0 0.0
        %2030 = vmatpush1.msra.mxu0 0.0
        %2031 = vmatprep.subr.mxu0 0.0
        %2032 = vmatpush1.msra.mxu0 0.0
        %2033 = vmatprep.subr.mxu0 0.0
        %2034 = vmatpush1.msra.mxu0 0.0
        %2035 = vmatprep.subr.mxu0 0.0
        %2036 = vmatpush1.msra.mxu0 0.0
        %2037 = vmatprep.subr.mxu0 0.0
        %2038 = vmatpush1.msra.mxu0 0.0
        %2039 = vmatprep.subr.mxu0 0.0
        %2040 = vmatpush1.msra.mxu0 0.0
        %2041 = vmatprep.subr.mxu0 0.0
        %2042 = vmatpush1.msra.mxu0 0.0
        %2043 = vmatprep.subr.mxu0 0.0
        %2044 = vmatpush1.msra.mxu0 0.0
        %2045 = vmatprep.subr.mxu0 0.0
        %2046 = vmatpush1.msra.mxu0 0.0
        %2047 = vmatprep.subr.mxu0 0.0
        %2048 = vmatpush1.msra.mxu0 0.0
        %2049 = vmatprep.subr.mxu0 0.0
        %2050 = vmatpush1.msra.mxu0 0.0
        %2051 = vmatprep.subr.mxu0 0.0
        %2052 = vmatpush1.msra.mxu0 0.0
        %2053 = vmatprep.subr.mxu0 0.0
        %2054 = vmatpush1.msra.mxu0 0.0
        %2055 = vmatprep.subr.mxu0 0.0
        %2056 = vmatpush1.msra.mxu0 0.0
        %2057 = vmatprep.subr.mxu0 0.0
        %2058 = vmatpush1.msra.mxu0 0.0
        %2059 = vmatprep.mubr.f32.mxu0 0.0
        %2060 = vmatmul.mubr.f32.gmra.mrb[0].mxu0 %v1993
        %v2061 = vpop.f32.mrb[0].mxu0
        %v2062 = vadd.f32 0.0, %v2061
        %v2063 = vpop.f32.mrb[0].mxu0
        %2064 = vdwg.mxu0
        %2066 = vrot.lane.b32.xlu0 %v1732, 32
        %v2067 = vpop.permute.xlu0 %2066
        %2070 = vrot.lane.b32.xlu0 %v1897, 64
        %v2071 = vpop.permute.xlu0 %2070
        %2074 = vrot.lane.b32.xlu0 %v2062, 96
        %v2075 = vpop.permute.xlu0 %2074
        %v2077 = vsel %vm1407, %v1566, %v2067
        %vm2078 = vcmask 523264
        %v2079 = vsel %vm2078, %v2077, %v2071
        %vm2080 = vcmask 785408
        %v2081 = vsel %vm2080, %v2079, %v2075
        %v2082 = vld [vmem:[%s911] sm:$0xff]
        %v2083 = vld [vmem:[%s911 + $0x8] sm:$0xff]
        %v2084 = vld [vmem:[%s911 + $0x10] sm:$0xff]
        %v2085 = vld [vmem:[%s911 + $0x18] sm:$0xff]
        %v2086 = vld [vmem:[%s911 + $0x20] sm:$0xff]
        %v2087 = vld [vmem:[%s911 + $0x28] sm:$0xff]
        %v2088 = vld [vmem:[%s911 + $0x30] sm:$0xff]
        %v2089 = vld [vmem:[%s911 + $0x38] sm:$0xff]
        %v2090 = vld [vmem:[%s911 + $0x40] sm:$0xff]
        %v2091 = vld [vmem:[%s911 + $0x48] sm:$0xff]
        %v2092 = vld [vmem:[%s911 + $0x50] sm:$0xff]
        %v2093 = vld [vmem:[%s911 + $0x58] sm:$0xff]
        %v2094 = vld [vmem:[%s911 + $0x60] sm:$0xff]
        %v2095 = vld [vmem:[%s911 + $0x68] sm:$0xff]
        %v2096 = vld [vmem:[%s911 + $0x70] sm:$0xff]
        %v2097 = vld [vmem:[%s911 + $0x78] sm:$0xff]
        %v2098 = vld [vmem:[%s1050] sm:$0x1]
        %v2100 = vlaneseq
        %v2101 = vshrl.u32 %v2100, 7
        %v2102 = vsub.s32 0, %v2101
        %v2103 = vrot.slane %v2098, %v2102
        %2105 = vmatprep.subr.mxu0 0.0
        %2106 = vmatpush1.msra.mxu0 %v2082
        %2107 = vmatprep.subr.mxu0 0.0
        %2108 = vmatpush1.msra.mxu0 %v2083
        %2109 = vmatprep.subr.mxu0 0.0
        %2110 = vmatpush1.msra.mxu0 %v2084
        %2111 = vmatprep.subr.mxu0 0.0
        %2112 = vmatpush1.msra.mxu0 %v2085
        %2113 = vmatprep.subr.mxu0 0.0
        %2114 = vmatpush1.msra.mxu0 %v2086
        %2115 = vmatprep.subr.mxu0 0.0
        %2116 = vmatpush1.msra.mxu0 %v2087
        %2117 = vmatprep.subr.mxu0 0.0
        %2118 = vmatpush1.msra.mxu0 %v2088
        %2119 = vmatprep.subr.mxu0 0.0
        %2120 = vmatpush1.msra.mxu0 %v2089
        %2121 = vmatprep.subr.mxu0 0.0
        %2122 = vmatpush1.msra.mxu0 %v2090
        %2123 = vmatprep.subr.mxu0 0.0
        %2124 = vmatpush1.msra.mxu0 %v2091
        %2125 = vmatprep.subr.mxu0 0.0
        %2126 = vmatpush1.msra.mxu0 %v2092
        %2127 = vmatprep.subr.mxu0 0.0
        %2128 = vmatpush1.msra.mxu0 %v2093
        %2129 = vmatprep.subr.mxu0 0.0
        %2130 = vmatpush1.msra.mxu0 %v2094
        %2131 = vmatprep.subr.mxu0 0.0
        %2132 = vmatpush1.msra.mxu0 %v2095
        %2133 = vmatprep.subr.mxu0 0.0
        %2134 = vmatpush1.msra.mxu0 %v2096
        %2135 = vmatprep.subr.mxu0 0.0
        %2136 = vmatpush1.msra.mxu0 %v2097
        %2137 = vmatprep.subr.mxu0 0.0
        %2138 = vmatpush1.msra.mxu0 0.0
        %2139 = vmatprep.subr.mxu0 0.0
        %2140 = vmatpush1.msra.mxu0 0.0
        %2141 = vmatprep.subr.mxu0 0.0
        %2142 = vmatpush1.msra.mxu0 0.0
        %2143 = vmatprep.subr.mxu0 0.0
        %2144 = vmatpush1.msra.mxu0 0.0
        %2145 = vmatprep.subr.mxu0 0.0
        %2146 = vmatpush1.msra.mxu0 0.0
        %2147 = vmatprep.subr.mxu0 0.0
        %2148 = vmatpush1.msra.mxu0 0.0
        %2149 = vmatprep.subr.mxu0 0.0
        %2150 = vmatpush1.msra.mxu0 0.0
        %2151 = vmatprep.subr.mxu0 0.0
        %2152 = vmatpush1.msra.mxu0 0.0
        %2153 = vmatprep.subr.mxu0 0.0
        %2154 = vmatpush1.msra.mxu0 0.0
        %2155 = vmatprep.subr.mxu0 0.0
        %2156 = vmatpush1.msra.mxu0 0.0
        %2157 = vmatprep.subr.mxu0 0.0
        %2158 = vmatpush1.msra.mxu0 0.0
        %2159 = vmatprep.subr.mxu0 0.0
        %2160 = vmatpush1.msra.mxu0 0.0
        %2161 = vmatprep.subr.mxu0 0.0
        %2162 = vmatpush1.msra.mxu0 0.0
        %2163 = vmatprep.subr.mxu0 0.0
        %2164 = vmatpush1.msra.mxu0 0.0
        %2165 = vmatprep.subr.mxu0 0.0
        %2166 = vmatpush1.msra.mxu0 0.0
        %2167 = vmatprep.subr.mxu0 0.0
        %2168 = vmatpush1.msra.mxu0 0.0
        %2169 = vmatprep.mubr.f32.mxu0 0.0
        %2170 = vmatmul.mubr.f32.gmra.mrb[0].mxu0 %v2081
        %v2171 = vpop.f32.mrb[0].mxu0
        %v2172 = vadd.f32 %v2103, %v2171
        %v2173 = vpop.f32.mrb[0].mxu0
        %2174 = vdwg.mxu0
        %v2175 = vadd.f32 %v1199, %v2172
        %v2176 = vld [vmem:[%s1053] sm:$0x1]
        %v2177 = vld [vmem:[%s1056] sm:$0x1]
        %2178 = vadd.xlane.f32.xlu0 %v2175
        %v2179 = vpop.xlane.xlu0 %2178
        %v2180 = vrcp.pop 128.0
        %v2181 = vmul.f32 %v2179, %v2180
        %v2182 = vsub.f32 %v2175, %v2181
        %v2183 = vmul.f32 %v2182, %v2182
        %2184 = vadd.xlane.f32.xlu0 %v2183
        %v2185 = vpop.xlane.xlu0 %2184
        %v2186 = vmul.f32 %v2185, %v2180
        %v2187 = vadd.f32 %v2186, 1e-05
        %v2188 = vrsqrt.pop %v2187
        %v2189 = vmul.f32 %v2182, %v2188
        %v2191 = vlaneseq
        %v2192 = vshrl.u32 %v2191, 7
        %v2193 = vsub.s32 0, %v2192
        %v2194 = vrot.slane %v2176, %v2193
        %v2196 = vmul.f32 %v2189, %v2194
        %v2198 = vlaneseq
        %v2199 = vshrl.u32 %v2198, 7
        %v2200 = vsub.s32 0, %v2199
        %v2201 = vrot.slane %v2177, %v2200
        %v2203 = vadd.f32 %v2196, %v2201
        %v2204 = vld [vmem:[%s920] sm:$0xff]
        %v2205 = vld [vmem:[%s920 + $0x8] sm:$0xff]
        %v2206 = vld [vmem:[%s920 + $0x10] sm:$0xff]
        %v2207 = vld [vmem:[%s920 + $0x18] sm:$0xff]
        %v2208 = vld [vmem:[%s920 + $0x20] sm:$0xff]
        %v2209 = vld [vmem:[%s920 + $0x28] sm:$0xff]
        %v2210 = vld [vmem:[%s920 + $0x30] sm:$0xff]
        %v2211 = vld [vmem:[%s920 + $0x38] sm:$0xff]
        %v2212 = vld [vmem:[%s920 + $0x40] sm:$0xff]
        %v2213 = vld [vmem:[%s920 + $0x48] sm:$0xff]
        %v2214 = vld [vmem:[%s920 + $0x50] sm:$0xff]
        %v2215 = vld [vmem:[%s920 + $0x58] sm:$0xff]
        %v2216 = vld [vmem:[%s920 + $0x60] sm:$0xff]
        %v2217 = vld [vmem:[%s920 + $0x68] sm:$0xff]
        %v2218 = vld [vmem:[%s920 + $0x70] sm:$0xff]
        %v2219 = vld [vmem:[%s920 + $0x78] sm:$0xff]
        %v2220 = vld [vmem:[%s920 + $0x80] sm:$0xff]
        %v2221 = vld [vmem:[%s920 + $0x88] sm:$0xff]
        %v2222 = vld [vmem:[%s920 + $0x90] sm:$0xff]
        %v2223 = vld [vmem:[%s920 + $0x98] sm:$0xff]
        %v2224 = vld [vmem:[%s920 + $0xa0] sm:$0xff]
        %v2225 = vld [vmem:[%s920 + $0xa8] sm:$0xff]
        %v2226 = vld [vmem:[%s920 + $0xb0] sm:$0xff]
        %v2227 = vld [vmem:[%s920 + $0xb8] sm:$0xff]
        %v2228 = vld [vmem:[%s920 + $0xc0] sm:$0xff]
        %v2229 = vld [vmem:[%s920 + $0xc8] sm:$0xff]
        %v2230 = vld [vmem:[%s920 + $0xd0] sm:$0xff]
        %v2231 = vld [vmem:[%s920 + $0xd8] sm:$0xff]
        %v2232 = vld [vmem:[%s920 + $0xe0] sm:$0xff]
        %v2233 = vld [vmem:[%s920 + $0xe8] sm:$0xff]
        %v2234 = vld [vmem:[%s920 + $0xf0] sm:$0xff]
        %v2235 = vld [vmem:[%s920 + $0xf8] sm:$0xff]
        %v2236 = vld [vmem:[%s920 + $0x100] sm:$0xff]
        %v2237 = vld [vmem:[%s920 + $0x108] sm:$0xff]
        %v2238 = vld [vmem:[%s920 + $0x110] sm:$0xff]
        %v2239 = vld [vmem:[%s920 + $0x118] sm:$0xff]
        %v2240 = vld [vmem:[%s920 + $0x120] sm:$0xff]
        %v2241 = vld [vmem:[%s920 + $0x128] sm:$0xff]
        %v2242 = vld [vmem:[%s920 + $0x130] sm:$0xff]
        %v2243 = vld [vmem:[%s920 + $0x138] sm:$0xff]
        %v2244 = vld [vmem:[%s920 + $0x140] sm:$0xff]
        %v2245 = vld [vmem:[%s920 + $0x148] sm:$0xff]
        %v2246 = vld [vmem:[%s920 + $0x150] sm:$0xff]
        %v2247 = vld [vmem:[%s920 + $0x158] sm:$0xff]
        %v2248 = vld [vmem:[%s920 + $0x160] sm:$0xff]
        %v2249 = vld [vmem:[%s920 + $0x168] sm:$0xff]
        %v2250 = vld [vmem:[%s920 + $0x170] sm:$0xff]
        %v2251 = vld [vmem:[%s920 + $0x178] sm:$0xff]
        %v2252 = vld [vmem:[%s920 + $0x180] sm:$0xff]
        %v2253 = vld [vmem:[%s920 + $0x188] sm:$0xff]
        %v2254 = vld [vmem:[%s920 + $0x190] sm:$0xff]
        %v2255 = vld [vmem:[%s920 + $0x198] sm:$0xff]
        %v2256 = vld [vmem:[%s920 + $0x1a0] sm:$0xff]
        %v2257 = vld [vmem:[%s920 + $0x1a8] sm:$0xff]
        %v2258 = vld [vmem:[%s920 + $0x1b0] sm:$0xff]
        %v2259 = vld [vmem:[%s920 + $0x1b8] sm:$0xff]
        %v2260 = vld [vmem:[%s920 + $0x1c0] sm:$0xff]
        %v2261 = vld [vmem:[%s920 + $0x1c8] sm:$0xff]
        %v2262 = vld [vmem:[%s920 + $0x1d0] sm:$0xff]
        %v2263 = vld [vmem:[%s920 + $0x1d8] sm:$0xff]
        %v2264 = vld [vmem:[%s920 + $0x1e0] sm:$0xff]
        %v2265 = vld [vmem:[%s920 + $0x1e8] sm:$0xff]
        %v2266 = vld [vmem:[%s920 + $0x1f0] sm:$0xff]
        %v2267 = vld [vmem:[%s920 + $0x1f8] sm:$0xff]
        %v2268 = vld [vmem:[%s1060] sm:$0xf]
        %v2270 = vlaneseq
        %v2271 = vshrl.u32 %v2270, 7
        %v2272 = vsub.s32 0, %v2271
        %v2273 = vrot.slane %v2268, %v2272
        %v2274 = vlaneseq
        %v2275 = vshrl.u32 %v2274, 7
        %v2276 = vsub.s32 1, %v2275
        %v2277 = vrot.slane %v2268, %v2276
        %v2278 = vlaneseq
        %v2279 = vshrl.u32 %v2278, 7
        %v2280 = vsub.s32 2, %v2279
        %v2281 = vrot.slane %v2268, %v2280
        %v2282 = vlaneseq
        %v2283 = vshrl.u32 %v2282, 7
        %v2284 = vsub.s32 3, %v2283
        %v2285 = vrot.slane %v2268, %v2284
        %2290 = vmatprep.subr.mxu0 %v2205
        %2291 = vmatpush1.msra.mxu0 %v2204
        %2292 = vmatprep.subr.mxu0 %v2209
        %2293 = vmatpush1.msra.mxu0 %v2208
        %2294 = vmatprep.subr.mxu0 %v2213
        %2295 = vmatpush1.msra.mxu0 %v2212
        %2296 = vmatprep.subr.mxu0 %v2217
        %2297 = vmatpush1.msra.mxu0 %v2216
        %2298 = vmatprep.subr.mxu0 %v2221
        %2299 = vmatpush1.msra.mxu0 %v2220
        %2300 = vmatprep.subr.mxu0 %v2225
        %2301 = vmatpush1.msra.mxu0 %v2224
        %2302 = vmatprep.subr.mxu0 %v2229
        %2303 = vmatpush1.msra.mxu0 %v2228
        %2304 = vmatprep.subr.mxu0 %v2233
        %2305 = vmatpush1.msra.mxu0 %v2232
        %2306 = vmatprep.subr.mxu0 %v2237
        %2307 = vmatpush1.msra.mxu0 %v2236
        %2308 = vmatprep.subr.mxu0 %v2241
        %2309 = vmatpush1.msra.mxu0 %v2240
        %2310 = vmatprep.subr.mxu0 %v2245
        %2311 = vmatpush1.msra.mxu0 %v2244
        %2312 = vmatprep.subr.mxu0 %v2249
        %2313 = vmatpush1.msra.mxu0 %v2248
        %2314 = vmatprep.subr.mxu0 %v2253
        %2315 = vmatpush1.msra.mxu0 %v2252
        %2316 = vmatprep.subr.mxu0 %v2257
        %2317 = vmatpush1.msra.mxu0 %v2256
        %2318 = vmatprep.subr.mxu0 %v2261
        %2319 = vmatpush1.msra.mxu0 %v2260
        %2320 = vmatprep.subr.mxu0 %v2265
        %2321 = vmatpush1.msra.mxu0 %v2264
        %2322 = vmatprep.subr.mxu0 0.0
        %2323 = vmatpush1.msra.mxu0 0.0
        %2324 = vmatprep.subr.mxu0 0.0
        %2325 = vmatpush1.msra.mxu0 0.0
        %2326 = vmatprep.subr.mxu0 0.0
        %2327 = vmatpush1.msra.mxu0 0.0
        %2328 = vmatprep.subr.mxu0 0.0
        %2329 = vmatpush1.msra.mxu0 0.0
        %2330 = vmatprep.subr.mxu0 0.0
        %2331 = vmatpush1.msra.mxu0 0.0
        %2332 = vmatprep.subr.mxu0 0.0
        %2333 = vmatpush1.msra.mxu0 0.0
        %2334 = vmatprep.subr.mxu0 0.0
        %2335 = vmatpush1.msra.mxu0 0.0
        %2336 = vmatprep.subr.mxu0 0.0
        %2337 = vmatpush1.msra.mxu0 0.0
        %2338 = vmatprep.subr.mxu0 0.0
        %2339 = vmatpush1.msra.mxu0 0.0
        %2340 = vmatprep.subr.mxu0 0.0
        %2341 = vmatpush1.msra.mxu0 0.0
        %2342 = vmatprep.subr.mxu0 0.0
        %2343 = vmatpush1.msra.mxu0 0.0
        %2344 = vmatprep.subr.mxu0 0.0
        %2345 = vmatpush1.msra.mxu0 0.0
        %2346 = vmatprep.subr.mxu0 0.0
        %2347 = vmatpush1.msra.mxu0 0.0
        %2348 = vmatprep.subr.mxu0 0.0
        %2349 = vmatpush1.msra.mxu0 0.0
        %2350 = vmatprep.subr.mxu0 0.0
        %2351 = vmatpush1.msra.mxu0 0.0
        %2352 = vmatprep.subr.mxu0 0.0
        %2353 = vmatpush1.msra.mxu0 0.0
        %2354 = vmatprep.mubr.f32.mxu0 0.0
        %2355 = vmatmul.mubr.f32.gmra.mrb[0].mxu0 %v2203
        %v2356 = vpop.f32.mrb[0].mxu0
        %v2357 = vadd.f32 %v2273, %v2356
        %v2358 = vpop.f32.mrb[0].mxu0
        %v2359 = vadd.f32 %v2277, %v2358
        %2360 = vdwg.mxu0
        %2361 = vmatprep.subr.mxu0 %v2207
        %2362 = vmatpush1.msra.mxu0 %v2206
        %2363 = vmatprep.subr.mxu0 %v2211
        %2364 = vmatpush1.msra.mxu0 %v2210
        %2365 = vmatprep.subr.mxu0 %v2215
        %2366 = vmatpush1.msra.mxu0 %v2214
        %2367 = vmatprep.subr.mxu0 %v2219
        %2368 = vmatpush1.msra.mxu0 %v2218
        %2369 = vmatprep.subr.mxu0 %v2223
        %2370 = vmatpush1.msra.mxu0 %v2222
        %2371 = vmatprep.subr.mxu0 %v2227
        %2372 = vmatpush1.msra.mxu0 %v2226
        %2373 = vmatprep.subr.mxu0 %v2231
        %2374 = vmatpush1.msra.mxu0 %v2230
        %2375 = vmatprep.subr.mxu0 %v2235
        %2376 = vmatpush1.msra.mxu0 %v2234
        %2377 = vmatprep.subr.mxu0 %v2239
        %2378 = vmatpush1.msra.mxu0 %v2238
        %2379 = vmatprep.subr.mxu0 %v2243
        %2380 = vmatpush1.msra.mxu0 %v2242
        %2381 = vmatprep.subr.mxu0 %v2247
        %2382 = vmatpush1.msra.mxu0 %v2246
        %2383 = vmatprep.subr.mxu0 %v2251
        %2384 = vmatpush1.msra.mxu0 %v2250
        %2385 = vmatprep.subr.mxu0 %v2255
        %2386 = vmatpush1.msra.mxu0 %v2254
        %2387 = vmatprep.subr.mxu0 %v2259
        %2388 = vmatpush1.msra.mxu0 %v2258
        %2389 = vmatprep.subr.mxu0 %v2263
        %2390 = vmatpush1.msra.mxu0 %v2262
        %2391 = vmatprep.subr.mxu0 %v2267
        %2392 = vmatpush1.msra.mxu0 %v2266
        %2393 = vmatprep.subr.mxu0 0.0
        %2394 = vmatpush1.msra.mxu0 0.0
        %2395 = vmatprep.subr.mxu0 0.0
        %2396 = vmatpush1.msra.mxu0 0.0
        %2397 = vmatprep.subr.mxu0 0.0
        %2398 = vmatpush1.msra.mxu0 0.0
        %2399 = vmatprep.subr.mxu0 0.0
        %2400 = vmatpush1.msra.mxu0 0.0
        %2401 = vmatprep.subr.mxu0 0.0
        %2402 = vmatpush1.msra.mxu0 0.0
        %2403 = vmatprep.subr.mxu0 0.0
        %2404 = vmatpush1.msra.mxu0 0.0
        %2405 = vmatprep.subr.mxu0 0.0
        %2406 = vmatpush1.msra.mxu0 0.0
        %2407 = vmatprep.subr.mxu0 0.0
        %2408 = vmatpush1.msra.mxu0 0.0
        %2409 = vmatprep.subr.mxu0 0.0
        %2410 = vmatpush1.msra.mxu0 0.0
        %2411 = vmatprep.subr.mxu0 0.0
        %2412 = vmatpush1.msra.mxu0 0.0
        %2413 = vmatprep.subr.mxu0 0.0
        %2414 = vmatpush1.msra.mxu0 0.0
        %2415 = vmatprep.subr.mxu0 0.0
        %2416 = vmatpush1.msra.mxu0 0.0
        %2417 = vmatprep.subr.mxu0 0.0
        %2418 = vmatpush1.msra.mxu0 0.0
        %2419 = vmatprep.subr.mxu0 0.0
        %2420 = vmatpush1.msra.mxu0 0.0
        %2421 = vmatprep.subr.mxu0 0.0
        %2422 = vmatpush1.msra.mxu0 0.0
        %2423 = vmatprep.subr.mxu0 0.0
        %2424 = vmatpush1.msra.mxu0 0.0
        %2425 = vmatprep.mubr.f32.mxu0 0.0
        %2426 = vmatmul.mubr.f32.gmra.mrb[0].mxu0 %v2203
        %v2427 = vpop.f32.mrb[0].mxu0
        %v2428 = vadd.f32 %v2281, %v2427
        %v2429 = vpop.f32.mrb[0].mxu0
        %v2430 = vadd.f32 %v2285, %v2429
        %2431 = vdwg.mxu0
        %v2432 = vmul.f32 %v2357, 0.5
        %v2433 = vmul.f32 %v2359, 0.5
        %v2434 = vmul.f32 %v2428, 0.5
        %v2435 = vmul.f32 %v2430, 0.5
        %v2436 = vmul.f32 %v2357, 0.044715
        %v2437 = vmul.f32 %v2359, 0.044715
        %v2438 = vmul.f32 %v2428, 0.044715
        %v2439 = vmul.f32 %v2430, 0.044715
        %v2440 = vmul.f32 %v2436, %v2357
        %v2441 = vmul.f32 %v2437, %v2359
        %v2442 = vmul.f32 %v2438, %v2428
        %v2443 = vmul.f32 %v2439, %v2430
        %v2444 = vmul.f32 %v2440, %v2357
        %v2445 = vmul.f32 %v2441, %v2359
        %v2446 = vmul.f32 %v2442, %v2428
        %v2447 = vmul.f32 %v2443, %v2430
        %v2448 = vadd.f32 %v2357, %v2444
        %v2449 = vadd.f32 %v2359, %v2445
        %v2450 = vadd.f32 %v2428, %v2446
        %v2451 = vadd.f32 %v2430, %v2447
        %v2452 = vmul.f32 %v2448, 0.7978846
        %v2453 = vmul.f32 %v2449, 0.7978846
        %v2454 = vmul.f32 %v2450, 0.7978846
        %v2455 = vmul.f32 %v2451, 0.7978846
        %v2456 = vtanh.pop %v2452
        %v2457 = vtanh.pop %v2453
        %v2458 = vtanh.pop %v2454
        %v2459 = vtanh.pop %v2455
        %v2460 = vadd.f32 %v2456, 1.0
        %v2461 = vadd.f32 %v2457, 1.0
        %v2462 = vadd.f32 %v2458, 1.0
        %v2463 = vadd.f32 %v2459, 1.0
        %v2464 = vmul.f32 %v2432, %v2460
        %v2465 = vmul.f32 %v2433, %v2461
        %v2466 = vmul.f32 %v2434, %v2462
        %v2467 = vmul.f32 %v2435, %v2463
        %v2468 = vld [vmem:[%s929] sm:$0xff]
        %v2469 = vld [vmem:[%s929 + $0x8] sm:$0xff]
        %v2470 = vld [vmem:[%s929 + $0x10] sm:$0xff]
        %v2471 = vld [vmem:[%s929 + $0x18] sm:$0xff]
        %v2472 = vld [vmem:[%s929 + $0x20] sm:$0xff]
        %v2473 = vld [vmem:[%s929 + $0x28] sm:$0xff]
        %v2474 = vld [vmem:[%s929 + $0x30] sm:$0xff]
        %v2475 = vld [vmem:[%s929 + $0x38] sm:$0xff]
        %v2476 = vld [vmem:[%s929 + $0x40] sm:$0xff]
        %v2477 = vld [vmem:[%s929 + $0x48] sm:$0xff]
        %v2478 = vld [vmem:[%s929 + $0x50] sm:$0xff]
        %v2479 = vld [vmem:[%s929 + $0x58] sm:$0xff]
        %v2480 = vld [vmem:[%s929 + $0x60] sm:$0xff]
        %v2481 = vld [vmem:[%s929 + $0x68] sm:$0xff]
        %v2482 = vld [vmem:[%s929 + $0x70] sm:$0xff]
        %v2483 = vld [vmem:[%s929 + $0x78] sm:$0xff]
        %v2484 = vld [vmem:[%s929 + $0x80] sm:$0xff]
        %v2485 = vld [vmem:[%s929 + $0x88] sm:$0xff]
        %v2486 = vld [vmem:[%s929 + $0x90] sm:$0xff]
        %v2487 = vld [vmem:[%s929 + $0x98] sm:$0xff]
        %v2488 = vld [vmem:[%s929 + $0xa0] sm:$0xff]
        %v2489 = vld [vmem:[%s929 + $0xa8] sm:$0xff]
        %v2490 = vld [vmem:[%s929 + $0xb0] sm:$0xff]
        %v2491 = vld [vmem:[%s929 + $0xb8] sm:$0xff]
        %v2492 = vld [vmem:[%s929 + $0xc0] sm:$0xff]
        %v2493 = vld [vmem:[%s929 + $0xc8] sm:$0xff]
        %v2494 = vld [vmem:[%s929 + $0xd0] sm:$0xff]
        %v2495 = vld [vmem:[%s929 + $0xd8] sm:$0xff]
        %v2496 = vld [vmem:[%s929 + $0xe0] sm:$0xff]
        %v2497 = vld [vmem:[%s929 + $0xe8] sm:$0xff]
        %v2498 = vld [vmem:[%s929 + $0xf0] sm:$0xff]
        %v2499 = vld [vmem:[%s929 + $0xf8] sm:$0xff]
        %v2500 = vld [vmem:[%s929 + $0x100] sm:$0xff]
        %v2501 = vld [vmem:[%s929 + $0x108] sm:$0xff]
        %v2502 = vld [vmem:[%s929 + $0x110] sm:$0xff]
        %v2503 = vld [vmem:[%s929 + $0x118] sm:$0xff]
        %v2504 = vld [vmem:[%s929 + $0x120] sm:$0xff]
        %v2505 = vld [vmem:[%s929 + $0x128] sm:$0xff]
        %v2506 = vld [vmem:[%s929 + $0x130] sm:$0xff]
        %v2507 = vld [vmem:[%s929 + $0x138] sm:$0xff]
        %v2508 = vld [vmem:[%s929 + $0x140] sm:$0xff]
        %v2509 = vld [vmem:[%s929 + $0x148] sm:$0xff]
        %v2510 = vld [vmem:[%s929 + $0x150] sm:$0xff]
        %v2511 = vld [vmem:[%s929 + $0x158] sm:$0xff]
        %v2512 = vld [vmem:[%s929 + $0x160] sm:$0xff]
        %v2513 = vld [vmem:[%s929 + $0x168] sm:$0xff]
        %v2514 = vld [vmem:[%s929 + $0x170] sm:$0xff]
        %v2515 = vld [vmem:[%s929 + $0x178] sm:$0xff]
        %v2516 = vld [vmem:[%s929 + $0x180] sm:$0xff]
        %v2517 = vld [vmem:[%s929 + $0x188] sm:$0xff]
        %v2518 = vld [vmem:[%s929 + $0x190] sm:$0xff]
        %v2519 = vld [vmem:[%s929 + $0x198] sm:$0xff]
        %v2520 = vld [vmem:[%s929 + $0x1a0] sm:$0xff]
        %v2521 = vld [vmem:[%s929 + $0x1a8] sm:$0xff]
        %v2522 = vld [vmem:[%s929 + $0x1b0] sm:$0xff]
        %v2523 = vld [vmem:[%s929 + $0x1b8] sm:$0xff]
        %v2524 = vld [vmem:[%s929 + $0x1c0] sm:$0xff]
        %v2525 = vld [vmem:[%s929 + $0x1c8] sm:$0xff]
        %v2526 = vld [vmem:[%s929 + $0x1d0] sm:$0xff]
        %v2527 = vld [vmem:[%s929 + $0x1d8] sm:$0xff]
        %v2528 = vld [vmem:[%s929 + $0x1e0] sm:$0xff]
        %v2529 = vld [vmem:[%s929 + $0x1e8] sm:$0xff]
        %v2530 = vld [vmem:[%s929 + $0x1f0] sm:$0xff]
        %v2531 = vld [vmem:[%s929 + $0x1f8] sm:$0xff]
        %v2532 = vld [vmem:[%s1063] sm:$0x1]
        %v2534 = vlaneseq
        %v2535 = vshrl.u32 %v2534, 7
        %v2536 = vsub.s32 0, %v2535
        %v2537 = vrot.slane %v2532, %v2536
        %2539 = vmatprep.subr.mxu0 0.0
        %2540 = vmatpush1.msra.mxu0 %v2468
        %2541 = vmatprep.subr.mxu0 0.0
        %2542 = vmatpush1.msra.mxu0 %v2469
        %2543 = vmatprep.subr.mxu0 0.0
        %2544 = vmatpush1.msra.mxu0 %v2470
        %2545 = vmatprep.subr.mxu0 0.0
        %2546 = vmatpush1.msra.mxu0 %v2471
        %2547 = vmatprep.subr.mxu0 0.0
        %2548 = vmatpush1.msra.mxu0 %v2472
        %2549 = vmatprep.subr.mxu0 0.0
        %2550 = vmatpush1.msra.mxu0 %v2473
        %2551 = vmatprep.subr.mxu0 0.0
        %2552 = vmatpush1.msra.mxu0 %v2474
        %2553 = vmatprep.subr.mxu0 0.0
        %2554 = vmatpush1.msra.mxu0 %v2475
        %2555 = vmatprep.subr.mxu0 0.0
        %2556 = vmatpush1.msra.mxu0 %v2476
        %2557 = vmatprep.subr.mxu0 0.0
        %2558 = vmatpush1.msra.mxu0 %v2477
        %2559 = vmatprep.subr.mxu0 0.0
        %2560 = vmatpush1.msra.mxu0 %v2478
        %2561 = vmatprep.subr.mxu0 0.0
        %2562 = vmatpush1.msra.mxu0 %v2479
        %2563 = vmatprep.subr.mxu0 0.0
        %2564 = vmatpush1.msra.mxu0 %v2480
        %2565 = vmatprep.subr.mxu0 0.0
        %2566 = vmatpush1.msra.mxu0 %v2481
        %2567 = vmatprep.subr.mxu0 0.0
        %2568 = vmatpush1.msra.mxu0 %v2482
        %2569 = vmatprep.subr.mxu0 0.0
        %2570 = vmatpush1.msra.mxu0 %v2483
        %2571 = vmatprep.subr.mxu0 0.0
        %2572 = vmatpush1.msra.mxu0 %v2484
        %2573 = vmatprep.subr.mxu0 0.0
        %2574 = vmatpush1.msra.mxu0 %v2485
        %2575 = vmatprep.subr.mxu0 0.0
        %2576 = vmatpush1.msra.mxu0 %v2486
        %2577 = vmatprep.subr.mxu0 0.0
        %2578 = vmatpush1.msra.mxu0 %v2487
        %2579 = vmatprep.subr.mxu0 0.0
        %2580 = vmatpush1.msra.mxu0 %v2488
        %2581 = vmatprep.subr.mxu0 0.0
        %2582 = vmatpush1.msra.mxu0 %v2489
        %2583 = vmatprep.subr.mxu0 0.0
        %2584 = vmatpush1.msra.mxu0 %v2490
        %2585 = vmatprep.subr.mxu0 0.0
        %2586 = vmatpush1.msra.mxu0 %v2491
        %2587 = vmatprep.subr.mxu0 0.0
        %2588 = vmatpush1.msra.mxu0 %v2492
        %2589 = vmatprep.subr.mxu0 0.0
        %2590 = vmatpush1.msra.mxu0 %v2493
        %2591 = vmatprep.subr.mxu0 0.0
        %2592 = vmatpush1.msra.mxu0 %v2494
        %2593 = vmatprep.subr.mxu0 0.0
        %2594 = vmatpush1.msra.mxu0 %v2495
        %2595 = vmatprep.subr.mxu0 0.0
        %2596 = vmatpush1.msra.mxu0 %v2496
        %2597 = vmatprep.subr.mxu0 0.0
        %2598 = vmatpush1.msra.mxu0 %v2497
        %2599 = vmatprep.subr.mxu0 0.0
        %2600 = vmatpush1.msra.mxu0 %v2498
        %2601 = vmatprep.subr.mxu0 0.0
        %2602 = vmatpush1.msra.mxu0 %v2499
        %2603 = vmatprep.mubr.f32.mxu0 %v2465
        %2604 = vmatmul.mubr.f32.gmra.mrb[0].mxu0 %v2464
        %v2605 = vpop.f32.mrb[0].mxu0
        %v2606 = vadd.f32 %v2537, %v2605
        %v2607 = vpop.f32.mrb[0].mxu0
        %2608 = vdwg.mxu0
        %2609 = vmatprep.subr.mxu0 0.0
        %2610 = vmatpush1.msra.mxu0 %v2500
        %2611 = vmatprep.subr.mxu0 0.0
        %2612 = vmatpush1.msra.mxu0 %v2501
        %2613 = vmatprep.subr.mxu0 0.0
        %2614 = vmatpush1.msra.mxu0 %v2502
        %2615 = vmatprep.subr.mxu0 0.0
        %2616 = vmatpush1.msra.mxu0 %v2503
        %2617 = vmatprep.subr.mxu0 0.0
        %2618 = vmatpush1.msra.mxu0 %v2504
        %2619 = vmatprep.subr.mxu0 0.0
        %2620 = vmatpush1.msra.mxu0 %v2505
        %2621 = vmatprep.subr.mxu0 0.0
        %2622 = vmatpush1.msra.mxu0 %v2506
        %2623 = vmatprep.subr.mxu0 0.0
        %2624 = vmatpush1.msra.mxu0 %v2507
        %2625 = vmatprep.subr.mxu0 0.0
        %2626 = vmatpush1.msra.mxu0 %v2508
        %2627 = vmatprep.subr.mxu0 0.0
        %2628 = vmatpush1.msra.mxu0 %v2509
        %2629 = vmatprep.subr.mxu0 0.0
        %2630 = vmatpush1.msra.mxu0 %v2510
        %2631 = vmatprep.subr.mxu0 0.0
        %2632 = vmatpush1.msra.mxu0 %v2511
        %2633 = vmatprep.subr.mxu0 0.0
        %2634 = vmatpush1.msra.mxu0 %v2512
        %2635 = vmatprep.subr.mxu0 0.0
        %2636 = vmatpush1.msra.mxu0 %v2513
        %2637 = vmatprep.subr.mxu0 0.0
        %2638 = vmatpush1.msra.mxu0 %v2514
        %2639 = vmatprep.subr.mxu0 0.0
        %2640 = vmatpush1.msra.mxu0 %v2515
        %2641 = vmatprep.subr.mxu0 0.0
        %2642 = vmatpush1.msra.mxu0 %v2516
        %2643 = vmatprep.subr.mxu0 0.0
        %2644 = vmatpush1.msra.mxu0 %v2517
        %2645 = vmatprep.subr.mxu0 0.0
        %2646 = vmatpush1.msra.mxu0 %v2518
        %2647 = vmatprep.subr.mxu0 0.0
        %2648 = vmatpush1.msra.mxu0 %v2519
        %2649 = vmatprep.subr.mxu0 0.0
        %2650 = vmatpush1.msra.mxu0 %v2520
        %2651 = vmatprep.subr.mxu0 0.0
        %2652 = vmatpush1.msra.mxu0 %v2521
        %2653 = vmatprep.subr.mxu0 0.0
        %2654 = vmatpush1.msra.mxu0 %v2522
        %2655 = vmatprep.subr.mxu0 0.0
        %2656 = vmatpush1.msra.mxu0 %v2523
        %2657 = vmatprep.subr.mxu0 0.0
        %2658 = vmatpush1.msra.mxu0 %v2524
        %2659 = vmatprep.subr.mxu0 0.0
        %2660 = vmatpush1.msra.mxu0 %v2525
        %2661 = vmatprep.subr.mxu0 0.0
        %2662 = vmatpush1.msra.mxu0 %v2526
        %2663 = vmatprep.subr.mxu0 0.0
        %2664 = vmatpush1.msra.mxu0 %v2527
        %2665 = vmatprep.subr.mxu0 0.0
        %2666 = vmatpush1.msra.mxu0 %v2528
        %2667 = vmatprep.subr.mxu0 0.0
        %2668 = vmatpush1.msra.mxu0 %v2529
        %2669 = vmatprep.subr.mxu0 0.0
        %2670 = vmatpush1.msra.mxu0 %v2530
        %2671 = vmatprep.subr.mxu0 0.0
        %2672 = vmatpush1.msra.mxu0 %v2531
        %2673 = vmatprep.mubr.f32.mxu0 %v2467
        %2674 = vmatmul.mubr.f32.gmra.mrb[0].mxu0 %v2466
        %v2675 = vpop.f32.mrb[0].mxu0
        %v2676 = vadd.f32 %v2606, %v2675
        %v2677 = vpop.f32.mrb[0].mxu0
        %2678 = vdwg.mxu0
        %v2679 = vadd.f32 %v2203, %v2676
        %v2680 = vld [vmem:[%s1066] sm:$0x1]
        %v2681 = vld [vmem:[%s1069] sm:$0x1]
        %2682 = vadd.xlane.f32.xlu0 %v2679
        %v2683 = vpop.xlane.xlu0 %2682
        %v2684 = vmul.f32 %v2683, %v2180
        %v2685 = vsub.f32 %v2679, %v2684
        %v2686 = vmul.f32 %v2685, %v2685
        %2687 = vadd.xlane.f32.xlu0 %v2686
        %v2688 = vpop.xlane.xlu0 %2687
        %v2689 = vmul.f32 %v2688, %v2180
        %v2690 = vadd.f32 %v2689, 1e-05
        %v2691 = vrsqrt.pop %v2690
        %v2692 = vmul.f32 %v2685, %v2691
        %v2694 = vlaneseq
        %v2695 = vshrl.u32 %v2694, 7
        %v2696 = vsub.s32 0, %v2695
        %v2697 = vrot.slane %v2680, %v2696
        %v2699 = vmul.f32 %v2692, %v2697
        %v2701 = vlaneseq
        %v2702 = vshrl.u32 %v2701, 7
        %v2703 = vsub.s32 0, %v2702
        %v2704 = vrot.slane %v2681, %v2703
        %v2706 = vadd.f32 %v2699, %v2704
        %2707 = vst [vmem:[#allocation2] sm:$0xff] %v2706
        %p2708 = scmp.eq.s32.totalorder %s47, 1
        // Predicated region
        $region161: #{tpu_custom_call.1} parent=107 // pred_check
          %p2709 = pneg %p2708
        $region162: #{tpu_custom_call.1} parent=107 // pred_check_branch
          %2711 = sbr.rel (%p2709) target = $region164
        $region163: #{tpu_custom_call.1} parent=107 // pred_region
          %v2712 = vld [vmem:[#allocation2] sm:$0xff]
          %v2713 = vld [vmem:[#allocation18] sm:$0xff]
          %v2714 = vld [vmem:[#allocation18 + $0x8] sm:$0xff]
          %v2715 = vld [vmem:[#allocation18 + $0x10] sm:$0xff]
          %v2716 = vld [vmem:[#allocation18 + $0x18] sm:$0xff]
          %v2717 = vld [vmem:[#allocation18 + $0x20] sm:$0xff]
          %v2718 = vld [vmem:[#allocation18 + $0x28] sm:$0xff]
          %v2719 = vld [vmem:[#allocation18 + $0x30] sm:$0xff]
          %v2720 = vld [vmem:[#allocation18 + $0x38] sm:$0xff]
          %v2721 = vld [vmem:[#allocation18 + $0x40] sm:$0xff]
          %v2722 = vld [vmem:[#allocation18 + $0x48] sm:$0xff]
          %v2723 = vld [vmem:[#allocation18 + $0x50] sm:$0xff]
          %v2724 = vld [vmem:[#allocation18 + $0x58] sm:$0xff]
          %v2725 = vld [vmem:[#allocation18 + $0x60] sm:$0xff]
          %v2726 = vld [vmem:[#allocation18 + $0x68] sm:$0xff]
          %v2727 = vld [vmem:[#allocation18 + $0x70] sm:$0xff]
          %v2728 = vld [vmem:[#allocation18 + $0x78] sm:$0xff]
          %v2729 = vld [vmem:[%s19] sm:$0x1]
          %v2731 = vlaneseq
          %v2732 = vshrl.u32 %v2731, 7
          %v2733 = vsub.s32 0, %v2732
          %v2734 = vrot.slane %v2729, %v2733
          %2736 = vmatprep.subr.mxu0 0.0
          %2737 = vmatpush1.msra.mxu0 %v2713
          %2738 = vmatprep.subr.mxu0 0.0
          %2739 = vmatpush1.msra.mxu0 %v2714
          %2740 = vmatprep.subr.mxu0 0.0
          %2741 = vmatpush1.msra.mxu0 %v2715
          %2742 = vmatprep.subr.mxu0 0.0
          %2743 = vmatpush1.msra.mxu0 %v2716
          %2744 = vmatprep.subr.mxu0 0.0
          %2745 = vmatpush1.msra.mxu0 %v2717
          %2746 = vmatprep.subr.mxu0 0.0
          %2747 = vmatpush1.msra.mxu0 %v2718
          %2748 = vmatprep.subr.mxu0 0.0
          %2749 = vmatpush1.msra.mxu0 %v2719
          %2750 = vmatprep.subr.mxu0 0.0
          %2751 = vmatpush1.msra.mxu0 %v2720
          %2752 = vmatprep.subr.mxu0 0.0
          %2753 = vmatpush1.msra.mxu0 %v2721
          %2754 = vmatprep.subr.mxu0 0.0
          %2755 = vmatpush1.msra.mxu0 %v2722
          %2756 = vmatprep.subr.mxu0 0.0
          %2757 = vmatpush1.msra.mxu0 %v2723
          %2758 = vmatprep.subr.mxu0 0.0
          %2759 = vmatpush1.msra.mxu0 %v2724
          %2760 = vmatprep.subr.mxu0 0.0
          %2761 = vmatpush1.msra.mxu0 %v2725
          %2762 = vmatprep.subr.mxu0 0.0
          %2763 = vmatpush1.msra.mxu0 %v2726
          %2764 = vmatprep.subr.mxu0 0.0
          %2765 = vmatpush1.msra.mxu0 %v2727
          %2766 = vmatprep.subr.mxu0 0.0
          %2767 = vmatpush1.msra.mxu0 %v2728
          %2768 = vmatprep.subr.mxu0 0.0
          %2769 = vmatpush1.msra.mxu0 0.0
          %2770 = vmatprep.subr.mxu0 0.0
          %2771 = vmatpush1.msra.mxu0 0.0
          %2772 = vmatprep.subr.mxu0 0.0
          %2773 = vmatpush1.msra.mxu0 0.0
          %2774 = vmatprep.subr.mxu0 0.0
          %2775 = vmatpush1.msra.mxu0 0.0
          %2776 = vmatprep.subr.mxu0 0.0
          %2777 = vmatpush1.msra.mxu0 0.0
          %2778 = vmatprep.subr.mxu0 0.0
          %2779 = vmatpush1.msra.mxu0 0.0
          %2780 = vmatprep.subr.mxu0 0.0
          %2781 = vmatpush1.msra.mxu0 0.0
          %2782 = vmatprep.subr.mxu0 0.0
          %2783 = vmatpush1.msra.mxu0 0.0
          %2784 = vmatprep.subr.mxu0 0.0
          %2785 = vmatpush1.msra.mxu0 0.0
          %2786 = vmatprep.subr.mxu0 0.0
          %2787 = vmatpush1.msra.mxu0 0.0
          %2788 = vmatprep.subr.mxu0 0.0
          %2789 = vmatpush1.msra.mxu0 0.0
          %2790 = vmatprep.subr.mxu0 0.0
          %2791 = vmatpush1.msra.mxu0 0.0
          %2792 = vmatprep.subr.mxu0 0.0
          %2793 = vmatpush1.msra.mxu0 0.0
          %2794 = vmatprep.subr.mxu0 0.0
          %2795 = vmatpush1.msra.mxu0 0.0
          %2796 = vmatprep.subr.mxu0 0.0
          %2797 = vmatpush1.msra.mxu0 0.0
          %2798 = vmatprep.subr.mxu0 0.0
          %2799 = vmatpush1.msra.mxu0 0.0
          %2800 = vmatprep.mubr.f32.mxu0 0.0
          %2801 = vmatmul.mubr.f32.gmra.mrb[0].mxu0 %v2712
          %v2802 = vpop.f32.mrb[0].mxu0
          %v2803 = vadd.f32 %v2734, %v2802
          %v2804 = vpop.f32.mrb[0].mxu0
          %2805 = vdwg.mxu0
          %v2806 = vmul.f32 %v2803, 0.5
          %v2807 = vmul.f32 %v2803, 0.044715
          %v2808 = vmul.f32 %v2807, %v2803
          %v2809 = vmul.f32 %v2808, %v2803
          %v2810 = vadd.f32 %v2803, %v2809
          %v2811 = vmul.f32 %v2810, 0.7978846
          %v2812 = vtanh.pop %v2811
          %v2813 = vadd.f32 %v2812, 1.0
          %v2814 = vmul.f32 %v2806, %v2813
          %v2815 = vld [vmem:[#allocation19] sm:$0xff]
          %v2816 = vld [vmem:[#allocation19 + $0x8] sm:$0xff]
          %v2817 = vld [vmem:[#allocation19 + $0x10] sm:$0xff]
          %v2818 = vld [vmem:[#allocation19 + $0x18] sm:$0xff]
          %v2819 = vld [vmem:[#allocation19 + $0x20] sm:$0xff]
          %v2820 = vld [vmem:[#allocation19 + $0x28] sm:$0xff]
          %v2821 = vld [vmem:[#allocation19 + $0x30] sm:$0xff]
          %v2822 = vld [vmem:[#allocation19 + $0x38] sm:$0xff]
          %v2823 = vld [vmem:[#allocation19 + $0x40] sm:$0xff]
          %v2824 = vld [vmem:[#allocation19 + $0x48] sm:$0xff]
          %v2825 = vld [vmem:[#allocation19 + $0x50] sm:$0xff]
          %v2826 = vld [vmem:[#allocation19 + $0x58] sm:$0xff]
          %v2827 = vld [vmem:[#allocation19 + $0x60] sm:$0xff]
          %v2828 = vld [vmem:[#allocation19 + $0x68] sm:$0xff]
          %v2829 = vld [vmem:[#allocation19 + $0x70] sm:$0xff]
          %v2830 = vld [vmem:[#allocation19 + $0x78] sm:$0xff]
          %v2831 = vld [vmem:[%s21] sm:$0x1]
          %v2833 = vlaneseq
          %v2834 = vshrl.u32 %v2833, 7
          %v2835 = vsub.s32 0, %v2834
          %v2836 = vrot.slane %v2831, %v2835
          %2838 = vmatprep.subr.mxu0 0.0
          %2839 = vmatpush1.msra.mxu0 %v2815
          %2840 = vmatprep.subr.mxu0 0.0
          %2841 = vmatpush1.msra.mxu0 %v2816
          %2842 = vmatprep.subr.mxu0 0.0
          %2843 = vmatpush1.msra.mxu0 %v2817
          %2844 = vmatprep.subr.mxu0 0.0
          %2845 = vmatpush1.msra.mxu0 %v2818
          %2846 = vmatprep.subr.mxu0 0.0
          %2847 = vmatpush1.msra.mxu0 %v2819
          %2848 = vmatprep.subr.mxu0 0.0
          %2849 = vmatpush1.msra.mxu0 %v2820
          %2850 = vmatprep.subr.mxu0 0.0
          %2851 = vmatpush1.msra.mxu0 %v2821
          %2852 = vmatprep.subr.mxu0 0.0
          %2853 = vmatpush1.msra.mxu0 %v2822
          %2854 = vmatprep.subr.mxu0 0.0
          %2855 = vmatpush1.msra.mxu0 %v2823
          %2856 = vmatprep.subr.mxu0 0.0
          %2857 = vmatpush1.msra.mxu0 %v2824
          %2858 = vmatprep.subr.mxu0 0.0
          %2859 = vmatpush1.msra.mxu0 %v2825
          %2860 = vmatprep.subr.mxu0 0.0
          %2861 = vmatpush1.msra.mxu0 %v2826
          %2862 = vmatprep.subr.mxu0 0.0
          %2863 = vmatpush1.msra.mxu0 %v2827
          %2864 = vmatprep.subr.mxu0 0.0
          %2865 = vmatpush1.msra.mxu0 %v2828
          %2866 = vmatprep.subr.mxu0 0.0
          %2867 = vmatpush1.msra.mxu0 %v2829
          %2868 = vmatprep.subr.mxu0 0.0
          %2869 = vmatpush1.msra.mxu0 %v2830
          %2870 = vmatprep.subr.mxu0 0.0
          %2871 = vmatpush1.msra.mxu0 0.0
          %2872 = vmatprep.subr.mxu0 0.0
          %2873 = vmatpush1.msra.mxu0 0.0
          %2874 = vmatprep.subr.mxu0 0.0
          %2875 = vmatpush1.msra.mxu0 0.0
          %2876 = vmatprep.subr.mxu0 0.0
          %2877 = vmatpush1.msra.mxu0 0.0
          %2878 = vmatprep.subr.mxu0 0.0
          %2879 = vmatpush1.msra.mxu0 0.0
          %2880 = vmatprep.subr.mxu0 0.0
          %2881 = vmatpush1.msra.mxu0 0.0
          %2882 = vmatprep.subr.mxu0 0.0
          %2883 = vmatpush1.msra.mxu0 0.0
          %2884 = vmatprep.subr.mxu0 0.0
          %2885 = vmatpush1.msra.mxu0 0.0
          %2886 = vmatprep.subr.mxu0 0.0
          %2887 = vmatpush1.msra.mxu0 0.0
          %2888 = vmatprep.subr.mxu0 0.0
          %2889 = vmatpush1.msra.mxu0 0.0
          %2890 = vmatprep.subr.mxu0 0.0
          %2891 = vmatpush1.msra.mxu0 0.0
          %2892 = vmatprep.subr.mxu0 0.0
          %2893 = vmatpush1.msra.mxu0 0.0
          %2894 = vmatprep.subr.mxu0 0.0
          %2895 = vmatpush1.msra.mxu0 0.0
          %2896 = vmatprep.subr.mxu0 0.0
          %2897 = vmatpush1.msra.mxu0 0.0
          %2898 = vmatprep.subr.mxu0 0.0
          %2899 = vmatpush1.msra.mxu0 0.0
          %2900 = vmatprep.subr.mxu0 0.0
          %2901 = vmatpush1.msra.mxu0 0.0
          %2902 = vmatprep.mubr.f32.mxu0 0.0
          %2903 = vmatmul.mubr.f32.gmra.mrb[0].mxu0 %v2814
          %v2904 = vpop.f32.mrb[0].mxu0
          %v2905 = vadd.f32 %v2836, %v2904
          %v2906 = vpop.f32.mrb[0].mxu0
          %2907 = vdwg.mxu0
          %2908 = vst [vmem:[%s1043] sm:$0xff] %v2905
        $region164: #{tpu_custom_call.1} parent=107 // pred_fallthru
          _
        %s2909 = sand.u32 %s589, 1
        %s2910 = scalar_lea.sflag [#allocation5], %s2909
        %s2911 = sand.u32 %s589, 1
        %s2912 = smul.addr %s2911, 8
        %s2913 = scalar_lea.vmem [#allocation20], %s2912
        // Predicated region
        $region165: #{tpu_custom_call.1} parent=107 // pred_check
          %p2914 = pneg %p599
        $region166: #{tpu_custom_call.1} parent=107 // pred_check_branch
          %2916 = sbr.rel (%p2914) target = $region168
        $region167: #{tpu_custom_call.1} parent=107 // pred_region
          %s2918 = ssub.s32 128, 128
          %2919 = vsyncadd %s2910, %s2918
          %s2920 = smul.addr %s46, 128
          %s2921 = scalar_lea.hbm %s22, %s2920
          %s2923 = sshll.u32 %s2913, 4
          %s2924 = int_to_ptr.vmem [resolvable:$true] %s2923
          %2926 = dma.vmem_to_hbm [thread:$0]  %s2924, 128, %s2921, %s2910
        $region168: #{tpu_custom_call.1} parent=107 // pred_fallthru
          _
      $region108: #{tpu_custom_call.1} parent=5 // pred_fallthru
        _
      %p2927 = scmp.le.s32.totalorder 2, %s37
      // Predicated region
      $region169: #{tpu_custom_call.1} parent=5 // pred_check
        %p2928 = pneg %p2927
      $region170: #{tpu_custom_call.1} parent=5 // pred_check_branch
        %2930 = sbr.rel (%p2928) target = $region172
      $region171: #{tpu_custom_call.1} parent=5 // pred_region
        %s2931 = ssub.s32 %s37, 2
        // Predicated region
        $region173: #{tpu_custom_call.1} parent=171 // pred_check
          %p2932 = pneg %p605
        $region174: #{tpu_custom_call.1} parent=171 // pred_check_branch
          %2934 = sbr.rel (%p2932) target = $region176
        $region175: #{tpu_custom_call.1} parent=171 // pred_region
          %s2935 = sand.u32 %s590, 1
          %s2936 = scalar_lea.sflag [#allocation5], %s2935
          %s2937 = sand.u32 %s590, 1
          %s2938 = smul.addr %s2937, 8
          %s2939 = scalar_lea.vmem [#allocation20], %s2938
          %2940 = dma.done %s2936, 128
        $region176: #{tpu_custom_call.1} parent=171 // pred_fallthru
          _
      $region172: #{tpu_custom_call.1} parent=5 // pred_fallthru
        _
    $region6: #{tpu_custom_call.1} parent=1 // loop_footer
      %s41 = sadd.s32 1, %s37
    $region7: #{tpu_custom_call.1} parent=1 // loop_footer_branch
      %36 = sbr.rel target = $region3
    $region8: #{tpu_custom_call.1} parent=1 // loop_exit
      _
    %2941 = vsyncpa [#allocation4], 1
    %s2942 = scalar_lea.sflag [#allocation4], 1
    %2943 = vsyncpa %s2942, 1
    %2944 = vsyncpa [#allocation7], 1
    %2945 = vsyncpa [#allocation10], 1
    %2946 = vsyncpa [#allocation13], 1
    %2947 = vsyncpa [#allocation5], 1
    %s2948 = scalar_lea.sflag [#allocation5], 1
    %2949 = vsyncpa %s2948, 1

</llo_original>
